<compile_context>
chip_gen: v7x
topology: tpu7x:2x2x1
jax: 0.10.0
libtpu: 0.0.40
codegen_flags: <defaults>
</compile_context>

<pallas_src>
import jax
import jax.numpy as jnp
from jax.experimental import pallas as pl
from jax.experimental.pallas import tpu as pltpu

# ----------------------------- config (opts) -----------------------------
B = 8              # batch size
F = 16             # n_features
HS = 32            # sender_hidden
HR = 32            # receiver_hidden
E = 16             # embedding
V = 8              # vocab_size
L = 6              # max_len
C = 4              # number of receiver candidates (classes)
TEMPERATURE_MAX = 10.0
LENGTH_COST = 0.01
WARMUP = False     # warmup_steps = 0 -> next(self.warmup, False) == False

BT = min(B, 8)     # batch tile (f32 sublane group); grid axis is batch tiles
assert B % BT == 0

F32 = jnp.float32
BF16 = jnp.bfloat16

# TODO(synk): ErasureChannel / DeletionChannel, GRU/LSTM cells, the SeeingConvNet image
#             encoder and LoggingStrategy.filtered_interaction are alternate configurations /
#             host-side utilities of the module and are not implemented here.


def _softplus(x):
    # nn.Softplus(beta=1), numerically stable with only exp/log.
    return jnp.maximum(x, 0.0) + jnp.log(1.0 + jnp.exp(-jnp.abs(x)))


def _log_softmax(x):
    x = x - jnp.max(x, axis=-1, keepdims=True)
    return x - jnp.log(jnp.sum(jnp.exp(x), axis=-1, keepdims=True))


# ------------------------------ fused kernel ------------------------------
def _game_kernel(x_ref, g_ref, rin_ref, lab_ref,
                 w_enc_ref, b_enc_ref, sos_in_ref,
                 s_win_ref, s_bin_ref, s_whh_ref, s_bhh_ref,
                 w_oute_ref, b_oute_ref,
                 r_win_bd_ref, r_bin_bd_ref,
                 r_wmsg_in_ref, r_bmsg_in_ref, r_eos_in_ref,
                 r_whh_ref, r_bhh_ref, s_sum_ref,
                 msg_ref, logp_ref, rout_ref, stats_ref):
    tau0_inv = 1.0 / TEMPERATURE_MAX
    zeros1 = jnp.zeros((BT, 1), F32)

    # ------------------------------- sender -------------------------------
    # prev_hidden = encoder(x).tanh()   (encoder weight loaded at use site; dies right after)
    h_s = jnp.tanh(jnp.dot(x_ref[...].astype(BF16), w_enc_ref[...],
                           preferred_element_type=F32) + b_enc_ref[...])
    g = g_ref[...]                              # (BT, L*V) Gumbel noise, lane-major per step

    # sender-loop weights (sender-only; no receiver weight is live during this loop)
    s_win = s_win_ref[...]                      # (V, HS)  = W_emb @ W_ih            (bf16)
    s_bin = s_bin_ref[...]                      # (1, HS)  = b_emb @ W_ih + b_ih     (f32)
    s_whh = s_whh_ref[...]                      # (HS, HS)                           (bf16)
    s_bhh = s_bhh_ref[...]                      # (1, HS)
    w_oute = w_oute_ref[...]                    # (HS, V+1) = [W_out | W_inv_temp]   (bf16)
    b_oute = b_oute_ref[...]                    # (1, V+1)  = [b_out | 0]

    # bookkeeping that only needs sender quantities (all off the recurrent chain)
    z = zeros1
    length = zeros1
    temp_sum = zeros1
    not_eosed = jnp.ones((BT, 1), F32)
    tau = zeros1                                # last step_temperature (for the EOS step)

    # step-0 input-path term comes from the constant SoS embedding (pre-composed host-side)
    in_term = jnp.broadcast_to(sos_in_ref[...], (BT, HS))

    for step in range(L):
        # RNNCell with the embedding linear folded into in_term:
        #   h_t = tanh(sample_{t-1} @ (W_emb@W_ih) + b' + h_{t-1} @ W_hh + b_hh)
        h_s = jnp.tanh(in_term
                       + jnp.dot(h_s.astype(BF16), s_whh, preferred_element_type=F32)
                       + s_bhh)
        # merged vocab + inverse-temperature head: one matmul per step
        y = jnp.dot(h_s.astype(BF16), w_oute, preferred_element_type=F32) + b_oute
        logits = y[:, :V]
        # step_temperature = (softplus(h@W_temp) + 1/temperature_max)^-1 ; use 1/tau directly
        inv_tau = _softplus(y[:, V:V + 1]) + tau0_inv                        # (BT, 1)
        tau = 1.0 / inv_tau                                                  # aux only

        # RelaxedOneHotCategorical(logits, tau).rsample() == softmax((logits + gumbel)/tau),
        # with deferred normalization: the matmul on the unnormalized exp() starts while the
        # row-sum / reciprocal compute concurrently; the 1/sum scale lands on the (BT, HS)
        # matmul result instead of the (BT, V) sample.
        u = (logits + g[:, step * V:(step + 1) * V]) * inv_tau
        p_u = jnp.exp(u - jnp.max(u, axis=-1, keepdims=True))
        raw_in = jnp.dot(p_u.astype(BF16), s_win, preferred_element_type=F32)
        inv_sum = 1.0 / jnp.sum(p_u, axis=-1, keepdims=True)
        in_term = raw_in * inv_sum + s_bin

        # normalized sample / detached log-probs: off the recurrent chain
        sample = p_u * inv_sum
        msg_ref[:, step * V:(step + 1) * V] = sample
        logp_ref[:, step * V:(step + 1) * V] = _log_softmax(logits * inv_tau)

        # z / length / temperature bookkeeping (only needs the sample's EOS-prob lane)
        m0 = sample[:, 0:1]
        add_mask = m0 * not_eosed
        z = z + add_mask
        length = length + (1.0 + step) * add_mask
        temp_sum = temp_sum + tau * add_mask
        not_eosed = not_eosed * (1.0 - m0)

    # ---------------------- appended EOS step (in-kernel) ------------------
    lane_v = jax.lax.broadcasted_iota(jnp.int32, (BT, V), 1)
    msg_ref[:, L * V:(L + 1) * V] = (lane_v == 0).astype(F32)
    # logits EOS row is torch.log(eos): 0 at symbol 0, -inf elsewhere (interaction only)
    logp_ref[:, L * V:(L + 1) * V] = jnp.where(lane_v == 0, 0.0, -jnp.inf)
    # at step L, message[:, L, 0] == 1 exactly -> add_mask == not_eosed and then not_eosed -> 0,
    # so the post-loop tail terms of the reference contribute exactly zero to z/length/temp.
    z = z + not_eosed
    length = length + (L + 1.0) * not_eosed
    temp_sum = temp_sum + tau * not_eosed            # temperatures[:, -1] for the EOS step

    # ----------------------- receiver + loss (fused) ----------------------
    # label one-hot built in-kernel
    lab1h = (jax.lax.broadcasted_iota(jnp.int32, (BT, C), 1) == lab_ref[...]).astype(F32)

    # block-diagonal input encoder: one (BT, C*F) @ (C*F, C*HR) matmul replaces C tiny ones;
    # emb_all[:, c*HR:(c+1)*HR] == tanh(candidate_c @ W_in + b_in)
    emb_all = jnp.tanh(jnp.dot(rin_ref[...].astype(BF16), r_win_bd_ref[...],
                               preferred_element_type=F32) + r_bin_bd_ref[...])  # (BT, C*HR)

    r_wmsg_in = r_wmsg_in_ref[...]    # (V, HR)  = W_msg @ W_ih                    (bf16)
    r_bmsg_in = r_bmsg_in_ref[...]    # (1, HR)  = b_msg @ W_ih + b_ih
    r_whh = r_whh_ref[...]            # (HR, HR)                                   (bf16)
    r_bhh = r_bhh_ref[...]            # (1, HR)
    eos_in = jnp.broadcast_to(r_eos_in_ref[...], (BT, HR))   # constant EOS input term
    s_sum = s_sum_ref[...]            # (C*HR, C) 0/1 block-sum selector           (bf16)

    loss = zeros1
    acc_accum = zeros1
    not_eosed_r = jnp.ones((BT, 1), F32)
    step_loss = zeros1
    step_acc = zeros1
    h_r = jnp.zeros((BT, HR), F32)    # prev_hidden = None -> zeros in nn.RNNCell

    for step in range(L + 1):
        if step < L:
            # re-read the stored sample (keeps it out of the register file between the loops)
            sample = msg_ref[:, step * V:(step + 1) * V]
            in_term_r = jnp.dot(sample.astype(BF16), r_wmsg_in,
                                preferred_element_type=F32) + r_bmsg_in
            m0 = sample[:, 0:1]
        else:                          # appended EOS step: constant one-hot message
            in_term_r = eos_in
            m0 = jnp.ones((BT, 1), F32)

        h_r = jnp.tanh(in_term_r
                       + jnp.dot(h_r.astype(BF16), r_whh, preferred_element_type=F32)
                       + r_bhh)

        # energies[b, c] = <embedded_input[b, c], h_t[b]> via one VPU mul + one block-sum
        # matmul (lane-dense, off the recurrent chain); LogSoftmax over candidates.
        h_tiled = jnp.concatenate([h_r] * C, axis=1)              # (BT, C*HR)
        energies = jnp.dot((emb_all * h_tiled).astype(BF16), s_sum,
                           preferred_element_type=F32)            # (BT, C)
        lsm = _log_softmax(energies)
        rout_ref[:, step * C:(step + 1) * C] = lsm

        # loss bookkeeping (receiver output is already log-softmaxed; cross_entropy's extra
        # log_softmax is idempotent, so lsm is used directly)
        gathered = jnp.sum(lsm * lab1h, axis=-1, keepdims=True)   # log p(label)
        rowmax = jnp.max(lsm, axis=-1, keepdims=True)
        step_loss = -gathered
        # argmax(-1) == label  (equality-to-max; ties have measure zero with float logits)
        step_acc = (gathered >= rowmax).astype(F32) * 100.0

        add_mask = m0 * not_eosed_r
        step_total = step_loss
        if not WARMUP:
            step_total = step_total + LENGTH_COST * step
        loss = loss + step_total * add_mask
        acc_accum = acc_accum + step_acc * add_mask
        not_eosed_r = not_eosed_r * (1.0 - m0)

    # ---- tail: uses the last loop iteration's quantities (not_eosed_r is exactly 0 here) ----
    tail_total = step_loss
    if not WARMUP:
        tail_total = tail_total + LENGTH_COST * L
    loss = loss + tail_total * not_eosed_r
    acc = acc_accum + step_acc * not_eosed_r         # 'accuracy' gets the tail term
    acc_nn = acc_accum                               # 'accuracy_nn' does not (as in reference)

    # single 8-lane stats store instead of eight 1-lane masked stores
    stats_ref[...] = jnp.concatenate(
        [loss, z, length, length, acc, acc_nn, temp_sum, zeros1], axis=1)


# ------------------------------ pallas glue -------------------------------
def _bspec(rows, cols):
    return pl.BlockSpec((rows, cols), lambda i: (i, 0))


def _wspec(shape):
    nd = len(shape)
    return pl.BlockSpec(tuple(shape), lambda i, _n=nd: (0,) * _n)


_PARAM_ORDER = ('w_enc', 'b_enc', 'sos_in',
                's_win', 's_bin', 's_whh', 's_bhh', 'w_oute', 'b_oute',
                'r_win_bd', 'r_bin_bd', 'r_wmsg_in', 'r_bmsg_in', 'r_eos_in',
                'r_whh', 'r_bhh', 's_sum')


def _game_call(kp, x, gumbel2d, rin2d, lab2d):
    params = [kp[k] for k in _PARAM_ORDER]
    ins = [x, gumbel2d, rin2d, lab2d] + params
    in_specs = [
        _bspec(BT, F),             # sender_input
        _bspec(BT, L * V),         # gumbel noise (lane-major per step)
        _bspec(BT, C * F),         # receiver_input (candidates lane-major)
        _bspec(BT, 1),             # labels
    ] + [_wspec(a.shape) for a in params]
    out_shape = (jax.ShapeDtypeStruct((B, (L + 1) * V), F32),
                 jax.ShapeDtypeStruct((B, (L + 1) * V), F32),
                 jax.ShapeDtypeStruct((B, (L + 1) * C), F32),
                 jax.ShapeDtypeStruct((B, 8), F32))
    out_specs = (_bspec(BT, (L + 1) * V),
                 _bspec(BT, (L + 1) * V),
                 _bspec(BT, (L + 1) * C),
                 _bspec(BT, 8))
    return pl.pallas_call(
        _game_kernel,
        grid=(B // BT,),
        in_specs=in_specs,
        out_specs=out_specs,
        out_shape=out_shape,
        compiler_params=pltpu.CompilerParams(dimension_semantics=("parallel",)),
    )(*ins)


def sender_receiver_rnn_gs_forward(kparams, sender_input, labels, receiver_input, gumbel):
    # free reshapes to the lane-major 2-D layouts the fused kernel consumes
    gumbel2d = gumbel.reshape(B, L * V)
    rin2d = receiver_input.reshape(B, C * F)
    lab2d = labels.reshape(B, 1).astype(jnp.int32)

    msg2d, logp2d, rout2d, stats = _game_call(kparams, sender_input, gumbel2d, rin2d, lab2d)

    message = msg2d.reshape(B, L + 1, V)           # includes the appended EOS symbol
    logits = logp2d.reshape(B, L + 1, V)           # includes torch.log(eos) row
    receiver_output = rout2d.reshape(B, L + 1, C)

    loss = stats[:, 0]
    z = stats[:, 1]
    length = stats[:, 2]
    length_nn = stats[:, 3]
    aux = {
        'accuracy': stats[:, 4],
        'accuracy_nn': stats[:, 5],
        'temperature': stats[:, 6],
        'length': length - 1.0,
        'length_nn': length_nn - 1.0,
    }
    # TODO(synk): LoggingStrategy().filtered_interaction is not available; return a plain dict.
    interaction = {
        'sender_input': sender_input, 'receiver_input': receiver_input, 'labels': labels,
        'message': message, 'logits': logits, 'message_length': length,
        'receiver_output': receiver_output,
        'message_nn': message, 'logits_nn': logits,          # NoChannel: identical
        'message_length_nn': length_nn, 'receiver_output_nn': receiver_output,
        'aux': aux, 'z': z,
    }
    return jnp.mean(loss), interaction


# --------------------------- deterministic init ---------------------------
def init_params(key):
    ks = jax.random.split(key, 20)

    def n(k, shape, scale=0.1):
        return (scale * jax.random.normal(k, shape, F32)).astype(F32)

    return {
        # sender
        's_w_enc': n(ks[0], (F, HS)),  's_b_enc': n(ks[1], (1, HS)),
        's_sos':   n(ks[2], (1, E), 0.01),                      # nn.init.normal_(sos, 0, 0.01)
        's_w_ih':  n(ks[3], (E, HS)),  's_b_ih': n(ks[4], (1, HS)),
        's_w_hh':  n(ks[5], (HS, HS)), 's_b_hh': n(ks[6], (1, HS)),
        's_w_out': n(ks[7], (HS, V)),  's_b_out': n(ks[8], (1, V)),
        's_w_temp': n(ks[9], (HS, 1)),                           # Linear(HS, 1, bias=False)
        's_w_emb': n(ks[10], (V, E)),  's_b_emb': n(ks[11], (1, E)),
        # receiver
        'r_w_in':  n(ks[12], (F, HR)), 'r_b_in': n(ks[13], (1, HR)),
        'r_w_msg': n(ks[14], (V, E)),  'r_b_msg': n(ks[15], (1, E)),
        'r_w_ih':  n(ks[16], (E, HR)), 'r_b_ih': n(ks[17], (1, HR)),
        'r_w_hh':  n(ks[18], (HR, HR)), 'r_b_hh': n(ks[19], (1, HR)),
    }


def prepare_params(p):
    """One-time host-side algebra (outside jit):
      * fold the inverse-temperature head into the vocab head (one (HS, V+1) matmul per step)
      * compose embedding linears into the downstream RNN-cell input linears (deletes one
        serial MXU matmul from every sender and receiver recurrent step)
      * build the block-diagonal receiver input encoder + block-sum selector
      * pre-cast matmul weights to bf16 (activations cast at the dot; accumulation stays f32)
    """
    bf = lambda a: jnp.asarray(a, BF16)
    f32 = lambda a: jnp.asarray(a, F32)
    kp = {}
    # sender
    kp['w_enc'] = bf(p['s_w_enc'])
    kp['b_enc'] = f32(p['s_b_enc'])
    kp['sos_in'] = f32(p['s_sos'] @ p['s_w_ih'] + p['s_b_ih'])                 # (1, HS)
    kp['s_win'] = bf(p['s_w_emb'] @ p['s_w_ih'])                               # (V, HS)
    kp['s_bin'] = f32(p['s_b_emb'] @ p['s_w_ih'] + p['s_b_ih'])                # (1, HS)
    kp['s_whh'] = bf(p['s_w_hh'])
    kp['s_bhh'] = f32(p['s_b_hh'])
    kp['w_oute'] = bf(jnp.concatenate([p['s_w_out'], p['s_w_temp']], axis=1))  # (HS, V+1)
    kp['b_oute'] = f32(jnp.concatenate([p['s_b_out'], jnp.zeros((1, 1), F32)], axis=1))
    # receiver
    wbd = jnp.zeros((C * F, C * HR), F32)
    for c in range(C):
        wbd = wbd.at[c * F:(c + 1) * F, c * HR:(c + 1) * HR].set(p['r_w_in'])
    kp['r_win_bd'] = bf(wbd)                                                   # (C*F, C*HR)
    kp['r_bin_bd'] = f32(jnp.tile(p['r_b_in'], (1, C)))                        # (1, C*HR)
    kp['r_wmsg_in'] = bf(p['r_w_msg'] @ p['r_w_ih'])                           # (V, HR)
    kp['r_bmsg_in'] = f32(p['r_b_msg'] @ p['r_w_ih'] + p['r_b_ih'])            # (1, HR)
    kp['r_eos_in'] = f32((p['r_w_msg'][0:1] + p['r_b_msg']) @ p['r_w_ih'] + p['r_b_ih'])
    kp['r_whh'] = bf(p['r_w_hh'])
    kp['r_bhh'] = f32(p['r_b_hh'])
    ssum = jnp.zeros((C * HR, C), F32)
    for c in range(C):
        ssum = ssum.at[c * HR:(c + 1) * HR, c].set(1.0)
    kp['s_sum'] = bf(ssum)                                                     # (C*HR, C)
    return kp


if __name__ == "__main__":
    key = jax.random.PRNGKey(0)
    kpk, kx, kr, kl, kg = jax.random.split(key, 5)

    params = init_params(kpk)
    kparams = prepare_params(params)
    sender_input = jax.random.normal(kx, (B, F), F32)
    receiver_input = jax.random.normal(kr, (B, C, F), F32)
    labels = jax.random.randint(kl, (B,), 0, C, jnp.int32)
    # Gumbel noise for RelaxedOneHotCategorical.rsample (training-mode sampling), drawn in glue.
    gumbel = jax.random.gumbel(kg, (B, L, V), F32)

    fwd = jax.jit(sender_receiver_rnn_gs_forward)
    loss, interaction = fwd(kparams, sender_input, labels, receiver_input, gumbel)
    jax.block_until_ready(loss)

    # probability-mass check from the reference module: assert z.allclose(ones)
    z = interaction['z']
    assert bool(jnp.allclose(z, jnp.ones_like(z), atol=1e-4)), "lost probability mass"
    assert bool(jnp.isfinite(loss)), "non-finite loss"

    print("KERNEL_OK")
</pallas_src>

<mosaic_0001>
module attributes {stable_mosaic.version = 11 : i64} {
  func.func @_game_kernel(%arg0: i32, %arg1: memref<8x16xf32, #tpu.memory_space<vmem>>, %arg2: memref<8x48xf32, #tpu.memory_space<vmem>>, %arg3: memref<8x64xf32, #tpu.memory_space<vmem>>, %arg4: memref<8x1xi32, #tpu.memory_space<vmem>>, %arg5: memref<16x32xbf16, #tpu.memory_space<vmem>>, %arg6: memref<1x32xf32, #tpu.memory_space<vmem>>, %arg7: memref<1x32xf32, #tpu.memory_space<vmem>>, %arg8: memref<8x32xbf16, #tpu.memory_space<vmem>>, %arg9: memref<1x32xf32, #tpu.memory_space<vmem>>, %arg10: memref<32x32xbf16, #tpu.memory_space<vmem>>, %arg11: memref<1x32xf32, #tpu.memory_space<vmem>>, %arg12: memref<32x9xbf16, #tpu.memory_space<vmem>>, %arg13: memref<1x9xf32, #tpu.memory_space<vmem>>, %arg14: memref<64x128xbf16, #tpu.memory_space<vmem>>, %arg15: memref<1x128xf32, #tpu.memory_space<vmem>>, %arg16: memref<8x32xbf16, #tpu.memory_space<vmem>>, %arg17: memref<1x32xf32, #tpu.memory_space<vmem>>, %arg18: memref<1x32xf32, #tpu.memory_space<vmem>>, %arg19: memref<32x32xbf16, #tpu.memory_space<vmem>>, %arg20: memref<1x32xf32, #tpu.memory_space<vmem>>, %arg21: memref<128x4xbf16, #tpu.memory_space<vmem>>, %arg22: memref<8x56xf32, #tpu.memory_space<vmem>>, %arg23: memref<8x56xf32, #tpu.memory_space<vmem>>, %arg24: memref<8x28xf32, #tpu.memory_space<vmem>>, %arg25: memref<8x8xf32, #tpu.memory_space<vmem>>) attributes {dimension_semantics = [#tpu.dimension_semantics<parallel>], iteration_bounds = array<i64: 1>, scalar_prefetch = 0 : i64, scratch_operands = 0 : i64, tpu.core_type = #tpu.core_type<tc>, window_params = [{transform_indices = @transform_0, window_bounds = array<i64: 8, 16>}, {transform_indices = @transform_1, window_bounds = array<i64: 8, 48>}, {transform_indices = @transform_2, window_bounds = array<i64: 8, 64>}, {transform_indices = @transform_3, window_bounds = array<i64: 8, 1>}, {pipeline_mode = #tpu.pipeline_mode<synchronous>, transform_indices = @transform_4, window_bounds = array<i64: 16, 32>}, {pipeline_mode = #tpu.pipeline_mode<synchronous>, transform_indices = @transform_5, window_bounds = array<i64: 1, 32>}, {pipeline_mode = #tpu.pipeline_mode<synchronous>, transform_indices = @transform_6, window_bounds = array<i64: 1, 32>}, {pipeline_mode = #tpu.pipeline_mode<synchronous>, transform_indices = @transform_7, window_bounds = array<i64: 8, 32>}, {pipeline_mode = #tpu.pipeline_mode<synchronous>, transform_indices = @transform_8, window_bounds = array<i64: 1, 32>}, {pipeline_mode = #tpu.pipeline_mode<synchronous>, transform_indices = @transform_9, window_bounds = array<i64: 32, 32>}, {pipeline_mode = #tpu.pipeline_mode<synchronous>, transform_indices = @transform_10, window_bounds = array<i64: 1, 32>}, {pipeline_mode = #tpu.pipeline_mode<synchronous>, transform_indices = @transform_11, window_bounds = array<i64: 32, 9>}, {pipeline_mode = #tpu.pipeline_mode<synchronous>, transform_indices = @transform_12, window_bounds = array<i64: 1, 9>}, {pipeline_mode = #tpu.pipeline_mode<synchronous>, transform_indices = @transform_13, window_bounds = array<i64: 64, 128>}, {pipeline_mode = #tpu.pipeline_mode<synchronous>, transform_indices = @transform_14, window_bounds = array<i64: 1, 128>}, {pipeline_mode = #tpu.pipeline_mode<synchronous>, transform_indices = @transform_15, window_bounds = array<i64: 8, 32>}, {pipeline_mode = #tpu.pipeline_mode<synchronous>, transform_indices = @transform_16, window_bounds = array<i64: 1, 32>}, {pipeline_mode = #tpu.pipeline_mode<synchronous>, transform_indices = @transform_17, window_bounds = array<i64: 1, 32>}, {pipeline_mode = #tpu.pipeline_mode<synchronous>, transform_indices = @transform_18, window_bounds = array<i64: 32, 32>}, {pipeline_mode = #tpu.pipeline_mode<synchronous>, transform_indices = @transform_19, window_bounds = array<i64: 1, 32>}, {pipeline_mode = #tpu.pipeline_mode<synchronous>, transform_indices = @transform_20, window_bounds = array<i64: 128, 4>}, {transform_indices = @transform_21, window_bounds = array<i64: 8, 56>}, {transform_indices = @transform_22, window_bounds = array<i64: 8, 56>}, {transform_indices = @transform_23, window_bounds = array<i64: 8, 28>}, {transform_indices = @transform_24, window_bounds = array<i64: 8, 8>}]} {
    %cst = arith.constant 0.000000e+00 : f32
    %0 = vector.broadcast %cst : f32 to vector<8x1xf32>
    %c0 = arith.constant 0 : index
    %c0_0 = arith.constant 0 : index
    %1 = vector.load %arg1[%c0, %c0_0] : memref<8x16xf32, #tpu.memory_space<vmem>>, vector<8x16xf32>
    %2 = arith.truncf %1 : vector<8x16xf32> to vector<8x16xbf16>
    %c0_1 = arith.constant 0 : index
    %c0_2 = arith.constant 0 : index
    %3 = vector.load %arg5[%c0_1, %c0_2] : memref<16x32xbf16, #tpu.memory_space<vmem>>, vector<16x32xbf16>
    %cst_3 = arith.constant dense<0.000000e+00> : vector<8x32xf32>
    %4 = tpu.matmul %2, %3, %cst_3 {dimension_numbers = #tpu.dot_dimension_numbers<[1], [0], [0], [1], [0, 0, 1, 1], [], []>} : vector<8x16xbf16>, vector<16x32xbf16>, vector<8x32xf32> -> vector<8x32xf32>
    %c0_4 = arith.constant 0 : index
    %c0_5 = arith.constant 0 : index
    %5 = vector.load %arg6[%c0_4, %c0_5] : memref<1x32xf32, #tpu.memory_space<vmem>>, vector<1x32xf32>
    %6 = vector.broadcast %5 : vector<1x32xf32> to vector<8x32xf32>
    %7 = arith.addf %4, %6 : vector<8x32xf32>
    %8 = math.tanh %7 : vector<8x32xf32>
    %c0_6 = arith.constant 0 : index
    %c0_7 = arith.constant 0 : index
    %9 = vector.load %arg2[%c0_6, %c0_7] : memref<8x48xf32, #tpu.memory_space<vmem>>, vector<8x48xf32>
    %c0_8 = arith.constant 0 : index
    %c0_9 = arith.constant 0 : index
    %10 = vector.load %arg8[%c0_8, %c0_9] : memref<8x32xbf16, #tpu.memory_space<vmem>>, vector<8x32xbf16>
    %c0_10 = arith.constant 0 : index
    %c0_11 = arith.constant 0 : index
    %11 = vector.load %arg9[%c0_10, %c0_11] : memref<1x32xf32, #tpu.memory_space<vmem>>, vector<1x32xf32>
    %c0_12 = arith.constant 0 : index
    %c0_13 = arith.constant 0 : index
    %12 = vector.load %arg10[%c0_12, %c0_13] : memref<32x32xbf16, #tpu.memory_space<vmem>>, vector<32x32xbf16>
    %c0_14 = arith.constant 0 : index
    %c0_15 = arith.constant 0 : index
    %13 = vector.load %arg11[%c0_14, %c0_15] : memref<1x32xf32, #tpu.memory_space<vmem>>, vector<1x32xf32>
    %c0_16 = arith.constant 0 : index
    %c0_17 = arith.constant 0 : index
    %14 = vector.load %arg12[%c0_16, %c0_17] : memref<32x9xbf16, #tpu.memory_space<vmem>>, vector<32x9xbf16>
    %c0_18 = arith.constant 0 : index
    %c0_19 = arith.constant 0 : index
    %15 = vector.load %arg13[%c0_18, %c0_19] : memref<1x9xf32, #tpu.memory_space<vmem>>, vector<1x9xf32>
    %cst_20 = arith.constant 1.000000e+00 : f32
    %16 = vector.broadcast %cst_20 : f32 to vector<8x1xf32>
    %c0_21 = arith.constant 0 : index
    %c0_22 = arith.constant 0 : index
    %17 = vector.load %arg7[%c0_21, %c0_22] : memref<1x32xf32, #tpu.memory_space<vmem>>, vector<1x32xf32>
    %18 = vector.shape_cast %17 : vector<1x32xf32> to vector<1x32xf32>
    %19 = vector.broadcast %18 : vector<1x32xf32> to vector<8x32xf32>
    %20 = arith.truncf %8 : vector<8x32xf32> to vector<8x32xbf16>
    %cst_23 = arith.constant dense<0.000000e+00> : vector<8x32xf32>
    %21 = tpu.matmul %20, %12, %cst_23 {dimension_numbers = #tpu.dot_dimension_numbers<[1], [0], [0], [1], [0, 0, 1, 1], [], []>} : vector<8x32xbf16>, vector<32x32xbf16>, vector<8x32xf32> -> vector<8x32xf32>
    %22 = arith.addf %19, %21 : vector<8x32xf32>
    %23 = vector.broadcast %13 : vector<1x32xf32> to vector<8x32xf32>
    %24 = arith.addf %22, %23 : vector<8x32xf32>
    %25 = math.tanh %24 : vector<8x32xf32>
    %26 = arith.truncf %25 : vector<8x32xf32> to vector<8x32xbf16>
    %cst_24 = arith.constant dense<0.000000e+00> : vector<8x9xf32>
    %27 = tpu.matmul %26, %14, %cst_24 {dimension_numbers = #tpu.dot_dimension_numbers<[1], [0], [0], [1], [0, 0, 1, 1], [], []>} : vector<8x32xbf16>, vector<32x9xbf16>, vector<8x9xf32> -> vector<8x9xf32>
    %28 = vector.broadcast %15 : vector<1x9xf32> to vector<8x9xf32>
    %29 = arith.addf %27, %28 : vector<8x9xf32>
    %30 = vector.extract_strided_slice %29 {offsets = [0, 0], sizes = [8, 8], strides = [1, 1]} : vector<8x9xf32> to vector<8x8xf32>
    %31 = vector.extract_strided_slice %29 {offsets = [0, 8], sizes = [8, 1], strides = [1, 1]} : vector<8x9xf32> to vector<8x1xf32>
    %cst_25 = arith.constant 0.000000e+00 : f32
    %32 = vector.broadcast %cst_25 : f32 to vector<8x1xf32>
    %33 = arith.maximumf %31, %32 : vector<8x1xf32>
    %34 = math.absf %31 : vector<8x1xf32>
    %cst_26 = arith.constant 0.000000e+00 : f32
    %35 = vector.broadcast %cst_26 : f32 to vector<8x1xf32>
    %36 = arith.subf %35, %34 : vector<8x1xf32>
    %37 = math.exp %36 : vector<8x1xf32>
    %cst_27 = arith.constant 1.000000e+00 : f32
    %38 = vector.broadcast %cst_27 : f32 to vector<8x1xf32>
    %39 = arith.addf %38, %37 : vector<8x1xf32>
    %40 = math.log %39 : vector<8x1xf32>
    %41 = arith.addf %33, %40 : vector<8x1xf32>
    %cst_28 = arith.constant 1.000000e-01 : f32
    %42 = vector.broadcast %cst_28 : f32 to vector<8x1xf32>
    %43 = arith.addf %41, %42 : vector<8x1xf32>
    %cst_29 = arith.constant 1.000000e+00 : f32
    %44 = vector.broadcast %cst_29 : f32 to vector<8x1xf32>
    %45 = arith.divf %44, %43 : vector<8x1xf32>
    %46 = vector.extract_strided_slice %9 {offsets = [0, 0], sizes = [8, 8], strides = [1, 1]} : vector<8x48xf32> to vector<8x8xf32>
    %47 = arith.addf %30, %46 : vector<8x8xf32>
    %48 = vector.broadcast %43 : vector<8x1xf32> to vector<8x8xf32>
    %49 = arith.mulf %47, %48 : vector<8x8xf32>
    %cst_30 = arith.constant dense<0xFF800000> : vector<8xf32>
    %50 = vector.multi_reduction <maximumf>, %49, %cst_30 [1] : vector<8x8xf32> to vector<8xf32>
    %51 = vector.shape_cast %50 : vector<8xf32> to vector<8x1xf32>
    %52 = vector.broadcast %51 : vector<8x1xf32> to vector<8x8xf32>
    %53 = arith.subf %49, %52 : vector<8x8xf32>
    %54 = math.exp %53 : vector<8x8xf32>
    %55 = arith.truncf %54 : vector<8x8xf32> to vector<8x8xbf16>
    %cst_31 = arith.constant dense<0.000000e+00> : vector<8x32xf32>
    %56 = tpu.matmul %55, %10, %cst_31 {dimension_numbers = #tpu.dot_dimension_numbers<[1], [0], [0], [1], [0, 0, 1, 1], [], []>} : vector<8x8xbf16>, vector<8x32xbf16>, vector<8x32xf32> -> vector<8x32xf32>
    %cst_32 = arith.constant dense<0.000000e+00> : vector<8xf32>
    %57 = vector.multi_reduction <add>, %54, %cst_32 [1] : vector<8x8xf32> to vector<8xf32>
    %58 = vector.shape_cast %57 : vector<8xf32> to vector<8x1xf32>
    %cst_33 = arith.constant 1.000000e+00 : f32
    %59 = vector.broadcast %cst_33 : f32 to vector<8x1xf32>
    %60 = arith.divf %59, %58 : vector<8x1xf32>
    %61 = vector.broadcast %60 : vector<8x1xf32> to vector<8x32xf32>
    %62 = arith.mulf %56, %61 : vector<8x32xf32>
    %63 = vector.broadcast %11 : vector<1x32xf32> to vector<8x32xf32>
    %64 = arith.addf %62, %63 : vector<8x32xf32>
    %65 = vector.broadcast %60 : vector<8x1xf32> to vector<8x8xf32>
    %66 = arith.mulf %54, %65 : vector<8x8xf32>
    %c0_34 = arith.constant 0 : index
    %c0_35 = arith.constant 0 : index
    %67 = vector.load %arg22[%c0_34, %c0_35] : memref<8x56xf32, #tpu.memory_space<vmem>>, vector<8x8xf32>
    tpu.vector_store %arg22[%c0_34, %c0_35], %66 {strides = array<i32>} : memref<8x56xf32, #tpu.memory_space<vmem>>, vector<8x8xf32>,
    %68 = vector.broadcast %43 : vector<8x1xf32> to vector<8x8xf32>
    %69 = arith.mulf %30, %68 : vector<8x8xf32>
    %cst_36 = arith.constant dense<0xFF800000> : vector<8xf32>
    %70 = vector.multi_reduction <maximumf>, %69, %cst_36 [1] : vector<8x8xf32> to vector<8xf32>
    %71 = vector.shape_cast %70 : vector<8xf32> to vector<8x1xf32>
    %72 = vector.broadcast %71 : vector<8x1xf32> to vector<8x8xf32>
    %73 = arith.subf %69, %72 : vector<8x8xf32>
    %74 = math.exp %73 : vector<8x8xf32>
    %cst_37 = arith.constant dense<0.000000e+00> : vector<8xf32>
    %75 = vector.multi_reduction <add>, %74, %cst_37 [1] : vector<8x8xf32> to vector<8xf32>
    %76 = vector.shape_cast %75 : vector<8xf32> to vector<8x1xf32>
    %77 = math.log %76 : vector<8x1xf32>
    %78 = vector.broadcast %77 : vector<8x1xf32> to vector<8x8xf32>
    %79 = arith.subf %73, %78 : vector<8x8xf32>
    %c0_38 = arith.constant 0 : index
    %c0_39 = arith.constant 0 : index
    %80 = vector.load %arg23[%c0_38, %c0_39] : memref<8x56xf32, #tpu.memory_space<vmem>>, vector<8x8xf32>
    tpu.vector_store %arg23[%c0_38, %c0_39], %79 {strides = array<i32>} : memref<8x56xf32, #tpu.memory_space<vmem>>, vector<8x8xf32>,
    %81 = vector.extract_strided_slice %66 {offsets = [0, 0], sizes = [8, 1], strides = [1, 1]} : vector<8x8xf32> to vector<8x1xf32>
    %82 = arith.mulf %81, %16 : vector<8x1xf32>
    %83 = arith.addf %0, %82 : vector<8x1xf32>
    %cst_40 = arith.constant 1.000000e+00 : f32
    %84 = vector.broadcast %cst_40 : f32 to vector<8x1xf32>
    %85 = arith.mulf %84, %82 : vector<8x1xf32>
    %86 = arith.addf %0, %85 : vector<8x1xf32>
    %87 = arith.mulf %45, %82 : vector<8x1xf32>
    %88 = arith.addf %0, %87 : vector<8x1xf32>
    %cst_41 = arith.constant 1.000000e+00 : f32
    %89 = vector.broadcast %cst_41 : f32 to vector<8x1xf32>
    %90 = arith.subf %89, %81 : vector<8x1xf32>
    %91 = arith.mulf %16, %90 : vector<8x1xf32>
    %92 = arith.truncf %25 : vector<8x32xf32> to vector<8x32xbf16>
    %cst_42 = arith.constant dense<0.000000e+00> : vector<8x32xf32>
    %93 = tpu.matmul %92, %12, %cst_42 {dimension_numbers = #tpu.dot_dimension_numbers<[1], [0], [0], [1], [0, 0, 1, 1], [], []>} : vector<8x32xbf16>, vector<32x32xbf16>, vector<8x32xf32> -> vector<8x32xf32>
    %94 = arith.addf %64, %93 : vector<8x32xf32>
    %95 = vector.broadcast %13 : vector<1x32xf32> to vector<8x32xf32>
    %96 = arith.addf %94, %95 : vector<8x32xf32>
    %97 = math.tanh %96 : vector<8x32xf32>
    %98 = arith.truncf %97 : vector<8x32xf32> to vector<8x32xbf16>
    %cst_43 = arith.constant dense<0.000000e+00> : vector<8x9xf32>
    %99 = tpu.matmul %98, %14, %cst_43 {dimension_numbers = #tpu.dot_dimension_numbers<[1], [0], [0], [1], [0, 0, 1, 1], [], []>} : vector<8x32xbf16>, vector<32x9xbf16>, vector<8x9xf32> -> vector<8x9xf32>
    %100 = vector.broadcast %15 : vector<1x9xf32> to vector<8x9xf32>
    %101 = arith.addf %99, %100 : vector<8x9xf32>
    %102 = vector.extract_strided_slice %101 {offsets = [0, 0], sizes = [8, 8], strides = [1, 1]} : vector<8x9xf32> to vector<8x8xf32>
    %103 = vector.extract_strided_slice %101 {offsets = [0, 8], sizes = [8, 1], strides = [1, 1]} : vector<8x9xf32> to vector<8x1xf32>
    %cst_44 = arith.constant 0.000000e+00 : f32
    %104 = vector.broadcast %cst_44 : f32 to vector<8x1xf32>
    %105 = arith.maximumf %103, %104 : vector<8x1xf32>
    %106 = math.absf %103 : vector<8x1xf32>
    %cst_45 = arith.constant 0.000000e+00 : f32
    %107 = vector.broadcast %cst_45 : f32 to vector<8x1xf32>
    %108 = arith.subf %107, %106 : vector<8x1xf32>
    %109 = math.exp %108 : vector<8x1xf32>
    %cst_46 = arith.constant 1.000000e+00 : f32
    %110 = vector.broadcast %cst_46 : f32 to vector<8x1xf32>
    %111 = arith.addf %110, %109 : vector<8x1xf32>
    %112 = math.log %111 : vector<8x1xf32>
    %113 = arith.addf %105, %112 : vector<8x1xf32>
    %cst_47 = arith.constant 1.000000e-01 : f32
    %114 = vector.broadcast %cst_47 : f32 to vector<8x1xf32>
    %115 = arith.addf %113, %114 : vector<8x1xf32>
    %cst_48 = arith.constant 1.000000e+00 : f32
    %116 = vector.broadcast %cst_48 : f32 to vector<8x1xf32>
    %117 = arith.divf %116, %115 : vector<8x1xf32>
    %118 = vector.extract_strided_slice %9 {offsets = [0, 8], sizes = [8, 8], strides = [1, 1]} : vector<8x48xf32> to vector<8x8xf32>
    %119 = arith.addf %102, %118 : vector<8x8xf32>
    %120 = vector.broadcast %115 : vector<8x1xf32> to vector<8x8xf32>
    %121 = arith.mulf %119, %120 : vector<8x8xf32>
    %cst_49 = arith.constant dense<0xFF800000> : vector<8xf32>
    %122 = vector.multi_reduction <maximumf>, %121, %cst_49 [1] : vector<8x8xf32> to vector<8xf32>
    %123 = vector.shape_cast %122 : vector<8xf32> to vector<8x1xf32>
    %124 = vector.broadcast %123 : vector<8x1xf32> to vector<8x8xf32>
    %125 = arith.subf %121, %124 : vector<8x8xf32>
    %126 = math.exp %125 : vector<8x8xf32>
    %127 = arith.truncf %126 : vector<8x8xf32> to vector<8x8xbf16>
    %cst_50 = arith.constant dense<0.000000e+00> : vector<8x32xf32>
    %128 = tpu.matmul %127, %10, %cst_50 {dimension_numbers = #tpu.dot_dimension_numbers<[1], [0], [0], [1], [0, 0, 1, 1], [], []>} : vector<8x8xbf16>, vector<8x32xbf16>, vector<8x32xf32> -> vector<8x32xf32>
    %cst_51 = arith.constant dense<0.000000e+00> : vector<8xf32>
    %129 = vector.multi_reduction <add>, %126, %cst_51 [1] : vector<8x8xf32> to vector<8xf32>
    %130 = vector.shape_cast %129 : vector<8xf32> to vector<8x1xf32>
    %cst_52 = arith.constant 1.000000e+00 : f32
    %131 = vector.broadcast %cst_52 : f32 to vector<8x1xf32>
    %132 = arith.divf %131, %130 : vector<8x1xf32>
    %133 = vector.broadcast %132 : vector<8x1xf32> to vector<8x32xf32>
    %134 = arith.mulf %128, %133 : vector<8x32xf32>
    %135 = vector.broadcast %11 : vector<1x32xf32> to vector<8x32xf32>
    %136 = arith.addf %134, %135 : vector<8x32xf32>
    %137 = vector.broadcast %132 : vector<8x1xf32> to vector<8x8xf32>
    %138 = arith.mulf %126, %137 : vector<8x8xf32>
    %c0_53 = arith.constant 0 : index
    %c8 = arith.constant 8 : index
    %139 = vector.load %arg22[%c0_53, %c8] : memref<8x56xf32, #tpu.memory_space<vmem>>, vector<8x8xf32>
    tpu.vector_store %arg22[%c0_53, %c8], %138 {strides = array<i32>} : memref<8x56xf32, #tpu.memory_space<vmem>>, vector<8x8xf32>,
    %140 = vector.broadcast %115 : vector<8x1xf32> to vector<8x8xf32>
    %141 = arith.mulf %102, %140 : vector<8x8xf32>
    %cst_54 = arith.constant dense<0xFF800000> : vector<8xf32>
    %142 = vector.multi_reduction <maximumf>, %141, %cst_54 [1] : vector<8x8xf32> to vector<8xf32>
    %143 = vector.shape_cast %142 : vector<8xf32> to vector<8x1xf32>
    %144 = vector.broadcast %143 : vector<8x1xf32> to vector<8x8xf32>
    %145 = arith.subf %141, %144 : vector<8x8xf32>
    %146 = math.exp %145 : vector<8x8xf32>
    %cst_55 = arith.constant dense<0.000000e+00> : vector<8xf32>
    %147 = vector.multi_reduction <add>, %146, %cst_55 [1] : vector<8x8xf32> to vector<8xf32>
    %148 = vector.shape_cast %147 : vector<8xf32> to vector<8x1xf32>
    %149 = math.log %148 : vector<8x1xf32>
    %150 = vector.broadcast %149 : vector<8x1xf32> to vector<8x8xf32>
    %151 = arith.subf %145, %150 : vector<8x8xf32>
    %c0_56 = arith.constant 0 : index
    %c8_57 = arith.constant 8 : index
    %152 = vector.load %arg23[%c0_56, %c8_57] : memref<8x56xf32, #tpu.memory_space<vmem>>, vector<8x8xf32>
    tpu.vector_store %arg23[%c0_56, %c8_57], %151 {strides = array<i32>} : memref<8x56xf32, #tpu.memory_space<vmem>>, vector<8x8xf32>,
    %153 = vector.extract_strided_slice %138 {offsets = [0, 0], sizes = [8, 1], strides = [1, 1]} : vector<8x8xf32> to vector<8x1xf32>
    %154 = arith.mulf %153, %91 : vector<8x1xf32>
    %155 = arith.addf %83, %154 : vector<8x1xf32>
    %cst_58 = arith.constant 2.000000e+00 : f32
    %156 = vector.broadcast %cst_58 : f32 to vector<8x1xf32>
    %157 = arith.mulf %156, %154 : vector<8x1xf32>
    %158 = arith.addf %86, %157 : vector<8x1xf32>
    %159 = arith.mulf %117, %154 : vector<8x1xf32>
    %160 = arith.addf %88, %159 : vector<8x1xf32>
    %cst_59 = arith.constant 1.000000e+00 : f32
    %161 = vector.broadcast %cst_59 : f32 to vector<8x1xf32>
    %162 = arith.subf %161, %153 : vector<8x1xf32>
    %163 = arith.mulf %91, %162 : vector<8x1xf32>
    %164 = arith.truncf %97 : vector<8x32xf32> to vector<8x32xbf16>
    %cst_60 = arith.constant dense<0.000000e+00> : vector<8x32xf32>
    %165 = tpu.matmul %164, %12, %cst_60 {dimension_numbers = #tpu.dot_dimension_numbers<[1], [0], [0], [1], [0, 0, 1, 1], [], []>} : vector<8x32xbf16>, vector<32x32xbf16>, vector<8x32xf32> -> vector<8x32xf32>
    %166 = arith.addf %136, %165 : vector<8x32xf32>
    %167 = vector.broadcast %13 : vector<1x32xf32> to vector<8x32xf32>
    %168 = arith.addf %166, %167 : vector<8x32xf32>
    %169 = math.tanh %168 : vector<8x32xf32>
    %170 = arith.truncf %169 : vector<8x32xf32> to vector<8x32xbf16>
    %cst_61 = arith.constant dense<0.000000e+00> : vector<8x9xf32>
    %171 = tpu.matmul %170, %14, %cst_61 {dimension_numbers = #tpu.dot_dimension_numbers<[1], [0], [0], [1], [0, 0, 1, 1], [], []>} : vector<8x32xbf16>, vector<32x9xbf16>, vector<8x9xf32> -> vector<8x9xf32>
    %172 = vector.broadcast %15 : vector<1x9xf32> to vector<8x9xf32>
    %173 = arith.addf %171, %172 : vector<8x9xf32>
    %174 = vector.extract_strided_slice %173 {offsets = [0, 0], sizes = [8, 8], strides = [1, 1]} : vector<8x9xf32> to vector<8x8xf32>
    %175 = vector.extract_strided_slice %173 {offsets = [0, 8], sizes = [8, 1], strides = [1, 1]} : vector<8x9xf32> to vector<8x1xf32>
    %cst_62 = arith.constant 0.000000e+00 : f32
    %176 = vector.broadcast %cst_62 : f32 to vector<8x1xf32>
    %177 = arith.maximumf %175, %176 : vector<8x1xf32>
    %178 = math.absf %175 : vector<8x1xf32>
    %cst_63 = arith.constant 0.000000e+00 : f32
    %179 = vector.broadcast %cst_63 : f32 to vector<8x1xf32>
    %180 = arith.subf %179, %178 : vector<8x1xf32>
    %181 = math.exp %180 : vector<8x1xf32>
    %cst_64 = arith.constant 1.000000e+00 : f32
    %182 = vector.broadcast %cst_64 : f32 to vector<8x1xf32>
    %183 = arith.addf %182, %181 : vector<8x1xf32>
    %184 = math.log %183 : vector<8x1xf32>
    %185 = arith.addf %177, %184 : vector<8x1xf32>
    %cst_65 = arith.constant 1.000000e-01 : f32
    %186 = vector.broadcast %cst_65 : f32 to vector<8x1xf32>
    %187 = arith.addf %185, %186 : vector<8x1xf32>
    %cst_66 = arith.constant 1.000000e+00 : f32
    %188 = vector.broadcast %cst_66 : f32 to vector<8x1xf32>
    %189 = arith.divf %188, %187 : vector<8x1xf32>
    %190 = vector.extract_strided_slice %9 {offsets = [0, 16], sizes = [8, 8], strides = [1, 1]} : vector<8x48xf32> to vector<8x8xf32>
    %191 = arith.addf %174, %190 : vector<8x8xf32>
    %192 = vector.broadcast %187 : vector<8x1xf32> to vector<8x8xf32>
    %193 = arith.mulf %191, %192 : vector<8x8xf32>
    %cst_67 = arith.constant dense<0xFF800000> : vector<8xf32>
    %194 = vector.multi_reduction <maximumf>, %193, %cst_67 [1] : vector<8x8xf32> to vector<8xf32>
    %195 = vector.shape_cast %194 : vector<8xf32> to vector<8x1xf32>
    %196 = vector.broadcast %195 : vector<8x1xf32> to vector<8x8xf32>
    %197 = arith.subf %193, %196 : vector<8x8xf32>
    %198 = math.exp %197 : vector<8x8xf32>
    %199 = arith.truncf %198 : vector<8x8xf32> to vector<8x8xbf16>
    %cst_68 = arith.constant dense<0.000000e+00> : vector<8x32xf32>
    %200 = tpu.matmul %199, %10, %cst_68 {dimension_numbers = #tpu.dot_dimension_numbers<[1], [0], [0], [1], [0, 0, 1, 1], [], []>} : vector<8x8xbf16>, vector<8x32xbf16>, vector<8x32xf32> -> vector<8x32xf32>
    %cst_69 = arith.constant dense<0.000000e+00> : vector<8xf32>
    %201 = vector.multi_reduction <add>, %198, %cst_69 [1] : vector<8x8xf32> to vector<8xf32>
    %202 = vector.shape_cast %201 : vector<8xf32> to vector<8x1xf32>
    %cst_70 = arith.constant 1.000000e+00 : f32
    %203 = vector.broadcast %cst_70 : f32 to vector<8x1xf32>
    %204 = arith.divf %203, %202 : vector<8x1xf32>
    %205 = vector.broadcast %204 : vector<8x1xf32> to vector<8x32xf32>
    %206 = arith.mulf %200, %205 : vector<8x32xf32>
    %207 = vector.broadcast %11 : vector<1x32xf32> to vector<8x32xf32>
    %208 = arith.addf %206, %207 : vector<8x32xf32>
    %209 = vector.broadcast %204 : vector<8x1xf32> to vector<8x8xf32>
    %210 = arith.mulf %198, %209 : vector<8x8xf32>
    %c0_71 = arith.constant 0 : index
    %c16 = arith.constant 16 : index
    %211 = vector.load %arg22[%c0_71, %c16] : memref<8x56xf32, #tpu.memory_space<vmem>>, vector<8x8xf32>
    tpu.vector_store %arg22[%c0_71, %c16], %210 {strides = array<i32>} : memref<8x56xf32, #tpu.memory_space<vmem>>, vector<8x8xf32>,
    %212 = vector.broadcast %187 : vector<8x1xf32> to vector<8x8xf32>
    %213 = arith.mulf %174, %212 : vector<8x8xf32>
    %cst_72 = arith.constant dense<0xFF800000> : vector<8xf32>
    %214 = vector.multi_reduction <maximumf>, %213, %cst_72 [1] : vector<8x8xf32> to vector<8xf32>
    %215 = vector.shape_cast %214 : vector<8xf32> to vector<8x1xf32>
    %216 = vector.broadcast %215 : vector<8x1xf32> to vector<8x8xf32>
    %217 = arith.subf %213, %216 : vector<8x8xf32>
    %218 = math.exp %217 : vector<8x8xf32>
    %cst_73 = arith.constant dense<0.000000e+00> : vector<8xf32>
    %219 = vector.multi_reduction <add>, %218, %cst_73 [1] : vector<8x8xf32> to vector<8xf32>
    %220 = vector.shape_cast %219 : vector<8xf32> to vector<8x1xf32>
    %221 = math.log %220 : vector<8x1xf32>
    %222 = vector.broadcast %221 : vector<8x1xf32> to vector<8x8xf32>
    %223 = arith.subf %217, %222 : vector<8x8xf32>
    %c0_74 = arith.constant 0 : index
    %c16_75 = arith.constant 16 : index
    %224 = vector.load %arg23[%c0_74, %c16_75] : memref<8x56xf32, #tpu.memory_space<vmem>>, vector<8x8xf32>
    tpu.vector_store %arg23[%c0_74, %c16_75], %223 {strides = array<i32>} : memref<8x56xf32, #tpu.memory_space<vmem>>, vector<8x8xf32>,
    %225 = vector.extract_strided_slice %210 {offsets = [0, 0], sizes = [8, 1], strides = [1, 1]} : vector<8x8xf32> to vector<8x1xf32>
    %226 = arith.mulf %225, %163 : vector<8x1xf32>
    %227 = arith.addf %155, %226 : vector<8x1xf32>
    %cst_76 = arith.constant 3.000000e+00 : f32
    %228 = vector.broadcast %cst_76 : f32 to vector<8x1xf32>
    %229 = arith.mulf %228, %226 : vector<8x1xf32>
    %230 = arith.addf %158, %229 : vector<8x1xf32>
    %231 = arith.mulf %189, %226 : vector<8x1xf32>
    %232 = arith.addf %160, %231 : vector<8x1xf32>
    %cst_77 = arith.constant 1.000000e+00 : f32
    %233 = vector.broadcast %cst_77 : f32 to vector<8x1xf32>
    %234 = arith.subf %233, %225 : vector<8x1xf32>
    %235 = arith.mulf %163, %234 : vector<8x1xf32>
    %236 = arith.truncf %169 : vector<8x32xf32> to vector<8x32xbf16>
    %cst_78 = arith.constant dense<0.000000e+00> : vector<8x32xf32>
    %237 = tpu.matmul %236, %12, %cst_78 {dimension_numbers = #tpu.dot_dimension_numbers<[1], [0], [0], [1], [0, 0, 1, 1], [], []>} : vector<8x32xbf16>, vector<32x32xbf16>, vector<8x32xf32> -> vector<8x32xf32>
    %238 = arith.addf %208, %237 : vector<8x32xf32>
    %239 = vector.broadcast %13 : vector<1x32xf32> to vector<8x32xf32>
    %240 = arith.addf %238, %239 : vector<8x32xf32>
    %241 = math.tanh %240 : vector<8x32xf32>
    %242 = arith.truncf %241 : vector<8x32xf32> to vector<8x32xbf16>
    %cst_79 = arith.constant dense<0.000000e+00> : vector<8x9xf32>
    %243 = tpu.matmul %242, %14, %cst_79 {dimension_numbers = #tpu.dot_dimension_numbers<[1], [0], [0], [1], [0, 0, 1, 1], [], []>} : vector<8x32xbf16>, vector<32x9xbf16>, vector<8x9xf32> -> vector<8x9xf32>
    %244 = vector.broadcast %15 : vector<1x9xf32> to vector<8x9xf32>
    %245 = arith.addf %243, %244 : vector<8x9xf32>
    %246 = vector.extract_strided_slice %245 {offsets = [0, 0], sizes = [8, 8], strides = [1, 1]} : vector<8x9xf32> to vector<8x8xf32>
    %247 = vector.extract_strided_slice %245 {offsets = [0, 8], sizes = [8, 1], strides = [1, 1]} : vector<8x9xf32> to vector<8x1xf32>
    %cst_80 = arith.constant 0.000000e+00 : f32
    %248 = vector.broadcast %cst_80 : f32 to vector<8x1xf32>
    %249 = arith.maximumf %247, %248 : vector<8x1xf32>
    %250 = math.absf %247 : vector<8x1xf32>
    %cst_81 = arith.constant 0.000000e+00 : f32
    %251 = vector.broadcast %cst_81 : f32 to vector<8x1xf32>
    %252 = arith.subf %251, %250 : vector<8x1xf32>
    %253 = math.exp %252 : vector<8x1xf32>
    %cst_82 = arith.constant 1.000000e+00 : f32
    %254 = vector.broadcast %cst_82 : f32 to vector<8x1xf32>
    %255 = arith.addf %254, %253 : vector<8x1xf32>
    %256 = math.log %255 : vector<8x1xf32>
    %257 = arith.addf %249, %256 : vector<8x1xf32>
    %cst_83 = arith.constant 1.000000e-01 : f32
    %258 = vector.broadcast %cst_83 : f32 to vector<8x1xf32>
    %259 = arith.addf %257, %258 : vector<8x1xf32>
    %cst_84 = arith.constant 1.000000e+00 : f32
    %260 = vector.broadcast %cst_84 : f32 to vector<8x1xf32>
    %261 = arith.divf %260, %259 : vector<8x1xf32>
    %262 = vector.extract_strided_slice %9 {offsets = [0, 24], sizes = [8, 8], strides = [1, 1]} : vector<8x48xf32> to vector<8x8xf32>
    %263 = arith.addf %246, %262 : vector<8x8xf32>
    %264 = vector.broadcast %259 : vector<8x1xf32> to vector<8x8xf32>
    %265 = arith.mulf %263, %264 : vector<8x8xf32>
    %cst_85 = arith.constant dense<0xFF800000> : vector<8xf32>
    %266 = vector.multi_reduction <maximumf>, %265, %cst_85 [1] : vector<8x8xf32> to vector<8xf32>
    %267 = vector.shape_cast %266 : vector<8xf32> to vector<8x1xf32>
    %268 = vector.broadcast %267 : vector<8x1xf32> to vector<8x8xf32>
    %269 = arith.subf %265, %268 : vector<8x8xf32>
    %270 = math.exp %269 : vector<8x8xf32>
    %271 = arith.truncf %270 : vector<8x8xf32> to vector<8x8xbf16>
    %cst_86 = arith.constant dense<0.000000e+00> : vector<8x32xf32>
    %272 = tpu.matmul %271, %10, %cst_86 {dimension_numbers = #tpu.dot_dimension_numbers<[1], [0], [0], [1], [0, 0, 1, 1], [], []>} : vector<8x8xbf16>, vector<8x32xbf16>, vector<8x32xf32> -> vector<8x32xf32>
    %cst_87 = arith.constant dense<0.000000e+00> : vector<8xf32>
    %273 = vector.multi_reduction <add>, %270, %cst_87 [1] : vector<8x8xf32> to vector<8xf32>
    %274 = vector.shape_cast %273 : vector<8xf32> to vector<8x1xf32>
    %cst_88 = arith.constant 1.000000e+00 : f32
    %275 = vector.broadcast %cst_88 : f32 to vector<8x1xf32>
    %276 = arith.divf %275, %274 : vector<8x1xf32>
    %277 = vector.broadcast %276 : vector<8x1xf32> to vector<8x32xf32>
    %278 = arith.mulf %272, %277 : vector<8x32xf32>
    %279 = vector.broadcast %11 : vector<1x32xf32> to vector<8x32xf32>
    %280 = arith.addf %278, %279 : vector<8x32xf32>
    %281 = vector.broadcast %276 : vector<8x1xf32> to vector<8x8xf32>
    %282 = arith.mulf %270, %281 : vector<8x8xf32>
    %c0_89 = arith.constant 0 : index
    %c24 = arith.constant 24 : index
    %283 = vector.load %arg22[%c0_89, %c24] : memref<8x56xf32, #tpu.memory_space<vmem>>, vector<8x8xf32>
    tpu.vector_store %arg22[%c0_89, %c24], %282 {strides = array<i32>} : memref<8x56xf32, #tpu.memory_space<vmem>>, vector<8x8xf32>,
    %284 = vector.broadcast %259 : vector<8x1xf32> to vector<8x8xf32>
    %285 = arith.mulf %246, %284 : vector<8x8xf32>
    %cst_90 = arith.constant dense<0xFF800000> : vector<8xf32>
    %286 = vector.multi_reduction <maximumf>, %285, %cst_90 [1] : vector<8x8xf32> to vector<8xf32>
    %287 = vector.shape_cast %286 : vector<8xf32> to vector<8x1xf32>
    %288 = vector.broadcast %287 : vector<8x1xf32> to vector<8x8xf32>
    %289 = arith.subf %285, %288 : vector<8x8xf32>
    %290 = math.exp %289 : vector<8x8xf32>
    %cst_91 = arith.constant dense<0.000000e+00> : vector<8xf32>
    %291 = vector.multi_reduction <add>, %290, %cst_91 [1] : vector<8x8xf32> to vector<8xf32>
    %292 = vector.shape_cast %291 : vector<8xf32> to vector<8x1xf32>
    %293 = math.log %292 : vector<8x1xf32>
    %294 = vector.broadcast %293 : vector<8x1xf32> to vector<8x8xf32>
    %295 = arith.subf %289, %294 : vector<8x8xf32>
    %c0_92 = arith.constant 0 : index
    %c24_93 = arith.constant 24 : index
    %296 = vector.load %arg23[%c0_92, %c24_93] : memref<8x56xf32, #tpu.memory_space<vmem>>, vector<8x8xf32>
    tpu.vector_store %arg23[%c0_92, %c24_93], %295 {strides = array<i32>} : memref<8x56xf32, #tpu.memory_space<vmem>>, vector<8x8xf32>,
    %297 = vector.extract_strided_slice %282 {offsets = [0, 0], sizes = [8, 1], strides = [1, 1]} : vector<8x8xf32> to vector<8x1xf32>
    %298 = arith.mulf %297, %235 : vector<8x1xf32>
    %299 = arith.addf %227, %298 : vector<8x1xf32>
    %cst_94 = arith.constant 4.000000e+00 : f32
    %300 = vector.broadcast %cst_94 : f32 to vector<8x1xf32>
    %301 = arith.mulf %300, %298 : vector<8x1xf32>
    %302 = arith.addf %230, %301 : vector<8x1xf32>
    %303 = arith.mulf %261, %298 : vector<8x1xf32>
    %304 = arith.addf %232, %303 : vector<8x1xf32>
    %cst_95 = arith.constant 1.000000e+00 : f32
    %305 = vector.broadcast %cst_95 : f32 to vector<8x1xf32>
    %306 = arith.subf %305, %297 : vector<8x1xf32>
    %307 = arith.mulf %235, %306 : vector<8x1xf32>
    %308 = arith.truncf %241 : vector<8x32xf32> to vector<8x32xbf16>
    %cst_96 = arith.constant dense<0.000000e+00> : vector<8x32xf32>
    %309 = tpu.matmul %308, %12, %cst_96 {dimension_numbers = #tpu.dot_dimension_numbers<[1], [0], [0], [1], [0, 0, 1, 1], [], []>} : vector<8x32xbf16>, vector<32x32xbf16>, vector<8x32xf32> -> vector<8x32xf32>
    %310 = arith.addf %280, %309 : vector<8x32xf32>
    %311 = vector.broadcast %13 : vector<1x32xf32> to vector<8x32xf32>
    %312 = arith.addf %310, %311 : vector<8x32xf32>
    %313 = math.tanh %312 : vector<8x32xf32>
    %314 = arith.truncf %313 : vector<8x32xf32> to vector<8x32xbf16>
    %cst_97 = arith.constant dense<0.000000e+00> : vector<8x9xf32>
    %315 = tpu.matmul %314, %14, %cst_97 {dimension_numbers = #tpu.dot_dimension_numbers<[1], [0], [0], [1], [0, 0, 1, 1], [], []>} : vector<8x32xbf16>, vector<32x9xbf16>, vector<8x9xf32> -> vector<8x9xf32>
    %316 = vector.broadcast %15 : vector<1x9xf32> to vector<8x9xf32>
    %317 = arith.addf %315, %316 : vector<8x9xf32>
    %318 = vector.extract_strided_slice %317 {offsets = [0, 0], sizes = [8, 8], strides = [1, 1]} : vector<8x9xf32> to vector<8x8xf32>
    %319 = vector.extract_strided_slice %317 {offsets = [0, 8], sizes = [8, 1], strides = [1, 1]} : vector<8x9xf32> to vector<8x1xf32>
    %cst_98 = arith.constant 0.000000e+00 : f32
    %320 = vector.broadcast %cst_98 : f32 to vector<8x1xf32>
    %321 = arith.maximumf %319, %320 : vector<8x1xf32>
    %322 = math.absf %319 : vector<8x1xf32>
    %cst_99 = arith.constant 0.000000e+00 : f32
    %323 = vector.broadcast %cst_99 : f32 to vector<8x1xf32>
    %324 = arith.subf %323, %322 : vector<8x1xf32>
    %325 = math.exp %324 : vector<8x1xf32>
    %cst_100 = arith.constant 1.000000e+00 : f32
    %326 = vector.broadcast %cst_100 : f32 to vector<8x1xf32>
    %327 = arith.addf %326, %325 : vector<8x1xf32>
    %328 = math.log %327 : vector<8x1xf32>
    %329 = arith.addf %321, %328 : vector<8x1xf32>
    %cst_101 = arith.constant 1.000000e-01 : f32
    %330 = vector.broadcast %cst_101 : f32 to vector<8x1xf32>
    %331 = arith.addf %329, %330 : vector<8x1xf32>
    %cst_102 = arith.constant 1.000000e+00 : f32
    %332 = vector.broadcast %cst_102 : f32 to vector<8x1xf32>
    %333 = arith.divf %332, %331 : vector<8x1xf32>
    %334 = vector.extract_strided_slice %9 {offsets = [0, 32], sizes = [8, 8], strides = [1, 1]} : vector<8x48xf32> to vector<8x8xf32>
    %335 = arith.addf %318, %334 : vector<8x8xf32>
    %336 = vector.broadcast %331 : vector<8x1xf32> to vector<8x8xf32>
    %337 = arith.mulf %335, %336 : vector<8x8xf32>
    %cst_103 = arith.constant dense<0xFF800000> : vector<8xf32>
    %338 = vector.multi_reduction <maximumf>, %337, %cst_103 [1] : vector<8x8xf32> to vector<8xf32>
    %339 = vector.shape_cast %338 : vector<8xf32> to vector<8x1xf32>
    %340 = vector.broadcast %339 : vector<8x1xf32> to vector<8x8xf32>
    %341 = arith.subf %337, %340 : vector<8x8xf32>
    %342 = math.exp %341 : vector<8x8xf32>
    %343 = arith.truncf %342 : vector<8x8xf32> to vector<8x8xbf16>
    %cst_104 = arith.constant dense<0.000000e+00> : vector<8x32xf32>
    %344 = tpu.matmul %343, %10, %cst_104 {dimension_numbers = #tpu.dot_dimension_numbers<[1], [0], [0], [1], [0, 0, 1, 1], [], []>} : vector<8x8xbf16>, vector<8x32xbf16>, vector<8x32xf32> -> vector<8x32xf32>
    %cst_105 = arith.constant dense<0.000000e+00> : vector<8xf32>
    %345 = vector.multi_reduction <add>, %342, %cst_105 [1] : vector<8x8xf32> to vector<8xf32>
    %346 = vector.shape_cast %345 : vector<8xf32> to vector<8x1xf32>
    %cst_106 = arith.constant 1.000000e+00 : f32
    %347 = vector.broadcast %cst_106 : f32 to vector<8x1xf32>
    %348 = arith.divf %347, %346 : vector<8x1xf32>
    %349 = vector.broadcast %348 : vector<8x1xf32> to vector<8x32xf32>
    %350 = arith.mulf %344, %349 : vector<8x32xf32>
    %351 = vector.broadcast %11 : vector<1x32xf32> to vector<8x32xf32>
    %352 = arith.addf %350, %351 : vector<8x32xf32>
    %353 = vector.broadcast %348 : vector<8x1xf32> to vector<8x8xf32>
    %354 = arith.mulf %342, %353 : vector<8x8xf32>
    %c0_107 = arith.constant 0 : index
    %c32 = arith.constant 32 : index
    %355 = vector.load %arg22[%c0_107, %c32] : memref<8x56xf32, #tpu.memory_space<vmem>>, vector<8x8xf32>
    tpu.vector_store %arg22[%c0_107, %c32], %354 {strides = array<i32>} : memref<8x56xf32, #tpu.memory_space<vmem>>, vector<8x8xf32>,
    %356 = vector.broadcast %331 : vector<8x1xf32> to vector<8x8xf32>
    %357 = arith.mulf %318, %356 : vector<8x8xf32>
    %cst_108 = arith.constant dense<0xFF800000> : vector<8xf32>
    %358 = vector.multi_reduction <maximumf>, %357, %cst_108 [1] : vector<8x8xf32> to vector<8xf32>
    %359 = vector.shape_cast %358 : vector<8xf32> to vector<8x1xf32>
    %360 = vector.broadcast %359 : vector<8x1xf32> to vector<8x8xf32>
    %361 = arith.subf %357, %360 : vector<8x8xf32>
    %362 = math.exp %361 : vector<8x8xf32>
    %cst_109 = arith.constant dense<0.000000e+00> : vector<8xf32>
    %363 = vector.multi_reduction <add>, %362, %cst_109 [1] : vector<8x8xf32> to vector<8xf32>
    %364 = vector.shape_cast %363 : vector<8xf32> to vector<8x1xf32>
    %365 = math.log %364 : vector<8x1xf32>
    %366 = vector.broadcast %365 : vector<8x1xf32> to vector<8x8xf32>
    %367 = arith.subf %361, %366 : vector<8x8xf32>
    %c0_110 = arith.constant 0 : index
    %c32_111 = arith.constant 32 : index
    %368 = vector.load %arg23[%c0_110, %c32_111] : memref<8x56xf32, #tpu.memory_space<vmem>>, vector<8x8xf32>
    tpu.vector_store %arg23[%c0_110, %c32_111], %367 {strides = array<i32>} : memref<8x56xf32, #tpu.memory_space<vmem>>, vector<8x8xf32>,
    %369 = vector.extract_strided_slice %354 {offsets = [0, 0], sizes = [8, 1], strides = [1, 1]} : vector<8x8xf32> to vector<8x1xf32>
    %370 = arith.mulf %369, %307 : vector<8x1xf32>
    %371 = arith.addf %299, %370 : vector<8x1xf32>
    %cst_112 = arith.constant 5.000000e+00 : f32
    %372 = vector.broadcast %cst_112 : f32 to vector<8x1xf32>
    %373 = arith.mulf %372, %370 : vector<8x1xf32>
    %374 = arith.addf %302, %373 : vector<8x1xf32>
    %375 = arith.mulf %333, %370 : vector<8x1xf32>
    %376 = arith.addf %304, %375 : vector<8x1xf32>
    %cst_113 = arith.constant 1.000000e+00 : f32
    %377 = vector.broadcast %cst_113 : f32 to vector<8x1xf32>
    %378 = arith.subf %377, %369 : vector<8x1xf32>
    %379 = arith.mulf %307, %378 : vector<8x1xf32>
    %380 = arith.truncf %313 : vector<8x32xf32> to vector<8x32xbf16>
    %cst_114 = arith.constant dense<0.000000e+00> : vector<8x32xf32>
    %381 = tpu.matmul %380, %12, %cst_114 {dimension_numbers = #tpu.dot_dimension_numbers<[1], [0], [0], [1], [0, 0, 1, 1], [], []>} : vector<8x32xbf16>, vector<32x32xbf16>, vector<8x32xf32> -> vector<8x32xf32>
    %382 = arith.addf %352, %381 : vector<8x32xf32>
    %383 = vector.broadcast %13 : vector<1x32xf32> to vector<8x32xf32>
    %384 = arith.addf %382, %383 : vector<8x32xf32>
    %385 = math.tanh %384 : vector<8x32xf32>
    %386 = arith.truncf %385 : vector<8x32xf32> to vector<8x32xbf16>
    %cst_115 = arith.constant dense<0.000000e+00> : vector<8x9xf32>
    %387 = tpu.matmul %386, %14, %cst_115 {dimension_numbers = #tpu.dot_dimension_numbers<[1], [0], [0], [1], [0, 0, 1, 1], [], []>} : vector<8x32xbf16>, vector<32x9xbf16>, vector<8x9xf32> -> vector<8x9xf32>
    %388 = vector.broadcast %15 : vector<1x9xf32> to vector<8x9xf32>
    %389 = arith.addf %387, %388 : vector<8x9xf32>
    %390 = vector.extract_strided_slice %389 {offsets = [0, 0], sizes = [8, 8], strides = [1, 1]} : vector<8x9xf32> to vector<8x8xf32>
    %391 = vector.extract_strided_slice %389 {offsets = [0, 8], sizes = [8, 1], strides = [1, 1]} : vector<8x9xf32> to vector<8x1xf32>
    %cst_116 = arith.constant 0.000000e+00 : f32
    %392 = vector.broadcast %cst_116 : f32 to vector<8x1xf32>
    %393 = arith.maximumf %391, %392 : vector<8x1xf32>
    %394 = math.absf %391 : vector<8x1xf32>
    %cst_117 = arith.constant 0.000000e+00 : f32
    %395 = vector.broadcast %cst_117 : f32 to vector<8x1xf32>
    %396 = arith.subf %395, %394 : vector<8x1xf32>
    %397 = math.exp %396 : vector<8x1xf32>
    %cst_118 = arith.constant 1.000000e+00 : f32
    %398 = vector.broadcast %cst_118 : f32 to vector<8x1xf32>
    %399 = arith.addf %398, %397 : vector<8x1xf32>
    %400 = math.log %399 : vector<8x1xf32>
    %401 = arith.addf %393, %400 : vector<8x1xf32>
    %cst_119 = arith.constant 1.000000e-01 : f32
    %402 = vector.broadcast %cst_119 : f32 to vector<8x1xf32>
    %403 = arith.addf %401, %402 : vector<8x1xf32>
    %cst_120 = arith.constant 1.000000e+00 : f32
    %404 = vector.broadcast %cst_120 : f32 to vector<8x1xf32>
    %405 = arith.divf %404, %403 : vector<8x1xf32>
    %406 = vector.extract_strided_slice %9 {offsets = [0, 40], sizes = [8, 8], strides = [1, 1]} : vector<8x48xf32> to vector<8x8xf32>
    %407 = arith.addf %390, %406 : vector<8x8xf32>
    %408 = vector.broadcast %403 : vector<8x1xf32> to vector<8x8xf32>
    %409 = arith.mulf %407, %408 : vector<8x8xf32>
    %cst_121 = arith.constant dense<0xFF800000> : vector<8xf32>
    %410 = vector.multi_reduction <maximumf>, %409, %cst_121 [1] : vector<8x8xf32> to vector<8xf32>
    %411 = vector.shape_cast %410 : vector<8xf32> to vector<8x1xf32>
    %412 = vector.broadcast %411 : vector<8x1xf32> to vector<8x8xf32>
    %413 = arith.subf %409, %412 : vector<8x8xf32>
    %414 = math.exp %413 : vector<8x8xf32>
    %cst_122 = arith.constant dense<0.000000e+00> : vector<8xf32>
    %415 = vector.multi_reduction <add>, %414, %cst_122 [1] : vector<8x8xf32> to vector<8xf32>
    %416 = vector.shape_cast %415 : vector<8xf32> to vector<8x1xf32>
    %cst_123 = arith.constant 1.000000e+00 : f32
    %417 = vector.broadcast %cst_123 : f32 to vector<8x1xf32>
    %418 = arith.divf %417, %416 : vector<8x1xf32>
    %419 = vector.broadcast %418 : vector<8x1xf32> to vector<8x8xf32>
    %420 = arith.mulf %414, %419 : vector<8x8xf32>
    %c0_124 = arith.constant 0 : index
    %c40 = arith.constant 40 : index
    %421 = vector.load %arg22[%c0_124, %c40] : memref<8x56xf32, #tpu.memory_space<vmem>>, vector<8x8xf32>
    tpu.vector_store %arg22[%c0_124, %c40], %420 {strides = array<i32>} : memref<8x56xf32, #tpu.memory_space<vmem>>, vector<8x8xf32>,
    %422 = vector.broadcast %403 : vector<8x1xf32> to vector<8x8xf32>
    %423 = arith.mulf %390, %422 : vector<8x8xf32>
    %cst_125 = arith.constant dense<0xFF800000> : vector<8xf32>
    %424 = vector.multi_reduction <maximumf>, %423, %cst_125 [1] : vector<8x8xf32> to vector<8xf32>
    %425 = vector.shape_cast %424 : vector<8xf32> to vector<8x1xf32>
    %426 = vector.broadcast %425 : vector<8x1xf32> to vector<8x8xf32>
    %427 = arith.subf %423, %426 : vector<8x8xf32>
    %428 = math.exp %427 : vector<8x8xf32>
    %cst_126 = arith.constant dense<0.000000e+00> : vector<8xf32>
    %429 = vector.multi_reduction <add>, %428, %cst_126 [1] : vector<8x8xf32> to vector<8xf32>
    %430 = vector.shape_cast %429 : vector<8xf32> to vector<8x1xf32>
    %431 = math.log %430 : vector<8x1xf32>
    %432 = vector.broadcast %431 : vector<8x1xf32> to vector<8x8xf32>
    %433 = arith.subf %427, %432 : vector<8x8xf32>
    %c0_127 = arith.constant 0 : index
    %c40_128 = arith.constant 40 : index
    %434 = vector.load %arg23[%c0_127, %c40_128] : memref<8x56xf32, #tpu.memory_space<vmem>>, vector<8x8xf32>
    tpu.vector_store %arg23[%c0_127, %c40_128], %433 {strides = array<i32>} : memref<8x56xf32, #tpu.memory_space<vmem>>, vector<8x8xf32>,
    %435 = vector.extract_strided_slice %420 {offsets = [0, 0], sizes = [8, 1], strides = [1, 1]} : vector<8x8xf32> to vector<8x1xf32>
    %436 = arith.mulf %435, %379 : vector<8x1xf32>
    %437 = arith.addf %371, %436 : vector<8x1xf32>
    %cst_129 = arith.constant 6.000000e+00 : f32
    %438 = vector.broadcast %cst_129 : f32 to vector<8x1xf32>
    %439 = arith.mulf %438, %436 : vector<8x1xf32>
    %440 = arith.addf %374, %439 : vector<8x1xf32>
    %441 = arith.mulf %405, %436 : vector<8x1xf32>
    %442 = arith.addf %376, %441 : vector<8x1xf32>
    %cst_130 = arith.constant 1.000000e+00 : f32
    %443 = vector.broadcast %cst_130 : f32 to vector<8x1xf32>
    %444 = arith.subf %443, %435 : vector<8x1xf32>
    %445 = arith.mulf %379, %444 : vector<8x1xf32>
    %446 = tpu.iota {dimensions = array<i32: 1>} : vector<8x8xi32>
    %c0_i32 = arith.constant 0 : i32
    %447 = vector.broadcast %c0_i32 : i32 to vector<8x8xi32>
    %448 = arith.cmpi eq, %446, %447 : vector<8x8xi32>
    %449 = arith.extui %448 : vector<8x8xi1> to vector<8x8xi32>
    %450 = arith.sitofp %449 : vector<8x8xi32> to vector<8x8xf32>
    %c0_131 = arith.constant 0 : index
    %c48 = arith.constant 48 : index
    %451 = vector.load %arg22[%c0_131, %c48] : memref<8x56xf32, #tpu.memory_space<vmem>>, vector<8x8xf32>
    tpu.vector_store %arg22[%c0_131, %c48], %450 {strides = array<i32>} : memref<8x56xf32, #tpu.memory_space<vmem>>, vector<8x8xf32>,
    %c0_i32_132 = arith.constant 0 : i32
    %452 = vector.broadcast %c0_i32_132 : i32 to vector<8x8xi32>
    %453 = arith.cmpi eq, %446, %452 : vector<8x8xi32>
    %cst_133 = arith.constant 0.000000e+00 : f32
    %cst_134 = arith.constant 0xFF800000 : f32
    %454 = vector.broadcast %cst_133 : f32 to vector<8x8xf32>
    %455 = vector.broadcast %cst_134 : f32 to vector<8x8xf32>
    %456 = arith.select %453, %454, %455 : vector<8x8xi1>, vector<8x8xf32>
    %c0_135 = arith.constant 0 : index
    %c48_136 = arith.constant 48 : index
    %457 = vector.load %arg23[%c0_135, %c48_136] : memref<8x56xf32, #tpu.memory_space<vmem>>, vector<8x8xf32>
    tpu.vector_store %arg23[%c0_135, %c48_136], %456 {strides = array<i32>} : memref<8x56xf32, #tpu.memory_space<vmem>>, vector<8x8xf32>,
    %458 = arith.addf %437, %445 : vector<8x1xf32>
    %cst_137 = arith.constant 7.000000e+00 : f32
    %459 = vector.broadcast %cst_137 : f32 to vector<8x1xf32>
    %460 = arith.mulf %459, %445 : vector<8x1xf32>
    %461 = arith.addf %440, %460 : vector<8x1xf32>
    %462 = arith.mulf %405, %445 : vector<8x1xf32>
    %463 = arith.addf %442, %462 : vector<8x1xf32>
    %464 = tpu.iota {dimensions = array<i32: 1>} : vector<8x4xi32>
    %c0_138 = arith.constant 0 : index
    %c0_139 = arith.constant 0 : index
    %465 = vector.load %arg4[%c0_138, %c0_139] : memref<8x1xi32, #tpu.memory_space<vmem>>, vector<8x1xi32>
    %466 = vector.broadcast %465 : vector<8x1xi32> to vector<8x4xi32>
    %467 = arith.cmpi eq, %464, %466 : vector<8x4xi32>
    %468 = arith.extui %467 : vector<8x4xi1> to vector<8x4xi32>
    %469 = arith.sitofp %468 : vector<8x4xi32> to vector<8x4xf32>
    %c0_140 = arith.constant 0 : index
    %c0_141 = arith.constant 0 : index
    %470 = vector.load %arg3[%c0_140, %c0_141] : memref<8x64xf32, #tpu.memory_space<vmem>>, vector<8x64xf32>
    %471 = arith.truncf %470 : vector<8x64xf32> to vector<8x64xbf16>
    %c0_142 = arith.constant 0 : index
    %c0_143 = arith.constant 0 : index
    %472 = vector.load %arg14[%c0_142, %c0_143] : memref<64x128xbf16, #tpu.memory_space<vmem>>, vector<64x128xbf16>
    %cst_144 = arith.constant dense<0.000000e+00> : vector<8x128xf32>
    %473 = tpu.matmul %471, %472, %cst_144 {dimension_numbers = #tpu.dot_dimension_numbers<[1], [0], [0], [1], [0, 0, 1, 1], [], []>} : vector<8x64xbf16>, vector<64x128xbf16>, vector<8x128xf32> -> vector<8x128xf32>
    %c0_145 = arith.constant 0 : index
    %c0_146 = arith.constant 0 : index
    %474 = vector.load %arg15[%c0_145, %c0_146] : memref<1x128xf32, #tpu.memory_space<vmem>>, vector<1x128xf32>
    %475 = vector.broadcast %474 : vector<1x128xf32> to vector<8x128xf32>
    %476 = arith.addf %473, %475 : vector<8x128xf32>
    %477 = math.tanh %476 : vector<8x128xf32>
    %c0_147 = arith.constant 0 : index
    %c0_148 = arith.constant 0 : index
    %478 = vector.load %arg16[%c0_147, %c0_148] : memref<8x32xbf16, #tpu.memory_space<vmem>>, vector<8x32xbf16>
    %c0_149 = arith.constant 0 : index
    %c0_150 = arith.constant 0 : index
    %479 = vector.load %arg17[%c0_149, %c0_150] : memref<1x32xf32, #tpu.memory_space<vmem>>, vector<1x32xf32>
    %c0_151 = arith.constant 0 : index
    %c0_152 = arith.constant 0 : index
    %480 = vector.load %arg19[%c0_151, %c0_152] : memref<32x32xbf16, #tpu.memory_space<vmem>>, vector<32x32xbf16>
    %c0_153 = arith.constant 0 : index
    %c0_154 = arith.constant 0 : index
    %481 = vector.load %arg20[%c0_153, %c0_154] : memref<1x32xf32, #tpu.memory_space<vmem>>, vector<1x32xf32>
    %c0_155 = arith.constant 0 : index
    %c0_156 = arith.constant 0 : index
    %482 = vector.load %arg18[%c0_155, %c0_156] : memref<1x32xf32, #tpu.memory_space<vmem>>, vector<1x32xf32>
    %483 = vector.shape_cast %482 : vector<1x32xf32> to vector<1x32xf32>
    %484 = vector.broadcast %483 : vector<1x32xf32> to vector<8x32xf32>
    %c0_157 = arith.constant 0 : index
    %c0_158 = arith.constant 0 : index
    %485 = vector.load %arg21[%c0_157, %c0_158] : memref<128x4xbf16, #tpu.memory_space<vmem>>, vector<128x4xbf16>
    %cst_159 = arith.constant 1.000000e+00 : f32
    %486 = vector.broadcast %cst_159 : f32 to vector<8x1xf32>
    %cst_160 = arith.constant 0.000000e+00 : f32
    %487 = vector.broadcast %cst_160 : f32 to vector<8x32xf32>
    %c0_161 = arith.constant 0 : index
    %c0_162 = arith.constant 0 : index
    %488 = vector.load %arg22[%c0_161, %c0_162] : memref<8x56xf32, #tpu.memory_space<vmem>>, vector<8x8xf32>
    %489 = arith.truncf %488 : vector<8x8xf32> to vector<8x8xbf16>
    %cst_163 = arith.constant dense<0.000000e+00> : vector<8x32xf32>
    %490 = tpu.matmul %489, %478, %cst_163 {dimension_numbers = #tpu.dot_dimension_numbers<[1], [0], [0], [1], [0, 0, 1, 1], [], []>} : vector<8x8xbf16>, vector<8x32xbf16>, vector<8x32xf32> -> vector<8x32xf32>
    %491 = vector.broadcast %479 : vector<1x32xf32> to vector<8x32xf32>
    %492 = arith.addf %490, %491 : vector<8x32xf32>
    %493 = vector.extract_strided_slice %488 {offsets = [0, 0], sizes = [8, 1], strides = [1, 1]} : vector<8x8xf32> to vector<8x1xf32>
    %494 = arith.truncf %487 : vector<8x32xf32> to vector<8x32xbf16>
    %cst_164 = arith.constant dense<0.000000e+00> : vector<8x32xf32>
    %495 = tpu.matmul %494, %480, %cst_164 {dimension_numbers = #tpu.dot_dimension_numbers<[1], [0], [0], [1], [0, 0, 1, 1], [], []>} : vector<8x32xbf16>, vector<32x32xbf16>, vector<8x32xf32> -> vector<8x32xf32>
    %496 = arith.addf %492, %495 : vector<8x32xf32>
    %497 = vector.broadcast %481 : vector<1x32xf32> to vector<8x32xf32>
    %498 = arith.addf %496, %497 : vector<8x32xf32>
    %499 = math.tanh %498 : vector<8x32xf32>
    %500 = tpu.concatenate %499, %499, %499, %499 in 1 : vector<8x32xf32>, vector<8x32xf32>, vector<8x32xf32>, vector<8x32xf32> -> vector<8x128xf32>
    %501 = arith.mulf %477, %500 : vector<8x128xf32>
    %502 = arith.truncf %501 : vector<8x128xf32> to vector<8x128xbf16>
    %cst_165 = arith.constant dense<0.000000e+00> : vector<8x4xf32>
    %503 = tpu.matmul %502, %485, %cst_165 {dimension_numbers = #tpu.dot_dimension_numbers<[1], [0], [0], [1], [0, 0, 1, 1], [], []>} : vector<8x128xbf16>, vector<128x4xbf16>, vector<8x4xf32> -> vector<8x4xf32>
    %cst_166 = arith.constant dense<0xFF800000> : vector<8xf32>
    %504 = vector.multi_reduction <maximumf>, %503, %cst_166 [1] : vector<8x4xf32> to vector<8xf32>
    %505 = vector.shape_cast %504 : vector<8xf32> to vector<8x1xf32>
    %506 = vector.broadcast %505 : vector<8x1xf32> to vector<8x4xf32>
    %507 = arith.subf %503, %506 : vector<8x4xf32>
    %508 = math.exp %507 : vector<8x4xf32>
    %cst_167 = arith.constant dense<0.000000e+00> : vector<8xf32>
    %509 = vector.multi_reduction <add>, %508, %cst_167 [1] : vector<8x4xf32> to vector<8xf32>
    %510 = vector.shape_cast %509 : vector<8xf32> to vector<8x1xf32>
    %511 = math.log %510 : vector<8x1xf32>
    %512 = vector.broadcast %511 : vector<8x1xf32> to vector<8x4xf32>
    %513 = arith.subf %507, %512 : vector<8x4xf32>
    %c0_168 = arith.constant 0 : index
    %c0_169 = arith.constant 0 : index
    %514 = vector.load %arg24[%c0_168, %c0_169] : memref<8x28xf32, #tpu.memory_space<vmem>>, vector<8x4xf32>
    tpu.vector_store %arg24[%c0_168, %c0_169], %513 {strides = array<i32>} : memref<8x28xf32, #tpu.memory_space<vmem>>, vector<8x4xf32>,
    %515 = arith.mulf %513, %469 : vector<8x4xf32>
    %cst_170 = arith.constant dense<0.000000e+00> : vector<8xf32>
    %516 = vector.multi_reduction <add>, %515, %cst_170 [1] : vector<8x4xf32> to vector<8xf32>
    %517 = vector.shape_cast %516 : vector<8xf32> to vector<8x1xf32>
    %cst_171 = arith.constant dense<0xFF800000> : vector<8xf32>
    %518 = vector.multi_reduction <maximumf>, %513, %cst_171 [1] : vector<8x4xf32> to vector<8xf32>
    %519 = vector.shape_cast %518 : vector<8xf32> to vector<8x1xf32>
    %cst_172 = arith.constant 0.000000e+00 : f32
    %520 = vector.broadcast %cst_172 : f32 to vector<8x1xf32>
    %521 = arith.subf %520, %517 : vector<8x1xf32>
    %522 = arith.cmpf oge, %517, %519 : vector<8x1xf32>
    %523 = arith.extui %522 : vector<8x1xi1> to vector<8x1xi32>
    %524 = arith.sitofp %523 : vector<8x1xi32> to vector<8x1xf32>
    %cst_173 = arith.constant 1.000000e+02 : f32
    %525 = vector.broadcast %cst_173 : f32 to vector<8x1xf32>
    %526 = arith.mulf %524, %525 : vector<8x1xf32>
    %527 = arith.mulf %493, %486 : vector<8x1xf32>
    %cst_174 = arith.constant 0.000000e+00 : f32
    %528 = vector.broadcast %cst_174 : f32 to vector<8x1xf32>
    %529 = arith.addf %521, %528 : vector<8x1xf32>
    %530 = arith.mulf %529, %527 : vector<8x1xf32>
    %531 = arith.addf %0, %530 : vector<8x1xf32>
    %532 = arith.mulf %526, %527 : vector<8x1xf32>
    %533 = arith.addf %0, %532 : vector<8x1xf32>
    %cst_175 = arith.constant 1.000000e+00 : f32
    %534 = vector.broadcast %cst_175 : f32 to vector<8x1xf32>
    %535 = arith.subf %534, %493 : vector<8x1xf32>
    %536 = arith.mulf %486, %535 : vector<8x1xf32>
    %c0_176 = arith.constant 0 : index
    %c8_177 = arith.constant 8 : index
    %537 = vector.load %arg22[%c0_176, %c8_177] : memref<8x56xf32, #tpu.memory_space<vmem>>, vector<8x8xf32>
    %538 = arith.truncf %537 : vector<8x8xf32> to vector<8x8xbf16>
    %cst_178 = arith.constant dense<0.000000e+00> : vector<8x32xf32>
    %539 = tpu.matmul %538, %478, %cst_178 {dimension_numbers = #tpu.dot_dimension_numbers<[1], [0], [0], [1], [0, 0, 1, 1], [], []>} : vector<8x8xbf16>, vector<8x32xbf16>, vector<8x32xf32> -> vector<8x32xf32>
    %540 = vector.broadcast %479 : vector<1x32xf32> to vector<8x32xf32>
    %541 = arith.addf %539, %540 : vector<8x32xf32>
    %542 = vector.extract_strided_slice %537 {offsets = [0, 0], sizes = [8, 1], strides = [1, 1]} : vector<8x8xf32> to vector<8x1xf32>
    %543 = arith.truncf %499 : vector<8x32xf32> to vector<8x32xbf16>
    %cst_179 = arith.constant dense<0.000000e+00> : vector<8x32xf32>
    %544 = tpu.matmul %543, %480, %cst_179 {dimension_numbers = #tpu.dot_dimension_numbers<[1], [0], [0], [1], [0, 0, 1, 1], [], []>} : vector<8x32xbf16>, vector<32x32xbf16>, vector<8x32xf32> -> vector<8x32xf32>
    %545 = arith.addf %541, %544 : vector<8x32xf32>
    %546 = vector.broadcast %481 : vector<1x32xf32> to vector<8x32xf32>
    %547 = arith.addf %545, %546 : vector<8x32xf32>
    %548 = math.tanh %547 : vector<8x32xf32>
    %549 = tpu.concatenate %548, %548, %548, %548 in 1 : vector<8x32xf32>, vector<8x32xf32>, vector<8x32xf32>, vector<8x32xf32> -> vector<8x128xf32>
    %550 = arith.mulf %477, %549 : vector<8x128xf32>
    %551 = arith.truncf %550 : vector<8x128xf32> to vector<8x128xbf16>
    %cst_180 = arith.constant dense<0.000000e+00> : vector<8x4xf32>
    %552 = tpu.matmul %551, %485, %cst_180 {dimension_numbers = #tpu.dot_dimension_numbers<[1], [0], [0], [1], [0, 0, 1, 1], [], []>} : vector<8x128xbf16>, vector<128x4xbf16>, vector<8x4xf32> -> vector<8x4xf32>
    %cst_181 = arith.constant dense<0xFF800000> : vector<8xf32>
    %553 = vector.multi_reduction <maximumf>, %552, %cst_181 [1] : vector<8x4xf32> to vector<8xf32>
    %554 = vector.shape_cast %553 : vector<8xf32> to vector<8x1xf32>
    %555 = vector.broadcast %554 : vector<8x1xf32> to vector<8x4xf32>
    %556 = arith.subf %552, %555 : vector<8x4xf32>
    %557 = math.exp %556 : vector<8x4xf32>
    %cst_182 = arith.constant dense<0.000000e+00> : vector<8xf32>
    %558 = vector.multi_reduction <add>, %557, %cst_182 [1] : vector<8x4xf32> to vector<8xf32>
    %559 = vector.shape_cast %558 : vector<8xf32> to vector<8x1xf32>
    %560 = math.log %559 : vector<8x1xf32>
    %561 = vector.broadcast %560 : vector<8x1xf32> to vector<8x4xf32>
    %562 = arith.subf %556, %561 : vector<8x4xf32>
    %c0_183 = arith.constant 0 : index
    %c4 = arith.constant 4 : index
    %563 = vector.load %arg24[%c0_183, %c4] : memref<8x28xf32, #tpu.memory_space<vmem>>, vector<8x4xf32>
    tpu.vector_store %arg24[%c0_183, %c4], %562 {strides = array<i32>} : memref<8x28xf32, #tpu.memory_space<vmem>>, vector<8x4xf32>,
    %564 = arith.mulf %562, %469 : vector<8x4xf32>
    %cst_184 = arith.constant dense<0.000000e+00> : vector<8xf32>
    %565 = vector.multi_reduction <add>, %564, %cst_184 [1] : vector<8x4xf32> to vector<8xf32>
    %566 = vector.shape_cast %565 : vector<8xf32> to vector<8x1xf32>
    %cst_185 = arith.constant dense<0xFF800000> : vector<8xf32>
    %567 = vector.multi_reduction <maximumf>, %562, %cst_185 [1] : vector<8x4xf32> to vector<8xf32>
    %568 = vector.shape_cast %567 : vector<8xf32> to vector<8x1xf32>
    %cst_186 = arith.constant 0.000000e+00 : f32
    %569 = vector.broadcast %cst_186 : f32 to vector<8x1xf32>
    %570 = arith.subf %569, %566 : vector<8x1xf32>
    %571 = arith.cmpf oge, %566, %568 : vector<8x1xf32>
    %572 = arith.extui %571 : vector<8x1xi1> to vector<8x1xi32>
    %573 = arith.sitofp %572 : vector<8x1xi32> to vector<8x1xf32>
    %cst_187 = arith.constant 1.000000e+02 : f32
    %574 = vector.broadcast %cst_187 : f32 to vector<8x1xf32>
    %575 = arith.mulf %573, %574 : vector<8x1xf32>
    %576 = arith.mulf %542, %536 : vector<8x1xf32>
    %cst_188 = arith.constant 0.00999999977 : f32
    %577 = vector.broadcast %cst_188 : f32 to vector<8x1xf32>
    %578 = arith.addf %570, %577 : vector<8x1xf32>
    %579 = arith.mulf %578, %576 : vector<8x1xf32>
    %580 = arith.addf %531, %579 : vector<8x1xf32>
    %581 = arith.mulf %575, %576 : vector<8x1xf32>
    %582 = arith.addf %533, %581 : vector<8x1xf32>
    %cst_189 = arith.constant 1.000000e+00 : f32
    %583 = vector.broadcast %cst_189 : f32 to vector<8x1xf32>
    %584 = arith.subf %583, %542 : vector<8x1xf32>
    %585 = arith.mulf %536, %584 : vector<8x1xf32>
    %c0_190 = arith.constant 0 : index
    %c16_191 = arith.constant 16 : index
    %586 = vector.load %arg22[%c0_190, %c16_191] : memref<8x56xf32, #tpu.memory_space<vmem>>, vector<8x8xf32>
    %587 = arith.truncf %586 : vector<8x8xf32> to vector<8x8xbf16>
    %cst_192 = arith.constant dense<0.000000e+00> : vector<8x32xf32>
    %588 = tpu.matmul %587, %478, %cst_192 {dimension_numbers = #tpu.dot_dimension_numbers<[1], [0], [0], [1], [0, 0, 1, 1], [], []>} : vector<8x8xbf16>, vector<8x32xbf16>, vector<8x32xf32> -> vector<8x32xf32>
    %589 = vector.broadcast %479 : vector<1x32xf32> to vector<8x32xf32>
    %590 = arith.addf %588, %589 : vector<8x32xf32>
    %591 = vector.extract_strided_slice %586 {offsets = [0, 0], sizes = [8, 1], strides = [1, 1]} : vector<8x8xf32> to vector<8x1xf32>
    %592 = arith.truncf %548 : vector<8x32xf32> to vector<8x32xbf16>
    %cst_193 = arith.constant dense<0.000000e+00> : vector<8x32xf32>
    %593 = tpu.matmul %592, %480, %cst_193 {dimension_numbers = #tpu.dot_dimension_numbers<[1], [0], [0], [1], [0, 0, 1, 1], [], []>} : vector<8x32xbf16>, vector<32x32xbf16>, vector<8x32xf32> -> vector<8x32xf32>
    %594 = arith.addf %590, %593 : vector<8x32xf32>
    %595 = vector.broadcast %481 : vector<1x32xf32> to vector<8x32xf32>
    %596 = arith.addf %594, %595 : vector<8x32xf32>
    %597 = math.tanh %596 : vector<8x32xf32>
    %598 = tpu.concatenate %597, %597, %597, %597 in 1 : vector<8x32xf32>, vector<8x32xf32>, vector<8x32xf32>, vector<8x32xf32> -> vector<8x128xf32>
    %599 = arith.mulf %477, %598 : vector<8x128xf32>
    %600 = arith.truncf %599 : vector<8x128xf32> to vector<8x128xbf16>
    %cst_194 = arith.constant dense<0.000000e+00> : vector<8x4xf32>
    %601 = tpu.matmul %600, %485, %cst_194 {dimension_numbers = #tpu.dot_dimension_numbers<[1], [0], [0], [1], [0, 0, 1, 1], [], []>} : vector<8x128xbf16>, vector<128x4xbf16>, vector<8x4xf32> -> vector<8x4xf32>
    %cst_195 = arith.constant dense<0xFF800000> : vector<8xf32>
    %602 = vector.multi_reduction <maximumf>, %601, %cst_195 [1] : vector<8x4xf32> to vector<8xf32>
    %603 = vector.shape_cast %602 : vector<8xf32> to vector<8x1xf32>
    %604 = vector.broadcast %603 : vector<8x1xf32> to vector<8x4xf32>
    %605 = arith.subf %601, %604 : vector<8x4xf32>
    %606 = math.exp %605 : vector<8x4xf32>
    %cst_196 = arith.constant dense<0.000000e+00> : vector<8xf32>
    %607 = vector.multi_reduction <add>, %606, %cst_196 [1] : vector<8x4xf32> to vector<8xf32>
    %608 = vector.shape_cast %607 : vector<8xf32> to vector<8x1xf32>
    %609 = math.log %608 : vector<8x1xf32>
    %610 = vector.broadcast %609 : vector<8x1xf32> to vector<8x4xf32>
    %611 = arith.subf %605, %610 : vector<8x4xf32>
    %c0_197 = arith.constant 0 : index
    %c8_198 = arith.constant 8 : index
    %612 = vector.load %arg24[%c0_197, %c8_198] : memref<8x28xf32, #tpu.memory_space<vmem>>, vector<8x4xf32>
    tpu.vector_store %arg24[%c0_197, %c8_198], %611 {strides = array<i32>} : memref<8x28xf32, #tpu.memory_space<vmem>>, vector<8x4xf32>,
    %613 = arith.mulf %611, %469 : vector<8x4xf32>
    %cst_199 = arith.constant dense<0.000000e+00> : vector<8xf32>
    %614 = vector.multi_reduction <add>, %613, %cst_199 [1] : vector<8x4xf32> to vector<8xf32>
    %615 = vector.shape_cast %614 : vector<8xf32> to vector<8x1xf32>
    %cst_200 = arith.constant dense<0xFF800000> : vector<8xf32>
    %616 = vector.multi_reduction <maximumf>, %611, %cst_200 [1] : vector<8x4xf32> to vector<8xf32>
    %617 = vector.shape_cast %616 : vector<8xf32> to vector<8x1xf32>
    %cst_201 = arith.constant 0.000000e+00 : f32
    %618 = vector.broadcast %cst_201 : f32 to vector<8x1xf32>
    %619 = arith.subf %618, %615 : vector<8x1xf32>
    %620 = arith.cmpf oge, %615, %617 : vector<8x1xf32>
    %621 = arith.extui %620 : vector<8x1xi1> to vector<8x1xi32>
    %622 = arith.sitofp %621 : vector<8x1xi32> to vector<8x1xf32>
    %cst_202 = arith.constant 1.000000e+02 : f32
    %623 = vector.broadcast %cst_202 : f32 to vector<8x1xf32>
    %624 = arith.mulf %622, %623 : vector<8x1xf32>
    %625 = arith.mulf %591, %585 : vector<8x1xf32>
    %cst_203 = arith.constant 2.000000e-02 : f32
    %626 = vector.broadcast %cst_203 : f32 to vector<8x1xf32>
    %627 = arith.addf %619, %626 : vector<8x1xf32>
    %628 = arith.mulf %627, %625 : vector<8x1xf32>
    %629 = arith.addf %580, %628 : vector<8x1xf32>
    %630 = arith.mulf %624, %625 : vector<8x1xf32>
    %631 = arith.addf %582, %630 : vector<8x1xf32>
    %cst_204 = arith.constant 1.000000e+00 : f32
    %632 = vector.broadcast %cst_204 : f32 to vector<8x1xf32>
    %633 = arith.subf %632, %591 : vector<8x1xf32>
    %634 = arith.mulf %585, %633 : vector<8x1xf32>
    %c0_205 = arith.constant 0 : index
    %c24_206 = arith.constant 24 : index
    %635 = vector.load %arg22[%c0_205, %c24_206] : memref<8x56xf32, #tpu.memory_space<vmem>>, vector<8x8xf32>
    %636 = arith.truncf %635 : vector<8x8xf32> to vector<8x8xbf16>
    %cst_207 = arith.constant dense<0.000000e+00> : vector<8x32xf32>
    %637 = tpu.matmul %636, %478, %cst_207 {dimension_numbers = #tpu.dot_dimension_numbers<[1], [0], [0], [1], [0, 0, 1, 1], [], []>} : vector<8x8xbf16>, vector<8x32xbf16>, vector<8x32xf32> -> vector<8x32xf32>
    %638 = vector.broadcast %479 : vector<1x32xf32> to vector<8x32xf32>
    %639 = arith.addf %637, %638 : vector<8x32xf32>
    %640 = vector.extract_strided_slice %635 {offsets = [0, 0], sizes = [8, 1], strides = [1, 1]} : vector<8x8xf32> to vector<8x1xf32>
    %641 = arith.truncf %597 : vector<8x32xf32> to vector<8x32xbf16>
    %cst_208 = arith.constant dense<0.000000e+00> : vector<8x32xf32>
    %642 = tpu.matmul %641, %480, %cst_208 {dimension_numbers = #tpu.dot_dimension_numbers<[1], [0], [0], [1], [0, 0, 1, 1], [], []>} : vector<8x32xbf16>, vector<32x32xbf16>, vector<8x32xf32> -> vector<8x32xf32>
    %643 = arith.addf %639, %642 : vector<8x32xf32>
    %644 = vector.broadcast %481 : vector<1x32xf32> to vector<8x32xf32>
    %645 = arith.addf %643, %644 : vector<8x32xf32>
    %646 = math.tanh %645 : vector<8x32xf32>
    %647 = tpu.concatenate %646, %646, %646, %646 in 1 : vector<8x32xf32>, vector<8x32xf32>, vector<8x32xf32>, vector<8x32xf32> -> vector<8x128xf32>
    %648 = arith.mulf %477, %647 : vector<8x128xf32>
    %649 = arith.truncf %648 : vector<8x128xf32> to vector<8x128xbf16>
    %cst_209 = arith.constant dense<0.000000e+00> : vector<8x4xf32>
    %650 = tpu.matmul %649, %485, %cst_209 {dimension_numbers = #tpu.dot_dimension_numbers<[1], [0], [0], [1], [0, 0, 1, 1], [], []>} : vector<8x128xbf16>, vector<128x4xbf16>, vector<8x4xf32> -> vector<8x4xf32>
    %cst_210 = arith.constant dense<0xFF800000> : vector<8xf32>
    %651 = vector.multi_reduction <maximumf>, %650, %cst_210 [1] : vector<8x4xf32> to vector<8xf32>
    %652 = vector.shape_cast %651 : vector<8xf32> to vector<8x1xf32>
    %653 = vector.broadcast %652 : vector<8x1xf32> to vector<8x4xf32>
    %654 = arith.subf %650, %653 : vector<8x4xf32>
    %655 = math.exp %654 : vector<8x4xf32>
    %cst_211 = arith.constant dense<0.000000e+00> : vector<8xf32>
    %656 = vector.multi_reduction <add>, %655, %cst_211 [1] : vector<8x4xf32> to vector<8xf32>
    %657 = vector.shape_cast %656 : vector<8xf32> to vector<8x1xf32>
    %658 = math.log %657 : vector<8x1xf32>
    %659 = vector.broadcast %658 : vector<8x1xf32> to vector<8x4xf32>
    %660 = arith.subf %654, %659 : vector<8x4xf32>
    %c0_212 = arith.constant 0 : index
    %c12 = arith.constant 12 : index
    %661 = vector.load %arg24[%c0_212, %c12] : memref<8x28xf32, #tpu.memory_space<vmem>>, vector<8x4xf32>
    tpu.vector_store %arg24[%c0_212, %c12], %660 {strides = array<i32>} : memref<8x28xf32, #tpu.memory_space<vmem>>, vector<8x4xf32>,
    %662 = arith.mulf %660, %469 : vector<8x4xf32>
    %cst_213 = arith.constant dense<0.000000e+00> : vector<8xf32>
    %663 = vector.multi_reduction <add>, %662, %cst_213 [1] : vector<8x4xf32> to vector<8xf32>
    %664 = vector.shape_cast %663 : vector<8xf32> to vector<8x1xf32>
    %cst_214 = arith.constant dense<0xFF800000> : vector<8xf32>
    %665 = vector.multi_reduction <maximumf>, %660, %cst_214 [1] : vector<8x4xf32> to vector<8xf32>
    %666 = vector.shape_cast %665 : vector<8xf32> to vector<8x1xf32>
    %cst_215 = arith.constant 0.000000e+00 : f32
    %667 = vector.broadcast %cst_215 : f32 to vector<8x1xf32>
    %668 = arith.subf %667, %664 : vector<8x1xf32>
    %669 = arith.cmpf oge, %664, %666 : vector<8x1xf32>
    %670 = arith.extui %669 : vector<8x1xi1> to vector<8x1xi32>
    %671 = arith.sitofp %670 : vector<8x1xi32> to vector<8x1xf32>
    %cst_216 = arith.constant 1.000000e+02 : f32
    %672 = vector.broadcast %cst_216 : f32 to vector<8x1xf32>
    %673 = arith.mulf %671, %672 : vector<8x1xf32>
    %674 = arith.mulf %640, %634 : vector<8x1xf32>
    %cst_217 = arith.constant 3.000000e-02 : f32
    %675 = vector.broadcast %cst_217 : f32 to vector<8x1xf32>
    %676 = arith.addf %668, %675 : vector<8x1xf32>
    %677 = arith.mulf %676, %674 : vector<8x1xf32>
    %678 = arith.addf %629, %677 : vector<8x1xf32>
    %679 = arith.mulf %673, %674 : vector<8x1xf32>
    %680 = arith.addf %631, %679 : vector<8x1xf32>
    %cst_218 = arith.constant 1.000000e+00 : f32
    %681 = vector.broadcast %cst_218 : f32 to vector<8x1xf32>
    %682 = arith.subf %681, %640 : vector<8x1xf32>
    %683 = arith.mulf %634, %682 : vector<8x1xf32>
    %c0_219 = arith.constant 0 : index
    %c32_220 = arith.constant 32 : index
    %684 = vector.load %arg22[%c0_219, %c32_220] : memref<8x56xf32, #tpu.memory_space<vmem>>, vector<8x8xf32>
    %685 = arith.truncf %684 : vector<8x8xf32> to vector<8x8xbf16>
    %cst_221 = arith.constant dense<0.000000e+00> : vector<8x32xf32>
    %686 = tpu.matmul %685, %478, %cst_221 {dimension_numbers = #tpu.dot_dimension_numbers<[1], [0], [0], [1], [0, 0, 1, 1], [], []>} : vector<8x8xbf16>, vector<8x32xbf16>, vector<8x32xf32> -> vector<8x32xf32>
    %687 = vector.broadcast %479 : vector<1x32xf32> to vector<8x32xf32>
    %688 = arith.addf %686, %687 : vector<8x32xf32>
    %689 = vector.extract_strided_slice %684 {offsets = [0, 0], sizes = [8, 1], strides = [1, 1]} : vector<8x8xf32> to vector<8x1xf32>
    %690 = arith.truncf %646 : vector<8x32xf32> to vector<8x32xbf16>
    %cst_222 = arith.constant dense<0.000000e+00> : vector<8x32xf32>
    %691 = tpu.matmul %690, %480, %cst_222 {dimension_numbers = #tpu.dot_dimension_numbers<[1], [0], [0], [1], [0, 0, 1, 1], [], []>} : vector<8x32xbf16>, vector<32x32xbf16>, vector<8x32xf32> -> vector<8x32xf32>
    %692 = arith.addf %688, %691 : vector<8x32xf32>
    %693 = vector.broadcast %481 : vector<1x32xf32> to vector<8x32xf32>
    %694 = arith.addf %692, %693 : vector<8x32xf32>
    %695 = math.tanh %694 : vector<8x32xf32>
    %696 = tpu.concatenate %695, %695, %695, %695 in 1 : vector<8x32xf32>, vector<8x32xf32>, vector<8x32xf32>, vector<8x32xf32> -> vector<8x128xf32>
    %697 = arith.mulf %477, %696 : vector<8x128xf32>
    %698 = arith.truncf %697 : vector<8x128xf32> to vector<8x128xbf16>
    %cst_223 = arith.constant dense<0.000000e+00> : vector<8x4xf32>
    %699 = tpu.matmul %698, %485, %cst_223 {dimension_numbers = #tpu.dot_dimension_numbers<[1], [0], [0], [1], [0, 0, 1, 1], [], []>} : vector<8x128xbf16>, vector<128x4xbf16>, vector<8x4xf32> -> vector<8x4xf32>
    %cst_224 = arith.constant dense<0xFF800000> : vector<8xf32>
    %700 = vector.multi_reduction <maximumf>, %699, %cst_224 [1] : vector<8x4xf32> to vector<8xf32>
    %701 = vector.shape_cast %700 : vector<8xf32> to vector<8x1xf32>
    %702 = vector.broadcast %701 : vector<8x1xf32> to vector<8x4xf32>
    %703 = arith.subf %699, %702 : vector<8x4xf32>
    %704 = math.exp %703 : vector<8x4xf32>
    %cst_225 = arith.constant dense<0.000000e+00> : vector<8xf32>
    %705 = vector.multi_reduction <add>, %704, %cst_225 [1] : vector<8x4xf32> to vector<8xf32>
    %706 = vector.shape_cast %705 : vector<8xf32> to vector<8x1xf32>
    %707 = math.log %706 : vector<8x1xf32>
    %708 = vector.broadcast %707 : vector<8x1xf32> to vector<8x4xf32>
    %709 = arith.subf %703, %708 : vector<8x4xf32>
    %c0_226 = arith.constant 0 : index
    %c16_227 = arith.constant 16 : index
    %710 = vector.load %arg24[%c0_226, %c16_227] : memref<8x28xf32, #tpu.memory_space<vmem>>, vector<8x4xf32>
    tpu.vector_store %arg24[%c0_226, %c16_227], %709 {strides = array<i32>} : memref<8x28xf32, #tpu.memory_space<vmem>>, vector<8x4xf32>,
    %711 = arith.mulf %709, %469 : vector<8x4xf32>
    %cst_228 = arith.constant dense<0.000000e+00> : vector<8xf32>
    %712 = vector.multi_reduction <add>, %711, %cst_228 [1] : vector<8x4xf32> to vector<8xf32>
    %713 = vector.shape_cast %712 : vector<8xf32> to vector<8x1xf32>
    %cst_229 = arith.constant dense<0xFF800000> : vector<8xf32>
    %714 = vector.multi_reduction <maximumf>, %709, %cst_229 [1] : vector<8x4xf32> to vector<8xf32>
    %715 = vector.shape_cast %714 : vector<8xf32> to vector<8x1xf32>
    %cst_230 = arith.constant 0.000000e+00 : f32
    %716 = vector.broadcast %cst_230 : f32 to vector<8x1xf32>
    %717 = arith.subf %716, %713 : vector<8x1xf32>
    %718 = arith.cmpf oge, %713, %715 : vector<8x1xf32>
    %719 = arith.extui %718 : vector<8x1xi1> to vector<8x1xi32>
    %720 = arith.sitofp %719 : vector<8x1xi32> to vector<8x1xf32>
    %cst_231 = arith.constant 1.000000e+02 : f32
    %721 = vector.broadcast %cst_231 : f32 to vector<8x1xf32>
    %722 = arith.mulf %720, %721 : vector<8x1xf32>
    %723 = arith.mulf %689, %683 : vector<8x1xf32>
    %cst_232 = arith.constant 4.000000e-02 : f32
    %724 = vector.broadcast %cst_232 : f32 to vector<8x1xf32>
    %725 = arith.addf %717, %724 : vector<8x1xf32>
    %726 = arith.mulf %725, %723 : vector<8x1xf32>
    %727 = arith.addf %678, %726 : vector<8x1xf32>
    %728 = arith.mulf %722, %723 : vector<8x1xf32>
    %729 = arith.addf %680, %728 : vector<8x1xf32>
    %cst_233 = arith.constant 1.000000e+00 : f32
    %730 = vector.broadcast %cst_233 : f32 to vector<8x1xf32>
    %731 = arith.subf %730, %689 : vector<8x1xf32>
    %732 = arith.mulf %683, %731 : vector<8x1xf32>
    %c0_234 = arith.constant 0 : index
    %c40_235 = arith.constant 40 : index
    %733 = vector.load %arg22[%c0_234, %c40_235] : memref<8x56xf32, #tpu.memory_space<vmem>>, vector<8x8xf32>
    %734 = arith.truncf %733 : vector<8x8xf32> to vector<8x8xbf16>
    %cst_236 = arith.constant dense<0.000000e+00> : vector<8x32xf32>
    %735 = tpu.matmul %734, %478, %cst_236 {dimension_numbers = #tpu.dot_dimension_numbers<[1], [0], [0], [1], [0, 0, 1, 1], [], []>} : vector<8x8xbf16>, vector<8x32xbf16>, vector<8x32xf32> -> vector<8x32xf32>
    %736 = vector.broadcast %479 : vector<1x32xf32> to vector<8x32xf32>
    %737 = arith.addf %735, %736 : vector<8x32xf32>
    %738 = vector.extract_strided_slice %733 {offsets = [0, 0], sizes = [8, 1], strides = [1, 1]} : vector<8x8xf32> to vector<8x1xf32>
    %739 = arith.truncf %695 : vector<8x32xf32> to vector<8x32xbf16>
    %cst_237 = arith.constant dense<0.000000e+00> : vector<8x32xf32>
    %740 = tpu.matmul %739, %480, %cst_237 {dimension_numbers = #tpu.dot_dimension_numbers<[1], [0], [0], [1], [0, 0, 1, 1], [], []>} : vector<8x32xbf16>, vector<32x32xbf16>, vector<8x32xf32> -> vector<8x32xf32>
    %741 = arith.addf %737, %740 : vector<8x32xf32>
    %742 = vector.broadcast %481 : vector<1x32xf32> to vector<8x32xf32>
    %743 = arith.addf %741, %742 : vector<8x32xf32>
    %744 = math.tanh %743 : vector<8x32xf32>
    %745 = tpu.concatenate %744, %744, %744, %744 in 1 : vector<8x32xf32>, vector<8x32xf32>, vector<8x32xf32>, vector<8x32xf32> -> vector<8x128xf32>
    %746 = arith.mulf %477, %745 : vector<8x128xf32>
    %747 = arith.truncf %746 : vector<8x128xf32> to vector<8x128xbf16>
    %cst_238 = arith.constant dense<0.000000e+00> : vector<8x4xf32>
    %748 = tpu.matmul %747, %485, %cst_238 {dimension_numbers = #tpu.dot_dimension_numbers<[1], [0], [0], [1], [0, 0, 1, 1], [], []>} : vector<8x128xbf16>, vector<128x4xbf16>, vector<8x4xf32> -> vector<8x4xf32>
    %cst_239 = arith.constant dense<0xFF800000> : vector<8xf32>
    %749 = vector.multi_reduction <maximumf>, %748, %cst_239 [1] : vector<8x4xf32> to vector<8xf32>
    %750 = vector.shape_cast %749 : vector<8xf32> to vector<8x1xf32>
    %751 = vector.broadcast %750 : vector<8x1xf32> to vector<8x4xf32>
    %752 = arith.subf %748, %751 : vector<8x4xf32>
    %753 = math.exp %752 : vector<8x4xf32>
    %cst_240 = arith.constant dense<0.000000e+00> : vector<8xf32>
    %754 = vector.multi_reduction <add>, %753, %cst_240 [1] : vector<8x4xf32> to vector<8xf32>
    %755 = vector.shape_cast %754 : vector<8xf32> to vector<8x1xf32>
    %756 = math.log %755 : vector<8x1xf32>
    %757 = vector.broadcast %756 : vector<8x1xf32> to vector<8x4xf32>
    %758 = arith.subf %752, %757 : vector<8x4xf32>
    %c0_241 = arith.constant 0 : index
    %c20 = arith.constant 20 : index
    %759 = vector.load %arg24[%c0_241, %c20] : memref<8x28xf32, #tpu.memory_space<vmem>>, vector<8x4xf32>
    tpu.vector_store %arg24[%c0_241, %c20], %758 {strides = array<i32>} : memref<8x28xf32, #tpu.memory_space<vmem>>, vector<8x4xf32>,
    %760 = arith.mulf %758, %469 : vector<8x4xf32>
    %cst_242 = arith.constant dense<0.000000e+00> : vector<8xf32>
    %761 = vector.multi_reduction <add>, %760, %cst_242 [1] : vector<8x4xf32> to vector<8xf32>
    %762 = vector.shape_cast %761 : vector<8xf32> to vector<8x1xf32>
    %cst_243 = arith.constant dense<0xFF800000> : vector<8xf32>
    %763 = vector.multi_reduction <maximumf>, %758, %cst_243 [1] : vector<8x4xf32> to vector<8xf32>
    %764 = vector.shape_cast %763 : vector<8xf32> to vector<8x1xf32>
    %cst_244 = arith.constant 0.000000e+00 : f32
    %765 = vector.broadcast %cst_244 : f32 to vector<8x1xf32>
    %766 = arith.subf %765, %762 : vector<8x1xf32>
    %767 = arith.cmpf oge, %762, %764 : vector<8x1xf32>
    %768 = arith.extui %767 : vector<8x1xi1> to vector<8x1xi32>
    %769 = arith.sitofp %768 : vector<8x1xi32> to vector<8x1xf32>
    %cst_245 = arith.constant 1.000000e+02 : f32
    %770 = vector.broadcast %cst_245 : f32 to vector<8x1xf32>
    %771 = arith.mulf %769, %770 : vector<8x1xf32>
    %772 = arith.mulf %738, %732 : vector<8x1xf32>
    %cst_246 = arith.constant 5.000000e-02 : f32
    %773 = vector.broadcast %cst_246 : f32 to vector<8x1xf32>
    %774 = arith.addf %766, %773 : vector<8x1xf32>
    %775 = arith.mulf %774, %772 : vector<8x1xf32>
    %776 = arith.addf %727, %775 : vector<8x1xf32>
    %777 = arith.mulf %771, %772 : vector<8x1xf32>
    %778 = arith.addf %729, %777 : vector<8x1xf32>
    %cst_247 = arith.constant 1.000000e+00 : f32
    %779 = vector.broadcast %cst_247 : f32 to vector<8x1xf32>
    %780 = arith.subf %779, %738 : vector<8x1xf32>
    %781 = arith.mulf %732, %780 : vector<8x1xf32>
    %cst_248 = arith.constant 1.000000e+00 : f32
    %782 = vector.broadcast %cst_248 : f32 to vector<8x1xf32>
    %783 = arith.truncf %744 : vector<8x32xf32> to vector<8x32xbf16>
    %cst_249 = arith.constant dense<0.000000e+00> : vector<8x32xf32>
    %784 = tpu.matmul %783, %480, %cst_249 {dimension_numbers = #tpu.dot_dimension_numbers<[1], [0], [0], [1], [0, 0, 1, 1], [], []>} : vector<8x32xbf16>, vector<32x32xbf16>, vector<8x32xf32> -> vector<8x32xf32>
    %785 = arith.addf %484, %784 : vector<8x32xf32>
    %786 = vector.broadcast %481 : vector<1x32xf32> to vector<8x32xf32>
    %787 = arith.addf %785, %786 : vector<8x32xf32>
    %788 = math.tanh %787 : vector<8x32xf32>
    %789 = tpu.concatenate %788, %788, %788, %788 in 1 : vector<8x32xf32>, vector<8x32xf32>, vector<8x32xf32>, vector<8x32xf32> -> vector<8x128xf32>
    %790 = arith.mulf %477, %789 : vector<8x128xf32>
    %791 = arith.truncf %790 : vector<8x128xf32> to vector<8x128xbf16>
    %cst_250 = arith.constant dense<0.000000e+00> : vector<8x4xf32>
    %792 = tpu.matmul %791, %485, %cst_250 {dimension_numbers = #tpu.dot_dimension_numbers<[1], [0], [0], [1], [0, 0, 1, 1], [], []>} : vector<8x128xbf16>, vector<128x4xbf16>, vector<8x4xf32> -> vector<8x4xf32>
    %cst_251 = arith.constant dense<0xFF800000> : vector<8xf32>
    %793 = vector.multi_reduction <maximumf>, %792, %cst_251 [1] : vector<8x4xf32> to vector<8xf32>
    %794 = vector.shape_cast %793 : vector<8xf32> to vector<8x1xf32>
    %795 = vector.broadcast %794 : vector<8x1xf32> to vector<8x4xf32>
    %796 = arith.subf %792, %795 : vector<8x4xf32>
    %797 = math.exp %796 : vector<8x4xf32>
    %cst_252 = arith.constant dense<0.000000e+00> : vector<8xf32>
    %798 = vector.multi_reduction <add>, %797, %cst_252 [1] : vector<8x4xf32> to vector<8xf32>
    %799 = vector.shape_cast %798 : vector<8xf32> to vector<8x1xf32>
    %800 = math.log %799 : vector<8x1xf32>
    %801 = vector.broadcast %800 : vector<8x1xf32> to vector<8x4xf32>
    %802 = arith.subf %796, %801 : vector<8x4xf32>
    %c0_253 = arith.constant 0 : index
    %c24_254 = arith.constant 24 : index
    %803 = vector.load %arg24[%c0_253, %c24_254] : memref<8x28xf32, #tpu.memory_space<vmem>>, vector<8x4xf32>
    tpu.vector_store %arg24[%c0_253, %c24_254], %802 {strides = array<i32>} : memref<8x28xf32, #tpu.memory_space<vmem>>, vector<8x4xf32>,
    %804 = arith.mulf %802, %469 : vector<8x4xf32>
    %cst_255 = arith.constant dense<0.000000e+00> : vector<8xf32>
    %805 = vector.multi_reduction <add>, %804, %cst_255 [1] : vector<8x4xf32> to vector<8xf32>
    %806 = vector.shape_cast %805 : vector<8xf32> to vector<8x1xf32>
    %cst_256 = arith.constant dense<0xFF800000> : vector<8xf32>
    %807 = vector.multi_reduction <maximumf>, %802, %cst_256 [1] : vector<8x4xf32> to vector<8xf32>
    %808 = vector.shape_cast %807 : vector<8xf32> to vector<8x1xf32>
    %cst_257 = arith.constant 0.000000e+00 : f32
    %809 = vector.broadcast %cst_257 : f32 to vector<8x1xf32>
    %810 = arith.subf %809, %806 : vector<8x1xf32>
    %811 = arith.cmpf oge, %806, %808 : vector<8x1xf32>
    %812 = arith.extui %811 : vector<8x1xi1> to vector<8x1xi32>
    %813 = arith.sitofp %812 : vector<8x1xi32> to vector<8x1xf32>
    %cst_258 = arith.constant 1.000000e+02 : f32
    %814 = vector.broadcast %cst_258 : f32 to vector<8x1xf32>
    %815 = arith.mulf %813, %814 : vector<8x1xf32>
    %816 = arith.mulf %782, %781 : vector<8x1xf32>
    %cst_259 = arith.constant 6.000000e-02 : f32
    %817 = vector.broadcast %cst_259 : f32 to vector<8x1xf32>
    %818 = arith.addf %810, %817 : vector<8x1xf32>
    %819 = arith.mulf %818, %816 : vector<8x1xf32>
    %820 = arith.addf %776, %819 : vector<8x1xf32>
    %821 = arith.mulf %815, %816 : vector<8x1xf32>
    %822 = arith.addf %778, %821 : vector<8x1xf32>
    %cst_260 = arith.constant 1.000000e+00 : f32
    %823 = vector.broadcast %cst_260 : f32 to vector<8x1xf32>
    %824 = arith.subf %823, %782 : vector<8x1xf32>
    %825 = arith.mulf %781, %824 : vector<8x1xf32>
    %cst_261 = arith.constant 6.000000e-02 : f32
    %826 = vector.broadcast %cst_261 : f32 to vector<8x1xf32>
    %827 = arith.addf %810, %826 : vector<8x1xf32>
    %828 = arith.mulf %827, %825 : vector<8x1xf32>
    %829 = arith.addf %820, %828 : vector<8x1xf32>
    %830 = arith.mulf %815, %825 : vector<8x1xf32>
    %831 = arith.addf %822, %830 : vector<8x1xf32>
    %832 = tpu.concatenate %829, %458, %461, %461, %831, %822, %463, %0 in 1 : vector<8x1xf32>, vector<8x1xf32>, vector<8x1xf32>, vector<8x1xf32>, vector<8x1xf32>, vector<8x1xf32>, vector<8x1xf32>, vector<8x1xf32> -> vector<8x8xf32>
    %c0_262 = arith.constant 0 : index
    %c0_263 = arith.constant 0 : index
    %833 = vector.load %arg25[%c0_262, %c0_263] : memref<8x8xf32, #tpu.memory_space<vmem>>, vector<8x8xf32>
    tpu.vector_store %arg25[%c0_262, %c0_263], %832 {strides = array<i32>} : memref<8x8xf32, #tpu.memory_space<vmem>>, vector<8x8xf32>,
    return
  }
  func.func @transform_0(%arg0: i32) -> (i32, i32) {
    %c0_i32 = arith.constant 0 : i32
    %c0_i32_0 = arith.constant 0 : i32
    return %arg0, %c0_i32 : i32, i32
  }
  func.func @transform_1(%arg0: i32) -> (i32, i32) {
    %c0_i32 = arith.constant 0 : i32
    %c0_i32_0 = arith.constant 0 : i32
    return %arg0, %c0_i32 : i32, i32
  }
  func.func @transform_2(%arg0: i32) -> (i32, i32) {
    %c0_i32 = arith.constant 0 : i32
    %c0_i32_0 = arith.constant 0 : i32
    return %arg0, %c0_i32 : i32, i32
  }
  func.func @transform_3(%arg0: i32) -> (i32, i32) {
    %c0_i32 = arith.constant 0 : i32
    %c0_i32_0 = arith.constant 0 : i32
    return %arg0, %c0_i32 : i32, i32
  }
  func.func @transform_4(%arg0: i32) -> (i32, i32) {
    %c0_i32 = arith.constant 0 : i32
    %c0_i32_0 = arith.constant 0 : i32
    %c0_i32_1 = arith.constant 0 : i32
    return %c0_i32, %c0_i32_0 : i32, i32
  }
  func.func @transform_5(%arg0: i32) -> (i32, i32) {
    %c0_i32 = arith.constant 0 : i32
    %c0_i32_0 = arith.constant 0 : i32
    %c0_i32_1 = arith.constant 0 : i32
    return %c0_i32, %c0_i32_0 : i32, i32
  }
  func.func @transform_6(%arg0: i32) -> (i32, i32) {
    %c0_i32 = arith.constant 0 : i32
    %c0_i32_0 = arith.constant 0 : i32
    %c0_i32_1 = arith.constant 0 : i32
    return %c0_i32, %c0_i32_0 : i32, i32
  }
  func.func @transform_7(%arg0: i32) -> (i32, i32) {
    %c0_i32 = arith.constant 0 : i32
    %c0_i32_0 = arith.constant 0 : i32
    %c0_i32_1 = arith.constant 0 : i32
    return %c0_i32, %c0_i32_0 : i32, i32
  }
  func.func @transform_8(%arg0: i32) -> (i32, i32) {
    %c0_i32 = arith.constant 0 : i32
    %c0_i32_0 = arith.constant 0 : i32
    %c0_i32_1 = arith.constant 0 : i32
    return %c0_i32, %c0_i32_0 : i32, i32
  }
  func.func @transform_9(%arg0: i32) -> (i32, i32) {
    %c0_i32 = arith.constant 0 : i32
    %c0_i32_0 = arith.constant 0 : i32
    %c0_i32_1 = arith.constant 0 : i32
    return %c0_i32, %c0_i32_0 : i32, i32
  }
  func.func @transform_10(%arg0: i32) -> (i32, i32) {
    %c0_i32 = arith.constant 0 : i32
    %c0_i32_0 = arith.constant 0 : i32
    %c0_i32_1 = arith.constant 0 : i32
    return %c0_i32, %c0_i32_0 : i32, i32
  }
  func.func @transform_11(%arg0: i32) -> (i32, i32) {
    %c0_i32 = arith.constant 0 : i32
    %c0_i32_0 = arith.constant 0 : i32
    %c0_i32_1 = arith.constant 0 : i32
    return %c0_i32, %c0_i32_0 : i32, i32
  }
  func.func @transform_12(%arg0: i32) -> (i32, i32) {
    %c0_i32 = arith.constant 0 : i32
    %c0_i32_0 = arith.constant 0 : i32
    %c0_i32_1 = arith.constant 0 : i32
    return %c0_i32, %c0_i32_0 : i32, i32
  }
  func.func @transform_13(%arg0: i32) -> (i32, i32) {
    %c0_i32 = arith.constant 0 : i32
    %c0_i32_0 = arith.constant 0 : i32
    %c0_i32_1 = arith.constant 0 : i32
    return %c0_i32, %c0_i32_0 : i32, i32
  }
  func.func @transform_14(%arg0: i32) -> (i32, i32) {
    %c0_i32 = arith.constant 0 : i32
    %c0_i32_0 = arith.constant 0 : i32
    %c0_i32_1 = arith.constant 0 : i32
    return %c0_i32, %c0_i32_0 : i32, i32
  }
  func.func @transform_15(%arg0: i32) -> (i32, i32) {
    %c0_i32 = arith.constant 0 : i32
    %c0_i32_0 = arith.constant 0 : i32
    %c0_i32_1 = arith.constant 0 : i32
    return %c0_i32, %c0_i32_0 : i32, i32
  }
  func.func @transform_16(%arg0: i32) -> (i32, i32) {
    %c0_i32 = arith.constant 0 : i32
    %c0_i32_0 = arith.constant 0 : i32
    %c0_i32_1 = arith.constant 0 : i32
    return %c0_i32, %c0_i32_0 : i32, i32
  }
  func.func @transform_17(%arg0: i32) -> (i32, i32) {
    %c0_i32 = arith.constant 0 : i32
    %c0_i32_0 = arith.constant 0 : i32
    %c0_i32_1 = arith.constant 0 : i32
    return %c0_i32, %c0_i32_0 : i32, i32
  }
  func.func @transform_18(%arg0: i32) -> (i32, i32) {
    %c0_i32 = arith.constant 0 : i32
    %c0_i32_0 = arith.constant 0 : i32
    %c0_i32_1 = arith.constant 0 : i32
    return %c0_i32, %c0_i32_0 : i32, i32
  }
  func.func @transform_19(%arg0: i32) -> (i32, i32) {
    %c0_i32 = arith.constant 0 : i32
    %c0_i32_0 = arith.constant 0 : i32
    %c0_i32_1 = arith.constant 0 : i32
    return %c0_i32, %c0_i32_0 : i32, i32
  }
  func.func @transform_20(%arg0: i32) -> (i32, i32) {
    %c0_i32 = arith.constant 0 : i32
    %c0_i32_0 = arith.constant 0 : i32
    %c0_i32_1 = arith.constant 0 : i32
    return %c0_i32, %c0_i32_0 : i32, i32
  }
  func.func @transform_21(%arg0: i32) -> (i32, i32) {
    %c0_i32 = arith.constant 0 : i32
    %c0_i32_0 = arith.constant 0 : i32
    return %arg0, %c0_i32 : i32, i32
  }
  func.func @transform_22(%arg0: i32) -> (i32, i32) {
    %c0_i32 = arith.constant 0 : i32
    %c0_i32_0 = arith.constant 0 : i32
    return %arg0, %c0_i32 : i32, i32
  }
  func.func @transform_23(%arg0: i32) -> (i32, i32) {
    %c0_i32 = arith.constant 0 : i32
    %c0_i32_0 = arith.constant 0 : i32
    return %arg0, %c0_i32 : i32, i32
  }
  func.func @transform_24(%arg0: i32) -> (i32, i32) {
    %c0_i32 = arith.constant 0 : i32
    %c0_i32_0 = arith.constant 0 : i32
    return %arg0, %c0_i32 : i32, i32
  }
}

</mosaic_0001>

<llo_original>
// kernel: sender_receiver_rnn_gs_forward.1
$region0: #{sender_receiver_rnn_gs_forward.1}
  #allocation0 [shape = 'u32[]', space=smem, size = 0x4, offset = 0x4, fixed_abs, tag = 'smem constant byte address 0x4 - core index']
  #allocation1 [shape = 'u32[144,128]{1,0:T(1,128)}', space=vmem, size = 0x12000, scoped, tag = 'internal scratch']
  %s0 = inlined_call_operand.vmem [shape: f32[8,16], index: 0, kind: input, shape index: {}]
  %s1 = inlined_call_operand.vmem [shape: f32[8,48], index: 1, kind: input, shape index: {}]
  %s2 = inlined_call_operand.vmem [shape: f32[8,64], index: 2, kind: input, shape index: {}]
  %s3 = inlined_call_operand.vmem [shape: s32[8,1], index: 3, kind: input, shape index: {}]
  %s4 = inlined_call_operand.vmem [shape: bf16[16,32], index: 4, kind: input, shape index: {}]
  %s5 = inlined_call_operand.vmem [shape: f32[1,32], index: 5, kind: input, shape index: {}]
  %s6 = inlined_call_operand.vmem [shape: f32[1,32], index: 6, kind: input, shape index: {}]
  %s7 = inlined_call_operand.vmem [shape: bf16[8,32], index: 7, kind: input, shape index: {}]
  %s8 = inlined_call_operand.vmem [shape: f32[1,32], index: 8, kind: input, shape index: {}]
  %s9 = inlined_call_operand.vmem [shape: bf16[32,32], index: 9, kind: input, shape index: {}]
  %s10 = inlined_call_operand.vmem [shape: f32[1,32], index: 10, kind: input, shape index: {}]
  %s11 = inlined_call_operand.vmem [shape: bf16[32,9], index: 11, kind: input, shape index: {}]
  %s12 = inlined_call_operand.vmem [shape: f32[1,9], index: 12, kind: input, shape index: {}]
  %s13 = inlined_call_operand.vmem [shape: bf16[64,128], index: 13, kind: input, shape index: {}]
  %s14 = inlined_call_operand.vmem [shape: f32[1,128], index: 14, kind: input, shape index: {}]
  %s15 = inlined_call_operand.vmem [shape: bf16[8,32], index: 15, kind: input, shape index: {}]
  %s16 = inlined_call_operand.vmem [shape: f32[1,32], index: 16, kind: input, shape index: {}]
  %s17 = inlined_call_operand.vmem [shape: f32[1,32], index: 17, kind: input, shape index: {}]
  %s18 = inlined_call_operand.vmem [shape: bf16[32,32], index: 18, kind: input, shape index: {}]
  %s19 = inlined_call_operand.vmem [shape: f32[1,32], index: 19, kind: input, shape index: {}]
  %s20 = inlined_call_operand.vmem [shape: bf16[128,4], index: 20, kind: input, shape index: {}]
  %s21 = inlined_call_operand.vmem [shape: f32[8,56], index: 21, kind: output, shape index: {0}]
  %s22 = inlined_call_operand.vmem [shape: f32[8,56], index: 22, kind: output, shape index: {1}]
  %s23 = inlined_call_operand.vmem [shape: f32[8,28], index: 23, kind: output, shape index: {2}]
  %s24 = inlined_call_operand.vmem [shape: f32[8,8], index: 24, kind: output, shape index: {3}]
  %25 = xla_tuple %s21, %s22, %s23, %s24
  %s26 = sld [smem:[#allocation0]]
  $region118: #{sender_receiver_rnn_gs_forward.1} parent=0
    _
  %s28 = ssub.s32 1, %s26
  %s29 = scalar_select 0, %s28, %s26
  // Predicated region
  $region2: #{sender_receiver_rnn_gs_forward.1} parent=0 // pred_check
    _
  $region3: #{sender_receiver_rnn_gs_forward.1} parent=0 // pred_check_branch
    %31 = sbr.rel (0) target = $region5
  $region4: #{sender_receiver_rnn_gs_forward.1} parent=0 // pred_region
    _
  $region5: #{sender_receiver_rnn_gs_forward.1} parent=0 // pred_fallthru
    _
  // Predicated region
  $region6: #{sender_receiver_rnn_gs_forward.1} parent=0 // pred_check
    _
  $region7: #{sender_receiver_rnn_gs_forward.1} parent=0 // pred_check_branch
    %33 = sbr.rel (0) target = $region9
  $region8: #{sender_receiver_rnn_gs_forward.1} parent=0 // pred_region
    _
  $region9: #{sender_receiver_rnn_gs_forward.1} parent=0 // pred_fallthru
    _
  // Predicated region
  $region10: #{sender_receiver_rnn_gs_forward.1} parent=0 // pred_check
    _
  $region11: #{sender_receiver_rnn_gs_forward.1} parent=0 // pred_check_branch
    %35 = sbr.rel (0) target = $region13
  $region12: #{sender_receiver_rnn_gs_forward.1} parent=0 // pred_region
    _
  $region13: #{sender_receiver_rnn_gs_forward.1} parent=0 // pred_fallthru
    _
  // Predicated region
  $region14: #{sender_receiver_rnn_gs_forward.1} parent=0 // pred_check
    _
  $region15: #{sender_receiver_rnn_gs_forward.1} parent=0 // pred_check_branch
    %37 = sbr.rel (0) target = $region17
  $region16: #{sender_receiver_rnn_gs_forward.1} parent=0 // pred_region
    _
  $region17: #{sender_receiver_rnn_gs_forward.1} parent=0 // pred_fallthru
    _
  // Predicated region
  $region18: #{sender_receiver_rnn_gs_forward.1} parent=0 // pred_check
    _
  $region19: #{sender_receiver_rnn_gs_forward.1} parent=0 // pred_check_branch
    %39 = sbr.rel (0) target = $region21
  $region20: #{sender_receiver_rnn_gs_forward.1} parent=0 // pred_region
    _
  $region21: #{sender_receiver_rnn_gs_forward.1} parent=0 // pred_fallthru
    _
  // Predicated region
  $region22: #{sender_receiver_rnn_gs_forward.1} parent=0 // pred_check
    _
  $region23: #{sender_receiver_rnn_gs_forward.1} parent=0 // pred_check_branch
    %41 = sbr.rel (0) target = $region25
  $region24: #{sender_receiver_rnn_gs_forward.1} parent=0 // pred_region
    _
  $region25: #{sender_receiver_rnn_gs_forward.1} parent=0 // pred_fallthru
    _
  // Predicated region
  $region26: #{sender_receiver_rnn_gs_forward.1} parent=0 // pred_check
    _
  $region27: #{sender_receiver_rnn_gs_forward.1} parent=0 // pred_check_branch
    %43 = sbr.rel (0) target = $region29
  $region28: #{sender_receiver_rnn_gs_forward.1} parent=0 // pred_region
    _
  $region29: #{sender_receiver_rnn_gs_forward.1} parent=0 // pred_fallthru
    _
  // Predicated region
  $region30: #{sender_receiver_rnn_gs_forward.1} parent=0 // pred_check
    _
  $region31: #{sender_receiver_rnn_gs_forward.1} parent=0 // pred_check_branch
    %45 = sbr.rel (0) target = $region33
  $region32: #{sender_receiver_rnn_gs_forward.1} parent=0 // pred_region
    _
  $region33: #{sender_receiver_rnn_gs_forward.1} parent=0 // pred_fallthru
    _
  // Predicated region
  $region34: #{sender_receiver_rnn_gs_forward.1} parent=0 // pred_check
    _
  $region35: #{sender_receiver_rnn_gs_forward.1} parent=0 // pred_check_branch
    %47 = sbr.rel (0) target = $region37
  $region36: #{sender_receiver_rnn_gs_forward.1} parent=0 // pred_region
    _
  $region37: #{sender_receiver_rnn_gs_forward.1} parent=0 // pred_fallthru
    _
  // Predicated region
  $region38: #{sender_receiver_rnn_gs_forward.1} parent=0 // pred_check
    _
  $region39: #{sender_receiver_rnn_gs_forward.1} parent=0 // pred_check_branch
    %49 = sbr.rel (0) target = $region41
  $region40: #{sender_receiver_rnn_gs_forward.1} parent=0 // pred_region
    _
  $region41: #{sender_receiver_rnn_gs_forward.1} parent=0 // pred_fallthru
    _
  // Predicated region
  $region42: #{sender_receiver_rnn_gs_forward.1} parent=0 // pred_check
    _
  $region43: #{sender_receiver_rnn_gs_forward.1} parent=0 // pred_check_branch
    %51 = sbr.rel (0) target = $region45
  $region44: #{sender_receiver_rnn_gs_forward.1} parent=0 // pred_region
    _
  $region45: #{sender_receiver_rnn_gs_forward.1} parent=0 // pred_fallthru
    _
  // Predicated region
  $region46: #{sender_receiver_rnn_gs_forward.1} parent=0 // pred_check
    _
  $region47: #{sender_receiver_rnn_gs_forward.1} parent=0 // pred_check_branch
    %53 = sbr.rel (0) target = $region49
  $region48: #{sender_receiver_rnn_gs_forward.1} parent=0 // pred_region
    _
  $region49: #{sender_receiver_rnn_gs_forward.1} parent=0 // pred_fallthru
    _
  // Predicated region
  $region50: #{sender_receiver_rnn_gs_forward.1} parent=0 // pred_check
    _
  $region51: #{sender_receiver_rnn_gs_forward.1} parent=0 // pred_check_branch
    %55 = sbr.rel (0) target = $region53
  $region52: #{sender_receiver_rnn_gs_forward.1} parent=0 // pred_region
    _
  $region53: #{sender_receiver_rnn_gs_forward.1} parent=0 // pred_fallthru
    _
  // Predicated region
  $region54: #{sender_receiver_rnn_gs_forward.1} parent=0 // pred_check
    _
  $region55: #{sender_receiver_rnn_gs_forward.1} parent=0 // pred_check_branch
    %57 = sbr.rel (0) target = $region57
  $region56: #{sender_receiver_rnn_gs_forward.1} parent=0 // pred_region
    _
  $region57: #{sender_receiver_rnn_gs_forward.1} parent=0 // pred_fallthru
    _
  // Predicated region
  $region58: #{sender_receiver_rnn_gs_forward.1} parent=0 // pred_check
    _
  $region59: #{sender_receiver_rnn_gs_forward.1} parent=0 // pred_check_branch
    %59 = sbr.rel (0) target = $region61
  $region60: #{sender_receiver_rnn_gs_forward.1} parent=0 // pred_region
    _
  $region61: #{sender_receiver_rnn_gs_forward.1} parent=0 // pred_fallthru
    _
  // Predicated region
  $region62: #{sender_receiver_rnn_gs_forward.1} parent=0 // pred_check
    _
  $region63: #{sender_receiver_rnn_gs_forward.1} parent=0 // pred_check_branch
    %61 = sbr.rel (0) target = $region65
  $region64: #{sender_receiver_rnn_gs_forward.1} parent=0 // pred_region
    _
  $region65: #{sender_receiver_rnn_gs_forward.1} parent=0 // pred_fallthru
    _
  // Predicated region
  $region66: #{sender_receiver_rnn_gs_forward.1} parent=0 // pred_check
    _
  $region67: #{sender_receiver_rnn_gs_forward.1} parent=0 // pred_check_branch
    %63 = sbr.rel (0) target = $region69
  $region68: #{sender_receiver_rnn_gs_forward.1} parent=0 // pred_region
    _
  $region69: #{sender_receiver_rnn_gs_forward.1} parent=0 // pred_fallthru
    _
  // Predicated region
  $region70: #{sender_receiver_rnn_gs_forward.1} parent=0 // pred_check
    _
  $region71: #{sender_receiver_rnn_gs_forward.1} parent=0 // pred_check_branch
    %65 = sbr.rel (0) target = $region73
  $region72: #{sender_receiver_rnn_gs_forward.1} parent=0 // pred_region
    _
  $region73: #{sender_receiver_rnn_gs_forward.1} parent=0 // pred_fallthru
    _
  // Predicated region
  $region74: #{sender_receiver_rnn_gs_forward.1} parent=0 // pred_check
    _
  $region75: #{sender_receiver_rnn_gs_forward.1} parent=0 // pred_check_branch
    %67 = sbr.rel (0) target = $region77
  $region76: #{sender_receiver_rnn_gs_forward.1} parent=0 // pred_region
    _
  $region77: #{sender_receiver_rnn_gs_forward.1} parent=0 // pred_fallthru
    _
  // Predicated region
  $region78: #{sender_receiver_rnn_gs_forward.1} parent=0 // pred_check
    _
  $region79: #{sender_receiver_rnn_gs_forward.1} parent=0 // pred_check_branch
    %69 = sbr.rel (0) target = $region81
  $region80: #{sender_receiver_rnn_gs_forward.1} parent=0 // pred_region
    _
  $region81: #{sender_receiver_rnn_gs_forward.1} parent=0 // pred_fallthru
    _
  // Predicated region
  $region82: #{sender_receiver_rnn_gs_forward.1} parent=0 // pred_check
    _
  $region83: #{sender_receiver_rnn_gs_forward.1} parent=0 // pred_check_branch
    %71 = sbr.rel (0) target = $region85
  $region84: #{sender_receiver_rnn_gs_forward.1} parent=0 // pred_region
    _
  $region85: #{sender_receiver_rnn_gs_forward.1} parent=0 // pred_fallthru
    _
  %v73 = vld [vmem:[%s0] sm:$0xff]
  %v74 = vpack.c.bf16 %v73, %v73
  %v75 = vld [vmem:[%s4] sm:$0xf]
  %v76 = vld [vmem:[%s4 + $0x4] sm:$0xf]
  %v77 = vld [vmem:[%s5] sm:$0x1]
  %v79 = vlaneseq
  %v80 = vshrl.u32 %v79, 7
  %v81 = vsub.s32 0, %v80
  %v82 = vrot.slane %v77, %v81
  %v86 = vunpack.c.l.b16 %v75
  %v87 = vunpack.c.l.b16 %v76
  %v88 = vpack.c.b16 %v87, %v86
  %vm90 = vcmask 130048
  %v92 = vsel %vm90, %v74, 0
  %94 = vmatprep.subr.bf16.mxu0 0
  %95 = vmatpush1.bf16.msra.mxu0 %v88
  %96 = vmatprep.subr.bf16.mxu0 0
  %97 = vmatpush1.bf16.msra.mxu0 0
  %98 = vmatprep.subr.bf16.mxu0 0
  %99 = vmatpush1.bf16.msra.mxu0 0
  %100 = vmatprep.subr.bf16.mxu0 0
  %101 = vmatpush1.bf16.msra.mxu0 0
  %102 = vmatprep.subr.bf16.mxu0 0
  %103 = vmatpush1.bf16.msra.mxu0 0
  %104 = vmatprep.subr.bf16.mxu0 0
  %105 = vmatpush1.bf16.msra.mxu0 0
  %106 = vmatprep.subr.bf16.mxu0 0
  %107 = vmatpush1.bf16.msra.mxu0 0
  %108 = vmatprep.subr.bf16.mxu0 0
  %109 = vmatpush1.bf16.msra.mxu0 0
  %110 = vmatprep.subr.bf16.mxu0 0
  %111 = vmatpush1.bf16.msra.mxu0 0
  %112 = vmatprep.subr.bf16.mxu0 0
  %113 = vmatpush1.bf16.msra.mxu0 0
  %114 = vmatprep.subr.bf16.mxu0 0
  %115 = vmatpush1.bf16.msra.mxu0 0
  %116 = vmatprep.subr.bf16.mxu0 0
  %117 = vmatpush1.bf16.msra.mxu0 0
  %118 = vmatprep.subr.bf16.mxu0 0
  %119 = vmatpush1.bf16.msra.mxu0 0
  %120 = vmatprep.subr.bf16.mxu0 0
  %121 = vmatpush1.bf16.msra.mxu0 0
  %122 = vmatprep.subr.bf16.mxu0 0
  %123 = vmatpush1.bf16.msra.mxu0 0
  %124 = vmatprep.subr.bf16.mxu0 0
  %125 = vmatpush1.bf16.msra.mxu0 0
  %126 = vmatprep.mubr.bf16.mxu0 0
  %127 = vmatmul.mubr.bf16.gmra.mrb[0].mxu0 %v92
  %v128 = vpop.f32.mrb[0].mxu0
  %v129 = vadd.f32 %v82, %v128
  %v130 = vpop.f32.mrb[0].mxu0
  %v131 = vpop.f32.mrb[0].mxu0
  %v132 = vpop.f32.mrb[0].mxu0
  %133 = vdwg.mxu0
  %v134 = vtanh.pop %v129
  %v135 = vld [vmem:[%s1] sm:$0xff]
  %v136 = vld [vmem:[%s7] sm:$0xf]
  %v137 = vld [vmem:[%s8] sm:$0x1]
  %v138 = vld [vmem:[%s9] sm:$0xf]
  %v139 = vld [vmem:[%s9 + $0x4] sm:$0xf]
  %v140 = vld [vmem:[%s9 + $0x8] sm:$0xf]
  %v141 = vld [vmem:[%s9 + $0xc] sm:$0xf]
  %v142 = vld [vmem:[%s10] sm:$0x1]
  %v143 = vld [vmem:[%s11] sm:$0xf]
  %v144 = vld [vmem:[%s11 + $0x4] sm:$0xf]
  %v145 = vld [vmem:[%s11 + $0x8] sm:$0xf]
  %v146 = vld [vmem:[%s11 + $0xc] sm:$0xf]
  %v147 = vld [vmem:[%s12] sm:$0x1]
  %v148 = vld [vmem:[%s6] sm:$0x1]
  %v150 = vlaneseq
  %v151 = vshrl.u32 %v150, 7
  %v152 = vsub.s32 0, %v151
  %v153 = vrot.slane %v148, %v152
  %v155 = vpack.c.bf16 %v134, %v134
  %v160 = vunpack.c.l.b16 %v138
  %v161 = vunpack.c.l.b16 %v139
  %v162 = vunpack.c.l.b16 %v140
  %v163 = vunpack.c.l.b16 %v141
  %v164 = vpack.c.b16 %v161, %v160
  %v165 = vpack.c.b16 %v163, %v162
  %vm168 = vcmask 261120
  %v170 = vsel %vm168, %v155, 0
  %172 = vmatprep.subr.bf16.mxu0 0
  %173 = vmatpush1.bf16.msra.mxu0 %v164
  %174 = vmatprep.subr.bf16.mxu0 0
  %175 = vmatpush1.bf16.msra.mxu0 %v165
  %176 = vmatprep.subr.bf16.mxu0 0
  %177 = vmatpush1.bf16.msra.mxu0 0
  %178 = vmatprep.subr.bf16.mxu0 0
  %179 = vmatpush1.bf16.msra.mxu0 0
  %180 = vmatprep.subr.bf16.mxu0 0
  %181 = vmatpush1.bf16.msra.mxu0 0
  %182 = vmatprep.subr.bf16.mxu0 0
  %183 = vmatpush1.bf16.msra.mxu0 0
  %184 = vmatprep.subr.bf16.mxu0 0
  %185 = vmatpush1.bf16.msra.mxu0 0
  %186 = vmatprep.subr.bf16.mxu0 0
  %187 = vmatpush1.bf16.msra.mxu0 0
  %188 = vmatprep.subr.bf16.mxu0 0
  %189 = vmatpush1.bf16.msra.mxu0 0
  %190 = vmatprep.subr.bf16.mxu0 0
  %191 = vmatpush1.bf16.msra.mxu0 0
  %192 = vmatprep.subr.bf16.mxu0 0
  %193 = vmatpush1.bf16.msra.mxu0 0
  %194 = vmatprep.subr.bf16.mxu0 0
  %195 = vmatpush1.bf16.msra.mxu0 0
  %196 = vmatprep.subr.bf16.mxu0 0
  %197 = vmatpush1.bf16.msra.mxu0 0
  %198 = vmatprep.subr.bf16.mxu0 0
  %199 = vmatpush1.bf16.msra.mxu0 0
  %200 = vmatprep.subr.bf16.mxu0 0
  %201 = vmatpush1.bf16.msra.mxu0 0
  %202 = vmatprep.subr.bf16.mxu0 0
  %203 = vmatpush1.bf16.msra.mxu0 0
  %204 = vmatprep.mubr.bf16.mxu0 0
  %205 = vmatmul.mubr.bf16.gmra.mrb[0].mxu0 %v170
  %v206 = vpop.f32.mrb[0].mxu0
  %v207 = vadd.f32 0.0, %v206
  %v208 = vpop.f32.mrb[0].mxu0
  %v209 = vpop.f32.mrb[0].mxu0
  %v210 = vpop.f32.mrb[0].mxu0
  %211 = vdwg.mxu0
  %v212 = vadd.f32 %v153, %v207
  %v214 = vlaneseq
  %v215 = vshrl.u32 %v214, 7
  %v216 = vsub.s32 0, %v215
  %v217 = vrot.slane %v142, %v216
  %v219 = vadd.f32 %v212, %v217
  %v220 = vtanh.pop %v219
  %v221 = vpack.c.bf16 %v220, %v220
  %v223 = vlaneseq
  %v224 = vshrl.u32 %v223, 7
  %v225 = vsub.s32 0, %v224
  %v226 = vrot.slane %v147, %v225
  %v232 = vunpack.c.l.b16 %v143
  %v233 = vunpack.c.l.b16 %v144
  %v234 = vunpack.c.l.b16 %v145
  %v235 = vunpack.c.l.b16 %v146
  %v236 = vpack.c.b16 %v233, %v232
  %v237 = vpack.c.b16 %v235, %v234
  %v241 = vsel %vm168, %v221, 0
  %243 = vmatprep.subr.bf16.mxu0 0
  %244 = vmatpush1.bf16.msra.mxu0 %v236
  %245 = vmatprep.subr.bf16.mxu0 0
  %246 = vmatpush1.bf16.msra.mxu0 %v237
  %247 = vmatprep.subr.bf16.mxu0 0
  %248 = vmatpush1.bf16.msra.mxu0 0
  %249 = vmatprep.subr.bf16.mxu0 0
  %250 = vmatpush1.bf16.msra.mxu0 0
  %251 = vmatprep.subr.bf16.mxu0 0
  %252 = vmatpush1.bf16.msra.mxu0 0
  %253 = vmatprep.subr.bf16.mxu0 0
  %254 = vmatpush1.bf16.msra.mxu0 0
  %255 = vmatprep.subr.bf16.mxu0 0
  %256 = vmatpush1.bf16.msra.mxu0 0
  %257 = vmatprep.subr.bf16.mxu0 0
  %258 = vmatpush1.bf16.msra.mxu0 0
  %259 = vmatprep.subr.bf16.mxu0 0
  %260 = vmatpush1.bf16.msra.mxu0 0
  %261 = vmatprep.subr.bf16.mxu0 0
  %262 = vmatpush1.bf16.msra.mxu0 0
  %263 = vmatprep.subr.bf16.mxu0 0
  %264 = vmatpush1.bf16.msra.mxu0 0
  %265 = vmatprep.subr.bf16.mxu0 0
  %266 = vmatpush1.bf16.msra.mxu0 0
  %267 = vmatprep.subr.bf16.mxu0 0
  %268 = vmatpush1.bf16.msra.mxu0 0
  %269 = vmatprep.subr.bf16.mxu0 0
  %270 = vmatpush1.bf16.msra.mxu0 0
  %271 = vmatprep.subr.bf16.mxu0 0
  %272 = vmatpush1.bf16.msra.mxu0 0
  %273 = vmatprep.subr.bf16.mxu0 0
  %274 = vmatpush1.bf16.msra.mxu0 0
  %275 = vmatprep.mubr.bf16.mxu0 0
  %276 = vmatmul.mubr.bf16.gmra.mrb[0].mxu0 %v241
  %v277 = vpop.f32.mrb[0].mxu0
  %v278 = vadd.f32 %v226, %v277
  %v279 = vpop.f32.mrb[0].mxu0
  %v280 = vpop.f32.mrb[0].mxu0
  %v281 = vpop.f32.mrb[0].mxu0
  %282 = vdwg.mxu0
  %v283 = vmax.f32 %v278, 0.0
  %v284 = vand.u32 2147483647, %v278
  %v285 = vsub.f32 0.0, %v284
  %v286 = vmul.f32 %v285, 1.442695
  %v287 = vpow.pop %v286
  %v288 = vadd.f32 %v287, 1.0
  %v289 = vlog2.pop %v288
  %v290 = vmul.f32 %v289, 0.6931472
  %v291 = vadd.f32 %v283, %v290
  %v292 = vadd.f32 %v291, 0.1
  %v293 = vrcp.pop %v292
  %v294 = vmul.f32 1.0, %v293
  %v295 = vadd.f32 %v278, %v135
  %297 = vset.pattern.permute.xlu0 8
  %298 = vperm.xlu0 %297, %v292
  %v299 = vpop.permute.xlu0 %298
  %v301 = vmul.f32 %v295, %v299
  %vm302 = vcmask 64512
  %v303 = vsel %vm302, %v301, -inf
  %304 = vmax.xlane.f32.xlu0 %v303
  %v305 = vpop.xlane.xlu0 %304
  %v306 = vsub.f32 %v301, %v305
  %v307 = vmul.f32 %v306, 1.442695
  %v308 = vpow.pop %v307
  %v309 = vpack.c.bf16 %v308, %v308
  %v311 = vsel %vm302, %v309, 0
  %vm313 = vcmask 1043456
  %v315 = vsel %vm313, %v136, 0
  %317 = vmatprep.subr.bf16.mxu0 0
  %318 = vmatpush1.bf16.msra.mxu0 %v315
  %319 = vmatprep.subr.bf16.mxu0 0
  %320 = vmatpush1.bf16.msra.mxu0 0
  %321 = vmatprep.subr.bf16.mxu0 0
  %322 = vmatpush1.bf16.msra.mxu0 0
  %323 = vmatprep.subr.bf16.mxu0 0
  %324 = vmatpush1.bf16.msra.mxu0 0
  %325 = vmatprep.subr.bf16.mxu0 0
  %326 = vmatpush1.bf16.msra.mxu0 0
  %327 = vmatprep.subr.bf16.mxu0 0
  %328 = vmatpush1.bf16.msra.mxu0 0
  %329 = vmatprep.subr.bf16.mxu0 0
  %330 = vmatpush1.bf16.msra.mxu0 0
  %331 = vmatprep.subr.bf16.mxu0 0
  %332 = vmatpush1.bf16.msra.mxu0 0
  %333 = vmatprep.subr.bf16.mxu0 0
  %334 = vmatpush1.bf16.msra.mxu0 0
  %335 = vmatprep.subr.bf16.mxu0 0
  %336 = vmatpush1.bf16.msra.mxu0 0
  %337 = vmatprep.subr.bf16.mxu0 0
  %338 = vmatpush1.bf16.msra.mxu0 0
  %339 = vmatprep.subr.bf16.mxu0 0
  %340 = vmatpush1.bf16.msra.mxu0 0
  %341 = vmatprep.subr.bf16.mxu0 0
  %342 = vmatpush1.bf16.msra.mxu0 0
  %343 = vmatprep.subr.bf16.mxu0 0
  %344 = vmatpush1.bf16.msra.mxu0 0
  %345 = vmatprep.subr.bf16.mxu0 0
  %346 = vmatpush1.bf16.msra.mxu0 0
  %347 = vmatprep.subr.bf16.mxu0 0
  %348 = vmatpush1.bf16.msra.mxu0 0
  %349 = vmatprep.mubr.bf16.mxu0 0
  %350 = vmatmul.mubr.bf16.gmra.mrb[0].mxu0 %v311
  %v351 = vpop.f32.mrb[0].mxu0
  %v352 = vadd.f32 0.0, %v351
  %v353 = vpop.f32.mrb[0].mxu0
  %v354 = vpop.f32.mrb[0].mxu0
  %v355 = vpop.f32.mrb[0].mxu0
  %356 = vdwg.mxu0
  %v357 = vsel %vm302, %v308, 0.0
  %358 = vadd.xlane.f32.xlu0 %v357
  %v359 = vpop.xlane.xlu0 %358
  %v360 = vrcp.pop %v359
  %v361 = vmul.f32 1.0, %v360
  %v362 = vmul.f32 %v352, %v361
  %v364 = vlaneseq
  %v365 = vshrl.u32 %v364, 7
  %v366 = vsub.s32 0, %v365
  %v367 = vrot.slane %v137, %v366
  %v369 = vadd.f32 %v362, %v367
  %v370 = vmul.f32 %v308, %v361
  %371 = vst.msk [vmem:[%s21] sm:$0xff] %vm302, %v370
  %v372 = vmul.f32 %v278, %v299
  %v373 = vsel %vm302, %v372, -inf
  %374 = vmax.xlane.f32.xlu0 %v373
  %v375 = vpop.xlane.xlu0 %374
  %v376 = vsub.f32 %v372, %v375
  %v377 = vmul.f32 %v376, 1.442695
  %v378 = vpow.pop %v377
  %v379 = vsel %vm302, %v378, 0.0
  %380 = vadd.xlane.f32.xlu0 %v379
  %v381 = vpop.xlane.xlu0 %380
  %v382 = vlog2.pop %v381
  %v383 = vmul.f32 %v382, 0.6931472
  %v384 = vsub.f32 %v376, %v383
  %385 = vst.msk [vmem:[%s22] sm:$0xff] %vm302, %v384
  %v386 = vadd.f32 %v370, 0.0
  %388 = vrot.lane.b32.xlu0 %v370, 8
  %v389 = vpop.permute.xlu0 %388
  %v391 = vmul.f32 %v294, %v389
  %v392 = vadd.f32 %v391, 0.0
  %v393 = vsub.f32 1.0, %v370
  %394 = vmatprep.subr.bf16.mxu0 0
  %395 = vmatpush1.bf16.msra.mxu0 %v164
  %396 = vmatprep.subr.bf16.mxu0 0
  %397 = vmatpush1.bf16.msra.mxu0 %v165
  %398 = vmatprep.subr.bf16.mxu0 0
  %399 = vmatpush1.bf16.msra.mxu0 0
  %400 = vmatprep.subr.bf16.mxu0 0
  %401 = vmatpush1.bf16.msra.mxu0 0
  %402 = vmatprep.subr.bf16.mxu0 0
  %403 = vmatpush1.bf16.msra.mxu0 0
  %404 = vmatprep.subr.bf16.mxu0 0
  %405 = vmatpush1.bf16.msra.mxu0 0
  %406 = vmatprep.subr.bf16.mxu0 0
  %407 = vmatpush1.bf16.msra.mxu0 0
  %408 = vmatprep.subr.bf16.mxu0 0
  %409 = vmatpush1.bf16.msra.mxu0 0
  %410 = vmatprep.subr.bf16.mxu0 0
  %411 = vmatpush1.bf16.msra.mxu0 0
  %412 = vmatprep.subr.bf16.mxu0 0
  %413 = vmatpush1.bf16.msra.mxu0 0
  %414 = vmatprep.subr.bf16.mxu0 0
  %415 = vmatpush1.bf16.msra.mxu0 0
  %416 = vmatprep.subr.bf16.mxu0 0
  %417 = vmatpush1.bf16.msra.mxu0 0
  %418 = vmatprep.subr.bf16.mxu0 0
  %419 = vmatpush1.bf16.msra.mxu0 0
  %420 = vmatprep.subr.bf16.mxu0 0
  %421 = vmatpush1.bf16.msra.mxu0 0
  %422 = vmatprep.subr.bf16.mxu0 0
  %423 = vmatpush1.bf16.msra.mxu0 0
  %424 = vmatprep.subr.bf16.mxu0 0
  %425 = vmatpush1.bf16.msra.mxu0 0
  %426 = vmatprep.mubr.bf16.mxu0 0
  %427 = vmatmul.mubr.bf16.gmra.mrb[0].mxu0 %v241
  %v428 = vpop.f32.mrb[0].mxu0
  %v429 = vadd.f32 0.0, %v428
  %v430 = vpop.f32.mrb[0].mxu0
  %v431 = vpop.f32.mrb[0].mxu0
  %v432 = vpop.f32.mrb[0].mxu0
  %433 = vdwg.mxu0
  %v434 = vadd.f32 %v369, %v429
  %v435 = vadd.f32 %v434, %v217
  %v436 = vtanh.pop %v435
  %v437 = vpack.c.bf16 %v436, %v436
  %v439 = vsel %vm168, %v437, 0
  %441 = vmatprep.subr.bf16.mxu0 0
  %442 = vmatpush1.bf16.msra.mxu0 %v236
  %443 = vmatprep.subr.bf16.mxu0 0
  %444 = vmatpush1.bf16.msra.mxu0 %v237
  %445 = vmatprep.subr.bf16.mxu0 0
  %446 = vmatpush1.bf16.msra.mxu0 0
  %447 = vmatprep.subr.bf16.mxu0 0
  %448 = vmatpush1.bf16.msra.mxu0 0
  %449 = vmatprep.subr.bf16.mxu0 0
  %450 = vmatpush1.bf16.msra.mxu0 0
  %451 = vmatprep.subr.bf16.mxu0 0
  %452 = vmatpush1.bf16.msra.mxu0 0
  %453 = vmatprep.subr.bf16.mxu0 0
  %454 = vmatpush1.bf16.msra.mxu0 0
  %455 = vmatprep.subr.bf16.mxu0 0
  %456 = vmatpush1.bf16.msra.mxu0 0
  %457 = vmatprep.subr.bf16.mxu0 0
  %458 = vmatpush1.bf16.msra.mxu0 0
  %459 = vmatprep.subr.bf16.mxu0 0
  %460 = vmatpush1.bf16.msra.mxu0 0
  %461 = vmatprep.subr.bf16.mxu0 0
  %462 = vmatpush1.bf16.msra.mxu0 0
  %463 = vmatprep.subr.bf16.mxu0 0
  %464 = vmatpush1.bf16.msra.mxu0 0
  %465 = vmatprep.subr.bf16.mxu0 0
  %466 = vmatpush1.bf16.msra.mxu0 0
  %467 = vmatprep.subr.bf16.mxu0 0
  %468 = vmatpush1.bf16.msra.mxu0 0
  %469 = vmatprep.subr.bf16.mxu0 0
  %470 = vmatpush1.bf16.msra.mxu0 0
  %471 = vmatprep.subr.bf16.mxu0 0
  %472 = vmatpush1.bf16.msra.mxu0 0
  %473 = vmatprep.mubr.bf16.mxu0 0
  %474 = vmatmul.mubr.bf16.gmra.mrb[0].mxu0 %v439
  %v475 = vpop.f32.mrb[0].mxu0
  %v476 = vadd.f32 %v226, %v475
  %v477 = vpop.f32.mrb[0].mxu0
  %v478 = vpop.f32.mrb[0].mxu0
  %v479 = vpop.f32.mrb[0].mxu0
  %480 = vdwg.mxu0
  %v481 = vmax.f32 %v476, 0.0
  %v482 = vand.u32 2147483647, %v476
  %v483 = vsub.f32 0.0, %v482
  %v484 = vmul.f32 %v483, 1.442695
  %v485 = vpow.pop %v484
  %v486 = vadd.f32 %v485, 1.0
  %v487 = vlog2.pop %v486
  %v488 = vmul.f32 %v487, 0.6931472
  %v489 = vadd.f32 %v481, %v488
  %v490 = vadd.f32 %v489, 0.1
  %v491 = vrcp.pop %v490
  %v492 = vmul.f32 1.0, %v491
  %494 = vrot.lane.b32.xlu0 %v135, 120
  %v495 = vpop.permute.xlu0 %494
  %v497 = vadd.f32 %v476, %v495
  %499 = vset.pattern.permute.xlu0 8
  %500 = vperm.xlu0 %499, %v490
  %v501 = vpop.permute.xlu0 %500
  %v503 = vmul.f32 %v497, %v501
  %v504 = vsel %vm302, %v503, -inf
  %505 = vmax.xlane.f32.xlu0 %v504
  %v506 = vpop.xlane.xlu0 %505
  %v507 = vsub.f32 %v503, %v506
  %v508 = vmul.f32 %v507, 1.442695
  %v509 = vpow.pop %v508
  %v510 = vpack.c.bf16 %v509, %v509
  %v512 = vsel %vm302, %v510, 0
  %514 = vmatprep.subr.bf16.mxu0 0
  %515 = vmatpush1.bf16.msra.mxu0 %v315
  %516 = vmatprep.subr.bf16.mxu0 0
  %517 = vmatpush1.bf16.msra.mxu0 0
  %518 = vmatprep.subr.bf16.mxu0 0
  %519 = vmatpush1.bf16.msra.mxu0 0
  %520 = vmatprep.subr.bf16.mxu0 0
  %521 = vmatpush1.bf16.msra.mxu0 0
  %522 = vmatprep.subr.bf16.mxu0 0
  %523 = vmatpush1.bf16.msra.mxu0 0
  %524 = vmatprep.subr.bf16.mxu0 0
  %525 = vmatpush1.bf16.msra.mxu0 0
  %526 = vmatprep.subr.bf16.mxu0 0
  %527 = vmatpush1.bf16.msra.mxu0 0
  %528 = vmatprep.subr.bf16.mxu0 0
  %529 = vmatpush1.bf16.msra.mxu0 0
  %530 = vmatprep.subr.bf16.mxu0 0
  %531 = vmatpush1.bf16.msra.mxu0 0
  %532 = vmatprep.subr.bf16.mxu0 0
  %533 = vmatpush1.bf16.msra.mxu0 0
  %534 = vmatprep.subr.bf16.mxu0 0
  %535 = vmatpush1.bf16.msra.mxu0 0
  %536 = vmatprep.subr.bf16.mxu0 0
  %537 = vmatpush1.bf16.msra.mxu0 0
  %538 = vmatprep.subr.bf16.mxu0 0
  %539 = vmatpush1.bf16.msra.mxu0 0
  %540 = vmatprep.subr.bf16.mxu0 0
  %541 = vmatpush1.bf16.msra.mxu0 0
  %542 = vmatprep.subr.bf16.mxu0 0
  %543 = vmatpush1.bf16.msra.mxu0 0
  %544 = vmatprep.subr.bf16.mxu0 0
  %545 = vmatpush1.bf16.msra.mxu0 0
  %546 = vmatprep.mubr.bf16.mxu0 0
  %547 = vmatmul.mubr.bf16.gmra.mrb[0].mxu0 %v512
  %v548 = vpop.f32.mrb[0].mxu0
  %v549 = vadd.f32 0.0, %v548
  %v550 = vpop.f32.mrb[0].mxu0
  %v551 = vpop.f32.mrb[0].mxu0
  %v552 = vpop.f32.mrb[0].mxu0
  %553 = vdwg.mxu0
  %v554 = vsel %vm302, %v509, 0.0
  %555 = vadd.xlane.f32.xlu0 %v554
  %v556 = vpop.xlane.xlu0 %555
  %v557 = vrcp.pop %v556
  %v558 = vmul.f32 1.0, %v557
  %v559 = vmul.f32 %v549, %v558
  %v560 = vadd.f32 %v559, %v367
  %v561 = vmul.f32 %v509, %v558
  %563 = vrot.lane.b32.xlu0 %v561, 8
  %v564 = vpop.permute.xlu0 %563
  %vm566 = vcmask 130112
  %567 = vst.msk [vmem:[%s21] sm:$0xff] %vm566, %v564
  %v568 = vmul.f32 %v476, %v501
  %v569 = vsel %vm302, %v568, -inf
  %570 = vmax.xlane.f32.xlu0 %v569
  %v571 = vpop.xlane.xlu0 %570
  %v572 = vsub.f32 %v568, %v571
  %v573 = vmul.f32 %v572, 1.442695
  %v574 = vpow.pop %v573
  %v575 = vsel %vm302, %v574, 0.0
  %576 = vadd.xlane.f32.xlu0 %v575
  %v577 = vpop.xlane.xlu0 %576
  %v578 = vlog2.pop %v577
  %v579 = vmul.f32 %v578, 0.6931472
  %v580 = vsub.f32 %v572, %v579
  %582 = vrot.lane.b32.xlu0 %v580, 8
  %v583 = vpop.permute.xlu0 %582
  %585 = vst.msk [vmem:[%s22] sm:$0xff] %vm566, %v583
  %v586 = vmul.f32 %v561, %v393
  %v587 = vadd.f32 %v386, %v586
  %v588 = vmul.f32 %v586, 2.0
  %v589 = vadd.f32 %v386, %v588
  %591 = vrot.lane.b32.xlu0 %v586, 8
  %v592 = vpop.permute.xlu0 %591
  %v594 = vmul.f32 %v492, %v592
  %v595 = vadd.f32 %v392, %v594
  %v596 = vsub.f32 1.0, %v561
  %v597 = vmul.f32 %v393, %v596
  %598 = vmatprep.subr.bf16.mxu0 0
  %599 = vmatpush1.bf16.msra.mxu0 %v164
  %600 = vmatprep.subr.bf16.mxu0 0
  %601 = vmatpush1.bf16.msra.mxu0 %v165
  %602 = vmatprep.subr.bf16.mxu0 0
  %603 = vmatpush1.bf16.msra.mxu0 0
  %604 = vmatprep.subr.bf16.mxu0 0
  %605 = vmatpush1.bf16.msra.mxu0 0
  %606 = vmatprep.subr.bf16.mxu0 0
  %607 = vmatpush1.bf16.msra.mxu0 0
  %608 = vmatprep.subr.bf16.mxu0 0
  %609 = vmatpush1.bf16.msra.mxu0 0
  %610 = vmatprep.subr.bf16.mxu0 0
  %611 = vmatpush1.bf16.msra.mxu0 0
  %612 = vmatprep.subr.bf16.mxu0 0
  %613 = vmatpush1.bf16.msra.mxu0 0
  %614 = vmatprep.subr.bf16.mxu0 0
  %615 = vmatpush1.bf16.msra.mxu0 0
  %616 = vmatprep.subr.bf16.mxu0 0
  %617 = vmatpush1.bf16.msra.mxu0 0
  %618 = vmatprep.subr.bf16.mxu0 0
  %619 = vmatpush1.bf16.msra.mxu0 0
  %620 = vmatprep.subr.bf16.mxu0 0
  %621 = vmatpush1.bf16.msra.mxu0 0
  %622 = vmatprep.subr.bf16.mxu0 0
  %623 = vmatpush1.bf16.msra.mxu0 0
  %624 = vmatprep.subr.bf16.mxu0 0
  %625 = vmatpush1.bf16.msra.mxu0 0
  %626 = vmatprep.subr.bf16.mxu0 0
  %627 = vmatpush1.bf16.msra.mxu0 0
  %628 = vmatprep.subr.bf16.mxu0 0
  %629 = vmatpush1.bf16.msra.mxu0 0
  %630 = vmatprep.mubr.bf16.mxu0 0
  %631 = vmatmul.mubr.bf16.gmra.mrb[0].mxu0 %v439
  %v632 = vpop.f32.mrb[0].mxu0
  %v633 = vadd.f32 0.0, %v632
  %v634 = vpop.f32.mrb[0].mxu0
  %v635 = vpop.f32.mrb[0].mxu0
  %v636 = vpop.f32.mrb[0].mxu0
  %637 = vdwg.mxu0
  %v638 = vadd.f32 %v560, %v633
  %v639 = vadd.f32 %v638, %v217
  %v640 = vtanh.pop %v639
  %v641 = vpack.c.bf16 %v640, %v640
  %v643 = vsel %vm168, %v641, 0
  %645 = vmatprep.subr.bf16.mxu0 0
  %646 = vmatpush1.bf16.msra.mxu0 %v236
  %647 = vmatprep.subr.bf16.mxu0 0
  %648 = vmatpush1.bf16.msra.mxu0 %v237
  %649 = vmatprep.subr.bf16.mxu0 0
  %650 = vmatpush1.bf16.msra.mxu0 0
  %651 = vmatprep.subr.bf16.mxu0 0
  %652 = vmatpush1.bf16.msra.mxu0 0
  %653 = vmatprep.subr.bf16.mxu0 0
  %654 = vmatpush1.bf16.msra.mxu0 0
  %655 = vmatprep.subr.bf16.mxu0 0
  %656 = vmatpush1.bf16.msra.mxu0 0
  %657 = vmatprep.subr.bf16.mxu0 0
  %658 = vmatpush1.bf16.msra.mxu0 0
  %659 = vmatprep.subr.bf16.mxu0 0
  %660 = vmatpush1.bf16.msra.mxu0 0
  %661 = vmatprep.subr.bf16.mxu0 0
  %662 = vmatpush1.bf16.msra.mxu0 0
  %663 = vmatprep.subr.bf16.mxu0 0
  %664 = vmatpush1.bf16.msra.mxu0 0
  %665 = vmatprep.subr.bf16.mxu0 0
  %666 = vmatpush1.bf16.msra.mxu0 0
  %667 = vmatprep.subr.bf16.mxu0 0
  %668 = vmatpush1.bf16.msra.mxu0 0
  %669 = vmatprep.subr.bf16.mxu0 0
  %670 = vmatpush1.bf16.msra.mxu0 0
  %671 = vmatprep.subr.bf16.mxu0 0
  %672 = vmatpush1.bf16.msra.mxu0 0
  %673 = vmatprep.subr.bf16.mxu0 0
  %674 = vmatpush1.bf16.msra.mxu0 0
  %675 = vmatprep.subr.bf16.mxu0 0
  %676 = vmatpush1.bf16.msra.mxu0 0
  %677 = vmatprep.mubr.bf16.mxu0 0
  %678 = vmatmul.mubr.bf16.gmra.mrb[0].mxu0 %v643
  %v679 = vpop.f32.mrb[0].mxu0
  %v680 = vadd.f32 %v226, %v679
  %v681 = vpop.f32.mrb[0].mxu0
  %v682 = vpop.f32.mrb[0].mxu0
  %v683 = vpop.f32.mrb[0].mxu0
  %684 = vdwg.mxu0
  %v685 = vmax.f32 %v680, 0.0
  %v686 = vand.u32 2147483647, %v680
  %v687 = vsub.f32 0.0, %v686
  %v688 = vmul.f32 %v687, 1.442695
  %v689 = vpow.pop %v688
  %v690 = vadd.f32 %v689, 1.0
  %v691 = vlog2.pop %v690
  %v692 = vmul.f32 %v691, 0.6931472
  %v693 = vadd.f32 %v685, %v692
  %v694 = vadd.f32 %v693, 0.1
  %v695 = vrcp.pop %v694
  %v696 = vmul.f32 1.0, %v695
  %697 = vrot.lane.b32.xlu0 %v135, 112
  %v698 = vpop.permute.xlu0 %697
  %v700 = vadd.f32 %v680, %v698
  %702 = vset.pattern.permute.xlu0 8
  %703 = vperm.xlu0 %702, %v694
  %v704 = vpop.permute.xlu0 %703
  %v706 = vmul.f32 %v700, %v704
  %v707 = vsel %vm302, %v706, -inf
  %708 = vmax.xlane.f32.xlu0 %v707
  %v709 = vpop.xlane.xlu0 %708
  %v710 = vsub.f32 %v706, %v709
  %v711 = vmul.f32 %v710, 1.442695
  %v712 = vpow.pop %v711
  %v713 = vpack.c.bf16 %v712, %v712
  %v715 = vsel %vm302, %v713, 0
  %717 = vmatprep.subr.bf16.mxu0 0
  %718 = vmatpush1.bf16.msra.mxu0 %v315
  %719 = vmatprep.subr.bf16.mxu0 0
  %720 = vmatpush1.bf16.msra.mxu0 0
  %721 = vmatprep.subr.bf16.mxu0 0
  %722 = vmatpush1.bf16.msra.mxu0 0
  %723 = vmatprep.subr.bf16.mxu0 0
  %724 = vmatpush1.bf16.msra.mxu0 0
  %725 = vmatprep.subr.bf16.mxu0 0
  %726 = vmatpush1.bf16.msra.mxu0 0
  %727 = vmatprep.subr.bf16.mxu0 0
  %728 = vmatpush1.bf16.msra.mxu0 0
  %729 = vmatprep.subr.bf16.mxu0 0
  %730 = vmatpush1.bf16.msra.mxu0 0
  %731 = vmatprep.subr.bf16.mxu0 0
  %732 = vmatpush1.bf16.msra.mxu0 0
  %733 = vmatprep.subr.bf16.mxu0 0
  %734 = vmatpush1.bf16.msra.mxu0 0
  %735 = vmatprep.subr.bf16.mxu0 0
  %736 = vmatpush1.bf16.msra.mxu0 0
  %737 = vmatprep.subr.bf16.mxu0 0
  %738 = vmatpush1.bf16.msra.mxu0 0
  %739 = vmatprep.subr.bf16.mxu0 0
  %740 = vmatpush1.bf16.msra.mxu0 0
  %741 = vmatprep.subr.bf16.mxu0 0
  %742 = vmatpush1.bf16.msra.mxu0 0
  %743 = vmatprep.subr.bf16.mxu0 0
  %744 = vmatpush1.bf16.msra.mxu0 0
  %745 = vmatprep.subr.bf16.mxu0 0
  %746 = vmatpush1.bf16.msra.mxu0 0
  %747 = vmatprep.subr.bf16.mxu0 0
  %748 = vmatpush1.bf16.msra.mxu0 0
  %749 = vmatprep.mubr.bf16.mxu0 0
  %750 = vmatmul.mubr.bf16.gmra.mrb[0].mxu0 %v715
  %v751 = vpop.f32.mrb[0].mxu0
  %v752 = vadd.f32 0.0, %v751
  %v753 = vpop.f32.mrb[0].mxu0
  %v754 = vpop.f32.mrb[0].mxu0
  %v755 = vpop.f32.mrb[0].mxu0
  %756 = vdwg.mxu0
  %v757 = vsel %vm302, %v712, 0.0
  %758 = vadd.xlane.f32.xlu0 %v757
  %v759 = vpop.xlane.xlu0 %758
  %v760 = vrcp.pop %v759
  %v761 = vmul.f32 1.0, %v760
  %v762 = vmul.f32 %v752, %v761
  %v763 = vadd.f32 %v762, %v367
  %v764 = vmul.f32 %v712, %v761
  %766 = vrot.lane.b32.xlu0 %v764, 16
  %v767 = vpop.permute.xlu0 %766
  %vm769 = vcmask 195712
  %770 = vst.msk [vmem:[%s21] sm:$0xff] %vm769, %v767
  %v771 = vmul.f32 %v680, %v704
  %v772 = vsel %vm302, %v771, -inf
  %773 = vmax.xlane.f32.xlu0 %v772
  %v774 = vpop.xlane.xlu0 %773
  %v775 = vsub.f32 %v771, %v774
  %v776 = vmul.f32 %v775, 1.442695
  %v777 = vpow.pop %v776
  %v778 = vsel %vm302, %v777, 0.0
  %779 = vadd.xlane.f32.xlu0 %v778
  %v780 = vpop.xlane.xlu0 %779
  %v781 = vlog2.pop %v780
  %v782 = vmul.f32 %v781, 0.6931472
  %v783 = vsub.f32 %v775, %v782
  %785 = vrot.lane.b32.xlu0 %v783, 16
  %v786 = vpop.permute.xlu0 %785
  %788 = vst.msk [vmem:[%s22] sm:$0xff] %vm769, %v786
  %v789 = vmul.f32 %v764, %v597
  %v790 = vadd.f32 %v587, %v789
  %v791 = vmul.f32 %v789, 3.0
  %v792 = vadd.f32 %v589, %v791
  %794 = vrot.lane.b32.xlu0 %v789, 8
  %v795 = vpop.permute.xlu0 %794
  %v797 = vmul.f32 %v696, %v795
  %v798 = vadd.f32 %v595, %v797
  %v799 = vsub.f32 1.0, %v764
  %v800 = vmul.f32 %v597, %v799
  %801 = vmatprep.subr.bf16.mxu0 0
  %802 = vmatpush1.bf16.msra.mxu0 %v164
  %803 = vmatprep.subr.bf16.mxu0 0
  %804 = vmatpush1.bf16.msra.mxu0 %v165
  %805 = vmatprep.subr.bf16.mxu0 0
  %806 = vmatpush1.bf16.msra.mxu0 0
  %807 = vmatprep.subr.bf16.mxu0 0
  %808 = vmatpush1.bf16.msra.mxu0 0
  %809 = vmatprep.subr.bf16.mxu0 0
  %810 = vmatpush1.bf16.msra.mxu0 0
  %811 = vmatprep.subr.bf16.mxu0 0
  %812 = vmatpush1.bf16.msra.mxu0 0
  %813 = vmatprep.subr.bf16.mxu0 0
  %814 = vmatpush1.bf16.msra.mxu0 0
  %815 = vmatprep.subr.bf16.mxu0 0
  %816 = vmatpush1.bf16.msra.mxu0 0
  %817 = vmatprep.subr.bf16.mxu0 0
  %818 = vmatpush1.bf16.msra.mxu0 0
  %819 = vmatprep.subr.bf16.mxu0 0
  %820 = vmatpush1.bf16.msra.mxu0 0
  %821 = vmatprep.subr.bf16.mxu0 0
  %822 = vmatpush1.bf16.msra.mxu0 0
  %823 = vmatprep.subr.bf16.mxu0 0
  %824 = vmatpush1.bf16.msra.mxu0 0
  %825 = vmatprep.subr.bf16.mxu0 0
  %826 = vmatpush1.bf16.msra.mxu0 0
  %827 = vmatprep.subr.bf16.mxu0 0
  %828 = vmatpush1.bf16.msra.mxu0 0
  %829 = vmatprep.subr.bf16.mxu0 0
  %830 = vmatpush1.bf16.msra.mxu0 0
  %831 = vmatprep.subr.bf16.mxu0 0
  %832 = vmatpush1.bf16.msra.mxu0 0
  %833 = vmatprep.mubr.bf16.mxu0 0
  %834 = vmatmul.mubr.bf16.gmra.mrb[0].mxu0 %v643
  %v835 = vpop.f32.mrb[0].mxu0
  %v836 = vadd.f32 0.0, %v835
  %v837 = vpop.f32.mrb[0].mxu0
  %v838 = vpop.f32.mrb[0].mxu0
  %v839 = vpop.f32.mrb[0].mxu0
  %840 = vdwg.mxu0
  %v841 = vadd.f32 %v763, %v836
  %v842 = vadd.f32 %v841, %v217
  %v843 = vtanh.pop %v842
  %v844 = vpack.c.bf16 %v843, %v843
  %v846 = vsel %vm168, %v844, 0
  %848 = vmatprep.subr.bf16.mxu0 0
  %849 = vmatpush1.bf16.msra.mxu0 %v236
  %850 = vmatprep.subr.bf16.mxu0 0
  %851 = vmatpush1.bf16.msra.mxu0 %v237
  %852 = vmatprep.subr.bf16.mxu0 0
  %853 = vmatpush1.bf16.msra.mxu0 0
  %854 = vmatprep.subr.bf16.mxu0 0
  %855 = vmatpush1.bf16.msra.mxu0 0
  %856 = vmatprep.subr.bf16.mxu0 0
  %857 = vmatpush1.bf16.msra.mxu0 0
  %858 = vmatprep.subr.bf16.mxu0 0
  %859 = vmatpush1.bf16.msra.mxu0 0
  %860 = vmatprep.subr.bf16.mxu0 0
  %861 = vmatpush1.bf16.msra.mxu0 0
  %862 = vmatprep.subr.bf16.mxu0 0
  %863 = vmatpush1.bf16.msra.mxu0 0
  %864 = vmatprep.subr.bf16.mxu0 0
  %865 = vmatpush1.bf16.msra.mxu0 0
  %866 = vmatprep.subr.bf16.mxu0 0
  %867 = vmatpush1.bf16.msra.mxu0 0
  %868 = vmatprep.subr.bf16.mxu0 0
  %869 = vmatpush1.bf16.msra.mxu0 0
  %870 = vmatprep.subr.bf16.mxu0 0
  %871 = vmatpush1.bf16.msra.mxu0 0
  %872 = vmatprep.subr.bf16.mxu0 0
  %873 = vmatpush1.bf16.msra.mxu0 0
  %874 = vmatprep.subr.bf16.mxu0 0
  %875 = vmatpush1.bf16.msra.mxu0 0
  %876 = vmatprep.subr.bf16.mxu0 0
  %877 = vmatpush1.bf16.msra.mxu0 0
  %878 = vmatprep.subr.bf16.mxu0 0
  %879 = vmatpush1.bf16.msra.mxu0 0
  %880 = vmatprep.mubr.bf16.mxu0 0
  %881 = vmatmul.mubr.bf16.gmra.mrb[0].mxu0 %v846
  %v882 = vpop.f32.mrb[0].mxu0
  %v883 = vadd.f32 %v226, %v882
  %v884 = vpop.f32.mrb[0].mxu0
  %v885 = vpop.f32.mrb[0].mxu0
  %v886 = vpop.f32.mrb[0].mxu0
  %887 = vdwg.mxu0
  %v888 = vmax.f32 %v883, 0.0
  %v889 = vand.u32 2147483647, %v883
  %v890 = vsub.f32 0.0, %v889
  %v891 = vmul.f32 %v890, 1.442695
  %v892 = vpow.pop %v891
  %v893 = vadd.f32 %v892, 1.0
  %v894 = vlog2.pop %v893
  %v895 = vmul.f32 %v894, 0.6931472
  %v896 = vadd.f32 %v888, %v895
  %v897 = vadd.f32 %v896, 0.1
  %v898 = vrcp.pop %v897
  %v899 = vmul.f32 1.0, %v898
  %900 = vrot.lane.b32.xlu0 %v135, 104
  %v901 = vpop.permute.xlu0 %900
  %v903 = vadd.f32 %v883, %v901
  %905 = vset.pattern.permute.xlu0 8
  %906 = vperm.xlu0 %905, %v897
  %v907 = vpop.permute.xlu0 %906
  %v909 = vmul.f32 %v903, %v907
  %v910 = vsel %vm302, %v909, -inf
  %911 = vmax.xlane.f32.xlu0 %v910
  %v912 = vpop.xlane.xlu0 %911
  %v913 = vsub.f32 %v909, %v912
  %v914 = vmul.f32 %v913, 1.442695
  %v915 = vpow.pop %v914
  %v916 = vpack.c.bf16 %v915, %v915
  %v918 = vsel %vm302, %v916, 0
  %920 = vmatprep.subr.bf16.mxu0 0
  %921 = vmatpush1.bf16.msra.mxu0 %v315
  %922 = vmatprep.subr.bf16.mxu0 0
  %923 = vmatpush1.bf16.msra.mxu0 0
  %924 = vmatprep.subr.bf16.mxu0 0
  %925 = vmatpush1.bf16.msra.mxu0 0
  %926 = vmatprep.subr.bf16.mxu0 0
  %927 = vmatpush1.bf16.msra.mxu0 0
  %928 = vmatprep.subr.bf16.mxu0 0
  %929 = vmatpush1.bf16.msra.mxu0 0
  %930 = vmatprep.subr.bf16.mxu0 0
  %931 = vmatpush1.bf16.msra.mxu0 0
  %932 = vmatprep.subr.bf16.mxu0 0
  %933 = vmatpush1.bf16.msra.mxu0 0
  %934 = vmatprep.subr.bf16.mxu0 0
  %935 = vmatpush1.bf16.msra.mxu0 0
  %936 = vmatprep.subr.bf16.mxu0 0
  %937 = vmatpush1.bf16.msra.mxu0 0
  %938 = vmatprep.subr.bf16.mxu0 0
  %939 = vmatpush1.bf16.msra.mxu0 0
  %940 = vmatprep.subr.bf16.mxu0 0
  %941 = vmatpush1.bf16.msra.mxu0 0
  %942 = vmatprep.subr.bf16.mxu0 0
  %943 = vmatpush1.bf16.msra.mxu0 0
  %944 = vmatprep.subr.bf16.mxu0 0
  %945 = vmatpush1.bf16.msra.mxu0 0
  %946 = vmatprep.subr.bf16.mxu0 0
  %947 = vmatpush1.bf16.msra.mxu0 0
  %948 = vmatprep.subr.bf16.mxu0 0
  %949 = vmatpush1.bf16.msra.mxu0 0
  %950 = vmatprep.subr.bf16.mxu0 0
  %951 = vmatpush1.bf16.msra.mxu0 0
  %952 = vmatprep.mubr.bf16.mxu0 0
  %953 = vmatmul.mubr.bf16.gmra.mrb[0].mxu0 %v918
  %v954 = vpop.f32.mrb[0].mxu0
  %v955 = vadd.f32 0.0, %v954
  %v956 = vpop.f32.mrb[0].mxu0
  %v957 = vpop.f32.mrb[0].mxu0
  %v958 = vpop.f32.mrb[0].mxu0
  %959 = vdwg.mxu0
  %v960 = vsel %vm302, %v915, 0.0
  %961 = vadd.xlane.f32.xlu0 %v960
  %v962 = vpop.xlane.xlu0 %961
  %v963 = vrcp.pop %v962
  %v964 = vmul.f32 1.0, %v963
  %v965 = vmul.f32 %v955, %v964
  %v966 = vadd.f32 %v965, %v367
  %v967 = vmul.f32 %v915, %v964
  %969 = vrot.lane.b32.xlu0 %v967, 24
  %v970 = vpop.permute.xlu0 %969
  %vm972 = vcmask 261312
  %973 = vst.msk [vmem:[%s21] sm:$0xff] %vm972, %v970
  %v974 = vmul.f32 %v883, %v907
  %v975 = vsel %vm302, %v974, -inf
  %976 = vmax.xlane.f32.xlu0 %v975
  %v977 = vpop.xlane.xlu0 %976
  %v978 = vsub.f32 %v974, %v977
  %v979 = vmul.f32 %v978, 1.442695
  %v980 = vpow.pop %v979
  %v981 = vsel %vm302, %v980, 0.0
  %982 = vadd.xlane.f32.xlu0 %v981
  %v983 = vpop.xlane.xlu0 %982
  %v984 = vlog2.pop %v983
  %v985 = vmul.f32 %v984, 0.6931472
  %v986 = vsub.f32 %v978, %v985
  %988 = vrot.lane.b32.xlu0 %v986, 24
  %v989 = vpop.permute.xlu0 %988
  %991 = vst.msk [vmem:[%s22] sm:$0xff] %vm972, %v989
  %v992 = vmul.f32 %v967, %v800
  %v993 = vadd.f32 %v790, %v992
  %v994 = vmul.f32 %v992, 4.0
  %v995 = vadd.f32 %v792, %v994
  %997 = vrot.lane.b32.xlu0 %v992, 8
  %v998 = vpop.permute.xlu0 %997
  %v1000 = vmul.f32 %v899, %v998
  %v1001 = vadd.f32 %v798, %v1000
  %v1002 = vsub.f32 1.0, %v967
  %v1003 = vmul.f32 %v800, %v1002
  %1004 = vmatprep.subr.bf16.mxu0 0
  %1005 = vmatpush1.bf16.msra.mxu0 %v164
  %1006 = vmatprep.subr.bf16.mxu0 0
  %1007 = vmatpush1.bf16.msra.mxu0 %v165
  %1008 = vmatprep.subr.bf16.mxu0 0
  %1009 = vmatpush1.bf16.msra.mxu0 0
  %1010 = vmatprep.subr.bf16.mxu0 0
  %1011 = vmatpush1.bf16.msra.mxu0 0
  %1012 = vmatprep.subr.bf16.mxu0 0
  %1013 = vmatpush1.bf16.msra.mxu0 0
  %1014 = vmatprep.subr.bf16.mxu0 0
  %1015 = vmatpush1.bf16.msra.mxu0 0
  %1016 = vmatprep.subr.bf16.mxu0 0
  %1017 = vmatpush1.bf16.msra.mxu0 0
  %1018 = vmatprep.subr.bf16.mxu0 0
  %1019 = vmatpush1.bf16.msra.mxu0 0
  %1020 = vmatprep.subr.bf16.mxu0 0
  %1021 = vmatpush1.bf16.msra.mxu0 0
  %1022 = vmatprep.subr.bf16.mxu0 0
  %1023 = vmatpush1.bf16.msra.mxu0 0
  %1024 = vmatprep.subr.bf16.mxu0 0
  %1025 = vmatpush1.bf16.msra.mxu0 0
  %1026 = vmatprep.subr.bf16.mxu0 0
  %1027 = vmatpush1.bf16.msra.mxu0 0
  %1028 = vmatprep.subr.bf16.mxu0 0
  %1029 = vmatpush1.bf16.msra.mxu0 0
  %1030 = vmatprep.subr.bf16.mxu0 0
  %1031 = vmatpush1.bf16.msra.mxu0 0
  %1032 = vmatprep.subr.bf16.mxu0 0
  %1033 = vmatpush1.bf16.msra.mxu0 0
  %1034 = vmatprep.subr.bf16.mxu0 0
  %1035 = vmatpush1.bf16.msra.mxu0 0
  %1036 = vmatprep.mubr.bf16.mxu0 0
  %1037 = vmatmul.mubr.bf16.gmra.mrb[0].mxu0 %v846
  %v1038 = vpop.f32.mrb[0].mxu0
  %v1039 = vadd.f32 0.0, %v1038
  %v1040 = vpop.f32.mrb[0].mxu0
  %v1041 = vpop.f32.mrb[0].mxu0
  %v1042 = vpop.f32.mrb[0].mxu0
  %1043 = vdwg.mxu0
  %v1044 = vadd.f32 %v966, %v1039
  %v1045 = vadd.f32 %v1044, %v217
  %v1046 = vtanh.pop %v1045
  %v1047 = vpack.c.bf16 %v1046, %v1046
  %v1049 = vsel %vm168, %v1047, 0
  %1051 = vmatprep.subr.bf16.mxu0 0
  %1052 = vmatpush1.bf16.msra.mxu0 %v236
  %1053 = vmatprep.subr.bf16.mxu0 0
  %1054 = vmatpush1.bf16.msra.mxu0 %v237
  %1055 = vmatprep.subr.bf16.mxu0 0
  %1056 = vmatpush1.bf16.msra.mxu0 0
  %1057 = vmatprep.subr.bf16.mxu0 0
  %1058 = vmatpush1.bf16.msra.mxu0 0
  %1059 = vmatprep.subr.bf16.mxu0 0
  %1060 = vmatpush1.bf16.msra.mxu0 0
  %1061 = vmatprep.subr.bf16.mxu0 0
  %1062 = vmatpush1.bf16.msra.mxu0 0
  %1063 = vmatprep.subr.bf16.mxu0 0
  %1064 = vmatpush1.bf16.msra.mxu0 0
  %1065 = vmatprep.subr.bf16.mxu0 0
  %1066 = vmatpush1.bf16.msra.mxu0 0
  %1067 = vmatprep.subr.bf16.mxu0 0
  %1068 = vmatpush1.bf16.msra.mxu0 0
  %1069 = vmatprep.subr.bf16.mxu0 0
  %1070 = vmatpush1.bf16.msra.mxu0 0
  %1071 = vmatprep.subr.bf16.mxu0 0
  %1072 = vmatpush1.bf16.msra.mxu0 0
  %1073 = vmatprep.subr.bf16.mxu0 0
  %1074 = vmatpush1.bf16.msra.mxu0 0
  %1075 = vmatprep.subr.bf16.mxu0 0
  %1076 = vmatpush1.bf16.msra.mxu0 0
  %1077 = vmatprep.subr.bf16.mxu0 0
  %1078 = vmatpush1.bf16.msra.mxu0 0
  %1079 = vmatprep.subr.bf16.mxu0 0
  %1080 = vmatpush1.bf16.msra.mxu0 0
  %1081 = vmatprep.subr.bf16.mxu0 0
  %1082 = vmatpush1.bf16.msra.mxu0 0
  %1083 = vmatprep.mubr.bf16.mxu0 0
  %1084 = vmatmul.mubr.bf16.gmra.mrb[0].mxu0 %v1049
  %v1085 = vpop.f32.mrb[0].mxu0
  %v1086 = vadd.f32 %v226, %v1085
  %v1087 = vpop.f32.mrb[0].mxu0
  %v1088 = vpop.f32.mrb[0].mxu0
  %v1089 = vpop.f32.mrb[0].mxu0
  %1090 = vdwg.mxu0
  %v1091 = vmax.f32 %v1086, 0.0
  %v1092 = vand.u32 2147483647, %v1086
  %v1093 = vsub.f32 0.0, %v1092
  %v1094 = vmul.f32 %v1093, 1.442695
  %v1095 = vpow.pop %v1094
  %v1096 = vadd.f32 %v1095, 1.0
  %v1097 = vlog2.pop %v1096
  %v1098 = vmul.f32 %v1097, 0.6931472
  %v1099 = vadd.f32 %v1091, %v1098
  %v1100 = vadd.f32 %v1099, 0.1
  %v1101 = vrcp.pop %v1100
  %v1102 = vmul.f32 1.0, %v1101
  %1103 = vrot.lane.b32.xlu0 %v135, 96
  %v1104 = vpop.permute.xlu0 %1103
  %v1106 = vadd.f32 %v1086, %v1104
  %1108 = vset.pattern.permute.xlu0 8
  %1109 = vperm.xlu0 %1108, %v1100
  %v1110 = vpop.permute.xlu0 %1109
  %v1112 = vmul.f32 %v1106, %v1110
  %v1113 = vsel %vm302, %v1112, -inf
  %1114 = vmax.xlane.f32.xlu0 %v1113
  %v1115 = vpop.xlane.xlu0 %1114
  %v1116 = vsub.f32 %v1112, %v1115
  %v1117 = vmul.f32 %v1116, 1.442695
  %v1118 = vpow.pop %v1117
  %v1119 = vpack.c.bf16 %v1118, %v1118
  %v1121 = vsel %vm302, %v1119, 0
  %1123 = vmatprep.subr.bf16.mxu0 0
  %1124 = vmatpush1.bf16.msra.mxu0 %v315
  %1125 = vmatprep.subr.bf16.mxu0 0
  %1126 = vmatpush1.bf16.msra.mxu0 0
  %1127 = vmatprep.subr.bf16.mxu0 0
  %1128 = vmatpush1.bf16.msra.mxu0 0
  %1129 = vmatprep.subr.bf16.mxu0 0
  %1130 = vmatpush1.bf16.msra.mxu0 0
  %1131 = vmatprep.subr.bf16.mxu0 0
  %1132 = vmatpush1.bf16.msra.mxu0 0
  %1133 = vmatprep.subr.bf16.mxu0 0
  %1134 = vmatpush1.bf16.msra.mxu0 0
  %1135 = vmatprep.subr.bf16.mxu0 0
  %1136 = vmatpush1.bf16.msra.mxu0 0
  %1137 = vmatprep.subr.bf16.mxu0 0
  %1138 = vmatpush1.bf16.msra.mxu0 0
  %1139 = vmatprep.subr.bf16.mxu0 0
  %1140 = vmatpush1.bf16.msra.mxu0 0
  %1141 = vmatprep.subr.bf16.mxu0 0
  %1142 = vmatpush1.bf16.msra.mxu0 0
  %1143 = vmatprep.subr.bf16.mxu0 0
  %1144 = vmatpush1.bf16.msra.mxu0 0
  %1145 = vmatprep.subr.bf16.mxu0 0
  %1146 = vmatpush1.bf16.msra.mxu0 0
  %1147 = vmatprep.subr.bf16.mxu0 0
  %1148 = vmatpush1.bf16.msra.mxu0 0
  %1149 = vmatprep.subr.bf16.mxu0 0
  %1150 = vmatpush1.bf16.msra.mxu0 0
  %1151 = vmatprep.subr.bf16.mxu0 0
  %1152 = vmatpush1.bf16.msra.mxu0 0
  %1153 = vmatprep.subr.bf16.mxu0 0
  %1154 = vmatpush1.bf16.msra.mxu0 0
  %1155 = vmatprep.mubr.bf16.mxu0 0
  %1156 = vmatmul.mubr.bf16.gmra.mrb[0].mxu0 %v1121
  %v1157 = vpop.f32.mrb[0].mxu0
  %v1158 = vadd.f32 0.0, %v1157
  %v1159 = vpop.f32.mrb[0].mxu0
  %v1160 = vpop.f32.mrb[0].mxu0
  %v1161 = vpop.f32.mrb[0].mxu0
  %1162 = vdwg.mxu0
  %v1163 = vsel %vm302, %v1118, 0.0
  %1164 = vadd.xlane.f32.xlu0 %v1163
  %v1165 = vpop.xlane.xlu0 %1164
  %v1166 = vrcp.pop %v1165
  %v1167 = vmul.f32 1.0, %v1166
  %v1168 = vmul.f32 %v1158, %v1167
  %v1169 = vadd.f32 %v1168, %v367
  %v1170 = vmul.f32 %v1118, %v1167
  %1172 = vrot.lane.b32.xlu0 %v1170, 32
  %v1173 = vpop.permute.xlu0 %1172
  %vm1175 = vcmask 326912
  %1176 = vst.msk [vmem:[%s21] sm:$0xff] %vm1175, %v1173
  %v1177 = vmul.f32 %v1086, %v1110
  %v1178 = vsel %vm302, %v1177, -inf
  %1179 = vmax.xlane.f32.xlu0 %v1178
  %v1180 = vpop.xlane.xlu0 %1179
  %v1181 = vsub.f32 %v1177, %v1180
  %v1182 = vmul.f32 %v1181, 1.442695
  %v1183 = vpow.pop %v1182
  %v1184 = vsel %vm302, %v1183, 0.0
  %1185 = vadd.xlane.f32.xlu0 %v1184
  %v1186 = vpop.xlane.xlu0 %1185
  %v1187 = vlog2.pop %v1186
  %v1188 = vmul.f32 %v1187, 0.6931472
  %v1189 = vsub.f32 %v1181, %v1188
  %1191 = vrot.lane.b32.xlu0 %v1189, 32
  %v1192 = vpop.permute.xlu0 %1191
  %1194 = vst.msk [vmem:[%s22] sm:$0xff] %vm1175, %v1192
  %v1195 = vmul.f32 %v1170, %v1003
  %v1196 = vadd.f32 %v993, %v1195
  %v1197 = vmul.f32 %v1195, 5.0
  %v1198 = vadd.f32 %v995, %v1197
  %1200 = vrot.lane.b32.xlu0 %v1195, 8
  %v1201 = vpop.permute.xlu0 %1200
  %v1203 = vmul.f32 %v1102, %v1201
  %v1204 = vadd.f32 %v1001, %v1203
  %v1205 = vsub.f32 1.0, %v1170
  %v1206 = vmul.f32 %v1003, %v1205
  %1207 = vmatprep.subr.bf16.mxu0 0
  %1208 = vmatpush1.bf16.msra.mxu0 %v164
  %1209 = vmatprep.subr.bf16.mxu0 0
  %1210 = vmatpush1.bf16.msra.mxu0 %v165
  %1211 = vmatprep.subr.bf16.mxu0 0
  %1212 = vmatpush1.bf16.msra.mxu0 0
  %1213 = vmatprep.subr.bf16.mxu0 0
  %1214 = vmatpush1.bf16.msra.mxu0 0
  %1215 = vmatprep.subr.bf16.mxu0 0
  %1216 = vmatpush1.bf16.msra.mxu0 0
  %1217 = vmatprep.subr.bf16.mxu0 0
  %1218 = vmatpush1.bf16.msra.mxu0 0
  %1219 = vmatprep.subr.bf16.mxu0 0
  %1220 = vmatpush1.bf16.msra.mxu0 0
  %1221 = vmatprep.subr.bf16.mxu0 0
  %1222 = vmatpush1.bf16.msra.mxu0 0
  %1223 = vmatprep.subr.bf16.mxu0 0
  %1224 = vmatpush1.bf16.msra.mxu0 0
  %1225 = vmatprep.subr.bf16.mxu0 0
  %1226 = vmatpush1.bf16.msra.mxu0 0
  %1227 = vmatprep.subr.bf16.mxu0 0
  %1228 = vmatpush1.bf16.msra.mxu0 0
  %1229 = vmatprep.subr.bf16.mxu0 0
  %1230 = vmatpush1.bf16.msra.mxu0 0
  %1231 = vmatprep.subr.bf16.mxu0 0
  %1232 = vmatpush1.bf16.msra.mxu0 0
  %1233 = vmatprep.subr.bf16.mxu0 0
  %1234 = vmatpush1.bf16.msra.mxu0 0
  %1235 = vmatprep.subr.bf16.mxu0 0
  %1236 = vmatpush1.bf16.msra.mxu0 0
  %1237 = vmatprep.subr.bf16.mxu0 0
  %1238 = vmatpush1.bf16.msra.mxu0 0
  %1239 = vmatprep.mubr.bf16.mxu0 0
  %1240 = vmatmul.mubr.bf16.gmra.mrb[0].mxu0 %v1049
  %v1241 = vpop.f32.mrb[0].mxu0
  %v1242 = vadd.f32 0.0, %v1241
  %v1243 = vpop.f32.mrb[0].mxu0
  %v1244 = vpop.f32.mrb[0].mxu0
  %v1245 = vpop.f32.mrb[0].mxu0
  %1246 = vdwg.mxu0
  %v1247 = vadd.f32 %v1169, %v1242
  %v1248 = vadd.f32 %v1247, %v217
  %v1249 = vtanh.pop %v1248
  %v1250 = vpack.c.bf16 %v1249, %v1249
  %v1252 = vsel %vm168, %v1250, 0
  %1254 = vmatprep.subr.bf16.mxu0 0
  %1255 = vmatpush1.bf16.msra.mxu0 %v236
  %1256 = vmatprep.subr.bf16.mxu0 0
  %1257 = vmatpush1.bf16.msra.mxu0 %v237
  %1258 = vmatprep.subr.bf16.mxu0 0
  %1259 = vmatpush1.bf16.msra.mxu0 0
  %1260 = vmatprep.subr.bf16.mxu0 0
  %1261 = vmatpush1.bf16.msra.mxu0 0
  %1262 = vmatprep.subr.bf16.mxu0 0
  %1263 = vmatpush1.bf16.msra.mxu0 0
  %1264 = vmatprep.subr.bf16.mxu0 0
  %1265 = vmatpush1.bf16.msra.mxu0 0
  %1266 = vmatprep.subr.bf16.mxu0 0
  %1267 = vmatpush1.bf16.msra.mxu0 0
  %1268 = vmatprep.subr.bf16.mxu0 0
  %1269 = vmatpush1.bf16.msra.mxu0 0
  %1270 = vmatprep.subr.bf16.mxu0 0
  %1271 = vmatpush1.bf16.msra.mxu0 0
  %1272 = vmatprep.subr.bf16.mxu0 0
  %1273 = vmatpush1.bf16.msra.mxu0 0
  %1274 = vmatprep.subr.bf16.mxu0 0
  %1275 = vmatpush1.bf16.msra.mxu0 0
  %1276 = vmatprep.subr.bf16.mxu0 0
  %1277 = vmatpush1.bf16.msra.mxu0 0
  %1278 = vmatprep.subr.bf16.mxu0 0
  %1279 = vmatpush1.bf16.msra.mxu0 0
  %1280 = vmatprep.subr.bf16.mxu0 0
  %1281 = vmatpush1.bf16.msra.mxu0 0
  %1282 = vmatprep.subr.bf16.mxu0 0
  %1283 = vmatpush1.bf16.msra.mxu0 0
  %1284 = vmatprep.subr.bf16.mxu0 0
  %1285 = vmatpush1.bf16.msra.mxu0 0
  %1286 = vmatprep.mubr.bf16.mxu0 0
  %1287 = vmatmul.mubr.bf16.gmra.mrb[0].mxu0 %v1252
  %v1288 = vpop.f32.mrb[0].mxu0
  %v1289 = vadd.f32 %v226, %v1288
  %v1290 = vpop.f32.mrb[0].mxu0
  %v1291 = vpop.f32.mrb[0].mxu0
  %v1292 = vpop.f32.mrb[0].mxu0
  %1293 = vdwg.mxu0
  %v1294 = vmax.f32 %v1289, 0.0
  %v1295 = vand.u32 2147483647, %v1289
  %v1296 = vsub.f32 0.0, %v1295
  %v1297 = vmul.f32 %v1296, 1.442695
  %v1298 = vpow.pop %v1297
  %v1299 = vadd.f32 %v1298, 1.0
  %v1300 = vlog2.pop %v1299
  %v1301 = vmul.f32 %v1300, 0.6931472
  %v1302 = vadd.f32 %v1294, %v1301
  %v1303 = vadd.f32 %v1302, 0.1
  %v1304 = vrcp.pop %v1303
  %v1305 = vmul.f32 1.0, %v1304
  %1306 = vrot.lane.b32.xlu0 %v135, 88
  %v1307 = vpop.permute.xlu0 %1306
  %v1309 = vadd.f32 %v1289, %v1307
  %1311 = vset.pattern.permute.xlu0 8
  %1312 = vperm.xlu0 %1311, %v1303
  %v1313 = vpop.permute.xlu0 %1312
  %v1315 = vmul.f32 %v1309, %v1313
  %v1316 = vsel %vm302, %v1315, -inf
  %1317 = vmax.xlane.f32.xlu0 %v1316
  %v1318 = vpop.xlane.xlu0 %1317
  %v1319 = vsub.f32 %v1315, %v1318
  %v1320 = vmul.f32 %v1319, 1.442695
  %v1321 = vpow.pop %v1320
  %v1322 = vsel %vm302, %v1321, 0.0
  %1323 = vadd.xlane.f32.xlu0 %v1322
  %v1324 = vpop.xlane.xlu0 %1323
  %v1325 = vrcp.pop %v1324
  %v1326 = vmul.f32 1.0, %v1325
  %v1327 = vmul.f32 %v1321, %v1326
  %1329 = vrot.lane.b32.xlu0 %v1327, 40
  %v1330 = vpop.permute.xlu0 %1329
  %vm1332 = vcmask 392512
  %1333 = vst.msk [vmem:[%s21] sm:$0xff] %vm1332, %v1330
  %v1334 = vmul.f32 %v1289, %v1313
  %v1335 = vsel %vm302, %v1334, -inf
  %1336 = vmax.xlane.f32.xlu0 %v1335
  %v1337 = vpop.xlane.xlu0 %1336
  %v1338 = vsub.f32 %v1334, %v1337
  %v1339 = vmul.f32 %v1338, 1.442695
  %v1340 = vpow.pop %v1339
  %v1341 = vsel %vm302, %v1340, 0.0
  %1342 = vadd.xlane.f32.xlu0 %v1341
  %v1343 = vpop.xlane.xlu0 %1342
  %v1344 = vlog2.pop %v1343
  %v1345 = vmul.f32 %v1344, 0.6931472
  %v1346 = vsub.f32 %v1338, %v1345
  %1348 = vrot.lane.b32.xlu0 %v1346, 40
  %v1349 = vpop.permute.xlu0 %1348
  %1351 = vst.msk [vmem:[%s22] sm:$0xff] %vm1332, %v1349
  %v1352 = vmul.f32 %v1327, %v1206
  %v1353 = vadd.f32 %v1196, %v1352
  %v1354 = vmul.f32 %v1352, 6.0
  %v1355 = vadd.f32 %v1198, %v1354
  %1357 = vrot.lane.b32.xlu0 %v1352, 8
  %v1358 = vpop.permute.xlu0 %1357
  %v1360 = vmul.f32 %v1305, %v1358
  %v1361 = vadd.f32 %v1204, %v1360
  %v1362 = vsub.f32 1.0, %v1327
  %v1363 = vmul.f32 %v1206, %v1362
  %v1364 = vlaneseq
  %v1365 = vand.u32 %v1364, 127
  %vm1366 = vcmp.eq.s32.totalorder %v1365, 0
  %v1367 = vsel %vm1366, 1, 0
  %v1368 = vcvt.s32.f32 %v1367
  %1370 = vrot.lane.b32.xlu0 %v1368, 48
  %v1371 = vpop.permute.xlu0 %1370
  %vm1373 = vcmask 458112
  %1374 = vst.msk [vmem:[%s21] sm:$0xff] %vm1373, %v1371
  %v1375 = vsel %vm1366, 0.0, -inf
  %1377 = vrot.lane.b32.xlu0 %v1375, 48
  %v1378 = vpop.permute.xlu0 %1377
  %1380 = vst.msk [vmem:[%s22] sm:$0xff] %vm1373, %v1378
  %v1381 = vadd.f32 %v1353, %v1363
  %v1382 = vmul.f32 %v1363, 7.0
  %v1383 = vadd.f32 %v1355, %v1382
  %1385 = vrot.lane.b32.xlu0 %v1363, 8
  %v1386 = vpop.permute.xlu0 %1385
  %v1388 = vmul.f32 %v1305, %v1386
  %v1389 = vadd.f32 %v1361, %v1388
  %v1390 = vld [vmem:[%s3] sm:$0xff]
  %1391 = vset.pattern.permute.xlu0 0
  %1392 = vperm.xlu0 %1391, %v1390
  %v1393 = vpop.permute.xlu0 %1392
  %vm1394 = vcmp.eq.s32.totalorder %v1365, %v1393
  %v1395 = vsel %vm1394, 1, 0
  %v1396 = vcvt.s32.f32 %v1395
  %v1397 = vld [vmem:[%s2] sm:$0xff]
  %v1398 = vpack.c.bf16 %v1397, %v1397
  %v1399 = vld [vmem:[%s13] sm:$0xf]
  %v1400 = vld [vmem:[%s13 + $0x4] sm:$0xf]
  %v1401 = vld [vmem:[%s13 + $0x8] sm:$0xf]
  %v1402 = vld [vmem:[%s13 + $0xc] sm:$0xf]
  %v1403 = vld [vmem:[%s13 + $0x10] sm:$0xf]
  %v1404 = vld [vmem:[%s13 + $0x14] sm:$0xf]
  %v1405 = vld [vmem:[%s13 + $0x18] sm:$0xf]
  %v1406 = vld [vmem:[%s13 + $0x1c] sm:$0xf]
  %v1407 = vld [vmem:[%s14] sm:$0x1]
  %v1409 = vlaneseq
  %v1410 = vshrl.u32 %v1409, 7
  %v1411 = vsub.s32 0, %v1410
  %v1412 = vrot.slane %v1407, %v1411
  %v1422 = vunpack.c.l.b16 %v1399
  %v1423 = vunpack.c.l.b16 %v1400
  %v1424 = vunpack.c.l.b16 %v1401
  %v1425 = vunpack.c.l.b16 %v1402
  %v1426 = vunpack.c.l.b16 %v1403
  %v1427 = vunpack.c.l.b16 %v1404
  %v1428 = vunpack.c.l.b16 %v1405
  %v1429 = vunpack.c.l.b16 %v1406
  %v1430 = vpack.c.b16 %v1423, %v1422
  %v1431 = vpack.c.b16 %v1425, %v1424
  %v1432 = vpack.c.b16 %v1427, %v1426
  %v1433 = vpack.c.b16 %v1429, %v1428
  %vm1438 = vcmask 523264
  %v1440 = vsel %vm1438, %v1398, 0
  %1442 = vmatprep.subr.bf16.mxu0 0
  %1443 = vmatpush1.bf16.msra.mxu0 %v1430
  %1444 = vmatprep.subr.bf16.mxu0 0
  %1445 = vmatpush1.bf16.msra.mxu0 %v1431
  %1446 = vmatprep.subr.bf16.mxu0 0
  %1447 = vmatpush1.bf16.msra.mxu0 %v1432
  %1448 = vmatprep.subr.bf16.mxu0 0
  %1449 = vmatpush1.bf16.msra.mxu0 %v1433
  %1450 = vmatprep.subr.bf16.mxu0 0
  %1451 = vmatpush1.bf16.msra.mxu0 0
  %1452 = vmatprep.subr.bf16.mxu0 0
  %1453 = vmatpush1.bf16.msra.mxu0 0
  %1454 = vmatprep.subr.bf16.mxu0 0
  %1455 = vmatpush1.bf16.msra.mxu0 0
  %1456 = vmatprep.subr.bf16.mxu0 0
  %1457 = vmatpush1.bf16.msra.mxu0 0
  %1458 = vmatprep.subr.bf16.mxu0 0
  %1459 = vmatpush1.bf16.msra.mxu0 0
  %1460 = vmatprep.subr.bf16.mxu0 0
  %1461 = vmatpush1.bf16.msra.mxu0 0
  %1462 = vmatprep.subr.bf16.mxu0 0
  %1463 = vmatpush1.bf16.msra.mxu0 0
  %1464 = vmatprep.subr.bf16.mxu0 0
  %1465 = vmatpush1.bf16.msra.mxu0 0
  %1466 = vmatprep.subr.bf16.mxu0 0
  %1467 = vmatpush1.bf16.msra.mxu0 0
  %1468 = vmatprep.subr.bf16.mxu0 0
  %1469 = vmatpush1.bf16.msra.mxu0 0
  %1470 = vmatprep.subr.bf16.mxu0 0
  %1471 = vmatpush1.bf16.msra.mxu0 0
  %1472 = vmatprep.subr.bf16.mxu0 0
  %1473 = vmatpush1.bf16.msra.mxu0 0
  %1474 = vmatprep.mubr.bf16.mxu0 0
  %1475 = vmatmul.mubr.bf16.gmra.mrb[0].mxu0 %v1440
  %v1476 = vpop.f32.mrb[0].mxu0
  %v1477 = vadd.f32 %v1412, %v1476
  %v1478 = vpop.f32.mrb[0].mxu0
  %v1479 = vpop.f32.mrb[0].mxu0
  %v1480 = vpop.f32.mrb[0].mxu0
  %1481 = vdwg.mxu0
  %v1482 = vtanh.pop %v1477
  %v1483 = vld [vmem:[%s15] sm:$0xf]
  %v1484 = vld [vmem:[%s16] sm:$0x1]
  %v1485 = vld [vmem:[%s18] sm:$0xf]
  %v1486 = vld [vmem:[%s18 + $0x4] sm:$0xf]
  %v1487 = vld [vmem:[%s18 + $0x8] sm:$0xf]
  %v1488 = vld [vmem:[%s18 + $0xc] sm:$0xf]
  %v1489 = vld [vmem:[%s19] sm:$0x1]
  %v1490 = vld [vmem:[%s17] sm:$0x1]
  %v1492 = vlaneseq
  %v1493 = vshrl.u32 %v1492, 7
  %v1494 = vsub.s32 0, %v1493
  %v1495 = vrot.slane %v1490, %v1494
  %v1497 = vld [vmem:[%s20] sm:$0xf]
  %v1498 = vld [vmem:[%s20 + $0x4] sm:$0xf]
  %v1499 = vld [vmem:[%s20 + $0x8] sm:$0xf]
  %v1500 = vld [vmem:[%s20 + $0xc] sm:$0xf]
  %v1501 = vld [vmem:[%s20 + $0x10] sm:$0xf]
  %v1502 = vld [vmem:[%s20 + $0x14] sm:$0xf]
  %v1503 = vld [vmem:[%s20 + $0x18] sm:$0xf]
  %v1504 = vld [vmem:[%s20 + $0x1c] sm:$0xf]
  %v1505 = vld [vmem:[%s20 + $0x20] sm:$0xf]
  %v1506 = vld [vmem:[%s20 + $0x24] sm:$0xf]
  %v1507 = vld [vmem:[%s20 + $0x28] sm:$0xf]
  %v1508 = vld [vmem:[%s20 + $0x2c] sm:$0xf]
  %v1509 = vld [vmem:[%s20 + $0x30] sm:$0xf]
  %v1510 = vld [vmem:[%s20 + $0x34] sm:$0xf]
  %v1511 = vld [vmem:[%s20 + $0x38] sm:$0xf]
  %v1512 = vld [vmem:[%s20 + $0x3c] sm:$0xf]
  %v1513 = vld [vmem:[%s21] sm:$0xff]
  %v1514 = vpack.c.bf16 %v1513, %v1513
  %v1516 = vlaneseq
  %v1517 = vshrl.u32 %v1516, 7
  %v1518 = vsub.s32 0, %v1517
  %v1519 = vrot.slane %v1484, %v1518
  %v1522 = vsel %vm302, %v1514, 0
  %v1525 = vsel %vm313, %v1483, 0
  %1527 = vmatprep.subr.bf16.mxu0 0
  %1528 = vmatpush1.bf16.msra.mxu0 %v1525
  %1529 = vmatprep.subr.bf16.mxu0 0
  %1530 = vmatpush1.bf16.msra.mxu0 0
  %1531 = vmatprep.subr.bf16.mxu0 0
  %1532 = vmatpush1.bf16.msra.mxu0 0
  %1533 = vmatprep.subr.bf16.mxu0 0
  %1534 = vmatpush1.bf16.msra.mxu0 0
  %1535 = vmatprep.subr.bf16.mxu0 0
  %1536 = vmatpush1.bf16.msra.mxu0 0
  %1537 = vmatprep.subr.bf16.mxu0 0
  %1538 = vmatpush1.bf16.msra.mxu0 0
  %1539 = vmatprep.subr.bf16.mxu0 0
  %1540 = vmatpush1.bf16.msra.mxu0 0
  %1541 = vmatprep.subr.bf16.mxu0 0
  %1542 = vmatpush1.bf16.msra.mxu0 0
  %1543 = vmatprep.subr.bf16.mxu0 0
  %1544 = vmatpush1.bf16.msra.mxu0 0
  %1545 = vmatprep.subr.bf16.mxu0 0
  %1546 = vmatpush1.bf16.msra.mxu0 0
  %1547 = vmatprep.subr.bf16.mxu0 0
  %1548 = vmatpush1.bf16.msra.mxu0 0
  %1549 = vmatprep.subr.bf16.mxu0 0
  %1550 = vmatpush1.bf16.msra.mxu0 0
  %1551 = vmatprep.subr.bf16.mxu0 0
  %1552 = vmatpush1.bf16.msra.mxu0 0
  %1553 = vmatprep.subr.bf16.mxu0 0
  %1554 = vmatpush1.bf16.msra.mxu0 0
  %1555 = vmatprep.subr.bf16.mxu0 0
  %1556 = vmatpush1.bf16.msra.mxu0 0
  %1557 = vmatprep.subr.bf16.mxu0 0
  %1558 = vmatpush1.bf16.msra.mxu0 0
  %1559 = vmatprep.mubr.bf16.mxu0 0
  %1560 = vmatmul.mubr.bf16.gmra.mrb[0].mxu0 %v1522
  %v1561 = vpop.f32.mrb[0].mxu0
  %v1562 = vadd.f32 %v1519, %v1561
  %v1563 = vpop.f32.mrb[0].mxu0
  %v1564 = vpop.f32.mrb[0].mxu0
  %v1565 = vpop.f32.mrb[0].mxu0
  %1566 = vdwg.mxu0
  %v1571 = vunpack.c.l.b16 %v1485
  %v1572 = vunpack.c.l.b16 %v1486
  %v1573 = vunpack.c.l.b16 %v1487
  %v1574 = vunpack.c.l.b16 %v1488
  %v1575 = vpack.c.b16 %v1572, %v1571
  %v1576 = vpack.c.b16 %v1574, %v1573
  %v1580 = vsel %vm168, 0, 0
  %1582 = vmatprep.subr.bf16.mxu0 0
  %1583 = vmatpush1.bf16.msra.mxu0 %v1575
  %1584 = vmatprep.subr.bf16.mxu0 0
  %1585 = vmatpush1.bf16.msra.mxu0 %v1576
  %1586 = vmatprep.subr.bf16.mxu0 0
  %1587 = vmatpush1.bf16.msra.mxu0 0
  %1588 = vmatprep.subr.bf16.mxu0 0
  %1589 = vmatpush1.bf16.msra.mxu0 0
  %1590 = vmatprep.subr.bf16.mxu0 0
  %1591 = vmatpush1.bf16.msra.mxu0 0
  %1592 = vmatprep.subr.bf16.mxu0 0
  %1593 = vmatpush1.bf16.msra.mxu0 0
  %1594 = vmatprep.subr.bf16.mxu0 0
  %1595 = vmatpush1.bf16.msra.mxu0 0
  %1596 = vmatprep.subr.bf16.mxu0 0
  %1597 = vmatpush1.bf16.msra.mxu0 0
  %1598 = vmatprep.subr.bf16.mxu0 0
  %1599 = vmatpush1.bf16.msra.mxu0 0
  %1600 = vmatprep.subr.bf16.mxu0 0
  %1601 = vmatpush1.bf16.msra.mxu0 0
  %1602 = vmatprep.subr.bf16.mxu0 0
  %1603 = vmatpush1.bf16.msra.mxu0 0
  %1604 = vmatprep.subr.bf16.mxu0 0
  %1605 = vmatpush1.bf16.msra.mxu0 0
  %1606 = vmatprep.subr.bf16.mxu0 0
  %1607 = vmatpush1.bf16.msra.mxu0 0
  %1608 = vmatprep.subr.bf16.mxu0 0
  %1609 = vmatpush1.bf16.msra.mxu0 0
  %1610 = vmatprep.subr.bf16.mxu0 0
  %1611 = vmatpush1.bf16.msra.mxu0 0
  %1612 = vmatprep.subr.bf16.mxu0 0
  %1613 = vmatpush1.bf16.msra.mxu0 0
  %1614 = vmatprep.mubr.bf16.mxu0 0
  %1615 = vmatmul.mubr.bf16.gmra.mrb[0].mxu0 %v1580
  %v1616 = vpop.f32.mrb[0].mxu0
  %v1617 = vadd.f32 0.0, %v1616
  %v1618 = vpop.f32.mrb[0].mxu0
  %v1619 = vpop.f32.mrb[0].mxu0
  %v1620 = vpop.f32.mrb[0].mxu0
  %1621 = vdwg.mxu0
  %v1622 = vadd.f32 %v1562, %v1617
  %v1624 = vlaneseq
  %v1625 = vshrl.u32 %v1624, 7
  %v1626 = vsub.s32 0, %v1625
  %v1627 = vrot.slane %v1489, %v1626
  %v1629 = vadd.f32 %v1622, %v1627
  %v1630 = vtanh.pop %v1629
  %1632 = vrot.lane.b32.xlu0 %v1630, 32
  %v1633 = vpop.permute.xlu0 %1632
  %1635 = vrot.lane.b32.xlu0 %v1630, 64
  %v1636 = vpop.permute.xlu0 %1635
  %1638 = vrot.lane.b32.xlu0 %v1630, 96
  %v1639 = vpop.permute.xlu0 %1638
  %v1641 = vsel %vm168, %v1630, %v1633
  %v1642 = vsel %vm1438, %v1641, %v1636
  %vm1643 = vcmask 785408
  %v1644 = vsel %vm1643, %v1642, %v1639
  %v1645 = vmul.f32 %v1482, %v1644
  %v1646 = vpack.c.bf16 %v1645, %v1645
  %v1663 = vunpack.c.l.b16 %v1497
  %v1664 = vunpack.c.l.b16 %v1498
  %v1665 = vunpack.c.l.b16 %v1499
  %v1666 = vunpack.c.l.b16 %v1500
  %v1667 = vunpack.c.l.b16 %v1501
  %v1668 = vunpack.c.l.b16 %v1502
  %v1669 = vunpack.c.l.b16 %v1503
  %v1670 = vunpack.c.l.b16 %v1504
  %v1671 = vunpack.c.l.b16 %v1505
  %v1672 = vunpack.c.l.b16 %v1506
  %v1673 = vunpack.c.l.b16 %v1507
  %v1674 = vunpack.c.l.b16 %v1508
  %v1675 = vunpack.c.l.b16 %v1509
  %v1676 = vunpack.c.l.b16 %v1510
  %v1677 = vunpack.c.l.b16 %v1511
  %v1678 = vunpack.c.l.b16 %v1512
  %v1679 = vpack.c.b16 %v1664, %v1663
  %v1680 = vpack.c.b16 %v1666, %v1665
  %v1681 = vpack.c.b16 %v1668, %v1667
  %v1682 = vpack.c.b16 %v1670, %v1669
  %v1683 = vpack.c.b16 %v1672, %v1671
  %v1684 = vpack.c.b16 %v1674, %v1673
  %v1685 = vpack.c.b16 %v1676, %v1675
  %v1686 = vpack.c.b16 %v1678, %v1677
  %1695 = vmatprep.subr.bf16.mxu0 0
  %1696 = vmatpush1.bf16.msra.mxu0 %v1679
  %1697 = vmatprep.subr.bf16.mxu0 0
  %1698 = vmatpush1.bf16.msra.mxu0 %v1680
  %1699 = vmatprep.subr.bf16.mxu0 0
  %1700 = vmatpush1.bf16.msra.mxu0 %v1681
  %1701 = vmatprep.subr.bf16.mxu0 0
  %1702 = vmatpush1.bf16.msra.mxu0 %v1682
  %1703 = vmatprep.subr.bf16.mxu0 0
  %1704 = vmatpush1.bf16.msra.mxu0 %v1683
  %1705 = vmatprep.subr.bf16.mxu0 0
  %1706 = vmatpush1.bf16.msra.mxu0 %v1684
  %1707 = vmatprep.subr.bf16.mxu0 0
  %1708 = vmatpush1.bf16.msra.mxu0 %v1685
  %1709 = vmatprep.subr.bf16.mxu0 0
  %1710 = vmatpush1.bf16.msra.mxu0 %v1686
  %1711 = vmatprep.subr.bf16.mxu0 0
  %1712 = vmatpush1.bf16.msra.mxu0 0
  %1713 = vmatprep.subr.bf16.mxu0 0
  %1714 = vmatpush1.bf16.msra.mxu0 0
  %1715 = vmatprep.subr.bf16.mxu0 0
  %1716 = vmatpush1.bf16.msra.mxu0 0
  %1717 = vmatprep.subr.bf16.mxu0 0
  %1718 = vmatpush1.bf16.msra.mxu0 0
  %1719 = vmatprep.subr.bf16.mxu0 0
  %1720 = vmatpush1.bf16.msra.mxu0 0
  %1721 = vmatprep.subr.bf16.mxu0 0
  %1722 = vmatpush1.bf16.msra.mxu0 0
  %1723 = vmatprep.subr.bf16.mxu0 0
  %1724 = vmatpush1.bf16.msra.mxu0 0
  %1725 = vmatprep.subr.bf16.mxu0 0
  %1726 = vmatpush1.bf16.msra.mxu0 0
  %1727 = vmatprep.mubr.bf16.mxu0 0
  %1728 = vmatmul.mubr.bf16.gmra.mrb[0].mxu0 %v1646
  %v1729 = vpop.f32.mrb[0].mxu0
  %v1730 = vadd.f32 0.0, %v1729
  %v1731 = vpop.f32.mrb[0].mxu0
  %v1732 = vpop.f32.mrb[0].mxu0
  %v1733 = vpop.f32.mrb[0].mxu0
  %1734 = vdwg.mxu0
  %vm1735 = vcmask 31744
  %v1736 = vsel %vm1735, %v1730, -inf
  %1737 = vmax.xlane.f32.xlu0 %v1736
  %v1738 = vpop.xlane.xlu0 %1737
  %v1739 = vsub.f32 %v1730, %v1738
  %v1740 = vmul.f32 %v1739, 1.442695
  %v1741 = vpow.pop %v1740
  %v1742 = vsel %vm1735, %v1741, 0.0
  %1743 = vadd.xlane.f32.xlu0 %v1742
  %v1744 = vpop.xlane.xlu0 %1743
  %v1745 = vlog2.pop %v1744
  %v1746 = vmul.f32 %v1745, 0.6931472
  %v1747 = vsub.f32 %v1739, %v1746
  %1748 = vst.msk [vmem:[%s23] sm:$0xff] %vm1735, %v1747
  %v1749 = vmul.f32 %v1747, %v1396
  %v1750 = vsel %vm1735, %v1749, 0.0
  %1751 = vadd.xlane.f32.xlu0 %v1750
  %v1752 = vpop.xlane.xlu0 %1751
  %v1753 = vsel %vm1735, %v1747, -inf
  %1754 = vmax.xlane.f32.xlu0 %v1753
  %v1755 = vpop.xlane.xlu0 %1754
  %v1756 = vsub.f32 0.0, %v1752
  %vm1757 = vcmp.ge.f32.partialorder %v1752, %v1755
  %v1758 = vsel %vm1757, 1, 0
  %v1759 = vcvt.s32.f32 %v1758
  %v1760 = vmul.f32 %v1759, 100.0
  %v1761 = vadd.f32 %v1756, 0.0
  %v1762 = vmul.f32 %v1761, %v1513
  %v1763 = vadd.f32 %v1762, 0.0
  %v1764 = vmul.f32 %v1760, %v1513
  %v1765 = vadd.f32 %v1764, 0.0
  %v1766 = vsub.f32 1.0, %v1513
  %v1767 = vld [vmem:[%s21] sm:$0xff]
  %v1768 = vpack.c.bf16 %v1767, %v1767
  %1770 = vrot.lane.b32.xlu0 %v1768, 120
  %v1771 = vpop.permute.xlu0 %1770
  %v1773 = vsel %vm302, %v1771, 0
  %1775 = vmatprep.subr.bf16.mxu0 0
  %1776 = vmatpush1.bf16.msra.mxu0 %v1525
  %1777 = vmatprep.subr.bf16.mxu0 0
  %1778 = vmatpush1.bf16.msra.mxu0 0
  %1779 = vmatprep.subr.bf16.mxu0 0
  %1780 = vmatpush1.bf16.msra.mxu0 0
  %1781 = vmatprep.subr.bf16.mxu0 0
  %1782 = vmatpush1.bf16.msra.mxu0 0
  %1783 = vmatprep.subr.bf16.mxu0 0
  %1784 = vmatpush1.bf16.msra.mxu0 0
  %1785 = vmatprep.subr.bf16.mxu0 0
  %1786 = vmatpush1.bf16.msra.mxu0 0
  %1787 = vmatprep.subr.bf16.mxu0 0
  %1788 = vmatpush1.bf16.msra.mxu0 0
  %1789 = vmatprep.subr.bf16.mxu0 0
  %1790 = vmatpush1.bf16.msra.mxu0 0
  %1791 = vmatprep.subr.bf16.mxu0 0
  %1792 = vmatpush1.bf16.msra.mxu0 0
  %1793 = vmatprep.subr.bf16.mxu0 0
  %1794 = vmatpush1.bf16.msra.mxu0 0
  %1795 = vmatprep.subr.bf16.mxu0 0
  %1796 = vmatpush1.bf16.msra.mxu0 0
  %1797 = vmatprep.subr.bf16.mxu0 0
  %1798 = vmatpush1.bf16.msra.mxu0 0
  %1799 = vmatprep.subr.bf16.mxu0 0
  %1800 = vmatpush1.bf16.msra.mxu0 0
  %1801 = vmatprep.subr.bf16.mxu0 0
  %1802 = vmatpush1.bf16.msra.mxu0 0
  %1803 = vmatprep.subr.bf16.mxu0 0
  %1804 = vmatpush1.bf16.msra.mxu0 0
  %1805 = vmatprep.subr.bf16.mxu0 0
  %1806 = vmatpush1.bf16.msra.mxu0 0
  %1807 = vmatprep.mubr.bf16.mxu0 0
  %1808 = vmatmul.mubr.bf16.gmra.mrb[0].mxu0 %v1773
  %v1809 = vpop.f32.mrb[0].mxu0
  %v1810 = vadd.f32 %v1519, %v1809
  %v1811 = vpop.f32.mrb[0].mxu0
  %v1812 = vpop.f32.mrb[0].mxu0
  %v1813 = vpop.f32.mrb[0].mxu0
  %1814 = vdwg.mxu0
  %v1815 = vpack.c.bf16 %v1630, %v1630
  %v1817 = vsel %vm168, %v1815, 0
  %1819 = vmatprep.subr.bf16.mxu0 0
  %1820 = vmatpush1.bf16.msra.mxu0 %v1575
  %1821 = vmatprep.subr.bf16.mxu0 0
  %1822 = vmatpush1.bf16.msra.mxu0 %v1576
  %1823 = vmatprep.subr.bf16.mxu0 0
  %1824 = vmatpush1.bf16.msra.mxu0 0
  %1825 = vmatprep.subr.bf16.mxu0 0
  %1826 = vmatpush1.bf16.msra.mxu0 0
  %1827 = vmatprep.subr.bf16.mxu0 0
  %1828 = vmatpush1.bf16.msra.mxu0 0
  %1829 = vmatprep.subr.bf16.mxu0 0
  %1830 = vmatpush1.bf16.msra.mxu0 0
  %1831 = vmatprep.subr.bf16.mxu0 0
  %1832 = vmatpush1.bf16.msra.mxu0 0
  %1833 = vmatprep.subr.bf16.mxu0 0
  %1834 = vmatpush1.bf16.msra.mxu0 0
  %1835 = vmatprep.subr.bf16.mxu0 0
  %1836 = vmatpush1.bf16.msra.mxu0 0
  %1837 = vmatprep.subr.bf16.mxu0 0
  %1838 = vmatpush1.bf16.msra.mxu0 0
  %1839 = vmatprep.subr.bf16.mxu0 0
  %1840 = vmatpush1.bf16.msra.mxu0 0
  %1841 = vmatprep.subr.bf16.mxu0 0
  %1842 = vmatpush1.bf16.msra.mxu0 0
  %1843 = vmatprep.subr.bf16.mxu0 0
  %1844 = vmatpush1.bf16.msra.mxu0 0
  %1845 = vmatprep.subr.bf16.mxu0 0
  %1846 = vmatpush1.bf16.msra.mxu0 0
  %1847 = vmatprep.subr.bf16.mxu0 0
  %1848 = vmatpush1.bf16.msra.mxu0 0
  %1849 = vmatprep.subr.bf16.mxu0 0
  %1850 = vmatpush1.bf16.msra.mxu0 0
  %1851 = vmatprep.mubr.bf16.mxu0 0
  %1852 = vmatmul.mubr.bf16.gmra.mrb[0].mxu0 %v1817
  %v1853 = vpop.f32.mrb[0].mxu0
  %v1854 = vadd.f32 0.0, %v1853
  %v1855 = vpop.f32.mrb[0].mxu0
  %v1856 = vpop.f32.mrb[0].mxu0
  %v1857 = vpop.f32.mrb[0].mxu0
  %1858 = vdwg.mxu0
  %v1859 = vadd.f32 %v1810, %v1854
  %v1860 = vadd.f32 %v1859, %v1627
  %v1861 = vtanh.pop %v1860
  %1863 = vrot.lane.b32.xlu0 %v1861, 32
  %v1864 = vpop.permute.xlu0 %1863
  %1866 = vrot.lane.b32.xlu0 %v1861, 64
  %v1867 = vpop.permute.xlu0 %1866
  %1869 = vrot.lane.b32.xlu0 %v1861, 96
  %v1870 = vpop.permute.xlu0 %1869
  %v1872 = vsel %vm168, %v1861, %v1864
  %v1873 = vsel %vm1438, %v1872, %v1867
  %v1874 = vsel %vm1643, %v1873, %v1870
  %v1875 = vmul.f32 %v1482, %v1874
  %v1876 = vpack.c.bf16 %v1875, %v1875
  %1877 = vmatprep.subr.bf16.mxu0 0
  %1878 = vmatpush1.bf16.msra.mxu0 %v1679
  %1879 = vmatprep.subr.bf16.mxu0 0
  %1880 = vmatpush1.bf16.msra.mxu0 %v1680
  %1881 = vmatprep.subr.bf16.mxu0 0
  %1882 = vmatpush1.bf16.msra.mxu0 %v1681
  %1883 = vmatprep.subr.bf16.mxu0 0
  %1884 = vmatpush1.bf16.msra.mxu0 %v1682
  %1885 = vmatprep.subr.bf16.mxu0 0
  %1886 = vmatpush1.bf16.msra.mxu0 %v1683
  %1887 = vmatprep.subr.bf16.mxu0 0
  %1888 = vmatpush1.bf16.msra.mxu0 %v1684
  %1889 = vmatprep.subr.bf16.mxu0 0
  %1890 = vmatpush1.bf16.msra.mxu0 %v1685
  %1891 = vmatprep.subr.bf16.mxu0 0
  %1892 = vmatpush1.bf16.msra.mxu0 %v1686
  %1893 = vmatprep.subr.bf16.mxu0 0
  %1894 = vmatpush1.bf16.msra.mxu0 0
  %1895 = vmatprep.subr.bf16.mxu0 0
  %1896 = vmatpush1.bf16.msra.mxu0 0
  %1897 = vmatprep.subr.bf16.mxu0 0
  %1898 = vmatpush1.bf16.msra.mxu0 0
  %1899 = vmatprep.subr.bf16.mxu0 0
  %1900 = vmatpush1.bf16.msra.mxu0 0
  %1901 = vmatprep.subr.bf16.mxu0 0
  %1902 = vmatpush1.bf16.msra.mxu0 0
  %1903 = vmatprep.subr.bf16.mxu0 0
  %1904 = vmatpush1.bf16.msra.mxu0 0
  %1905 = vmatprep.subr.bf16.mxu0 0
  %1906 = vmatpush1.bf16.msra.mxu0 0
  %1907 = vmatprep.subr.bf16.mxu0 0
  %1908 = vmatpush1.bf16.msra.mxu0 0
  %1909 = vmatprep.mubr.bf16.mxu0 0
  %1910 = vmatmul.mubr.bf16.gmra.mrb[0].mxu0 %v1876
  %v1911 = vpop.f32.mrb[0].mxu0
  %v1912 = vadd.f32 0.0, %v1911
  %v1913 = vpop.f32.mrb[0].mxu0
  %v1914 = vpop.f32.mrb[0].mxu0
  %v1915 = vpop.f32.mrb[0].mxu0
  %1916 = vdwg.mxu0
  %v1917 = vsel %vm1735, %v1912, -inf
  %1918 = vmax.xlane.f32.xlu0 %v1917
  %v1919 = vpop.xlane.xlu0 %1918
  %v1920 = vsub.f32 %v1912, %v1919
  %v1921 = vmul.f32 %v1920, 1.442695
  %v1922 = vpow.pop %v1921
  %v1923 = vsel %vm1735, %v1922, 0.0
  %1924 = vadd.xlane.f32.xlu0 %v1923
  %v1925 = vpop.xlane.xlu0 %1924
  %v1926 = vlog2.pop %v1925
  %v1927 = vmul.f32 %v1926, 0.6931472
  %v1928 = vsub.f32 %v1920, %v1927
  %1930 = vrot.lane.b32.xlu0 %v1928, 4
  %v1931 = vpop.permute.xlu0 %1930
  %vm1933 = vcmask 64544
  %1934 = vst.msk [vmem:[%s23] sm:$0xff] %vm1933, %v1931
  %v1935 = vmul.f32 %v1928, %v1396
  %v1936 = vsel %vm1735, %v1935, 0.0
  %1937 = vadd.xlane.f32.xlu0 %v1936
  %v1938 = vpop.xlane.xlu0 %1937
  %v1939 = vsel %vm1735, %v1928, -inf
  %1940 = vmax.xlane.f32.xlu0 %v1939
  %v1941 = vpop.xlane.xlu0 %1940
  %v1942 = vsub.f32 0.0, %v1938
  %vm1943 = vcmp.ge.f32.partialorder %v1938, %v1941
  %v1944 = vsel %vm1943, 1, 0
  %v1945 = vcvt.s32.f32 %v1944
  %v1946 = vmul.f32 %v1945, 100.0
  %1948 = vrot.lane.b32.xlu0 %v1766, 8
  %v1949 = vpop.permute.xlu0 %1948
  %v1951 = vmul.f32 %v1767, %v1949
  %v1952 = vadd.f32 %v1942, 0.01
  %v1953 = vmul.f32 %v1952, %v1951
  %1955 = vrot.lane.b32.xlu0 %v1953, 120
  %v1956 = vpop.permute.xlu0 %1955
  %v1958 = vadd.f32 %v1763, %v1956
  %v1959 = vmul.f32 %v1946, %v1951
  %1961 = vrot.lane.b32.xlu0 %v1959, 120
  %v1962 = vpop.permute.xlu0 %1961
  %v1964 = vadd.f32 %v1765, %v1962
  %v1965 = vsub.f32 1.0, %v1767
  %1967 = vrot.lane.b32.xlu0 %v1965, 120
  %v1968 = vpop.permute.xlu0 %1967
  %v1970 = vmul.f32 %v1766, %v1968
  %v1971 = vld [vmem:[%s21] sm:$0xff]
  %v1972 = vpack.c.bf16 %v1971, %v1971
  %1974 = vrot.lane.b32.xlu0 %v1972, 112
  %v1975 = vpop.permute.xlu0 %1974
  %v1977 = vsel %vm302, %v1975, 0
  %1979 = vmatprep.subr.bf16.mxu0 0
  %1980 = vmatpush1.bf16.msra.mxu0 %v1525
  %1981 = vmatprep.subr.bf16.mxu0 0
  %1982 = vmatpush1.bf16.msra.mxu0 0
  %1983 = vmatprep.subr.bf16.mxu0 0
  %1984 = vmatpush1.bf16.msra.mxu0 0
  %1985 = vmatprep.subr.bf16.mxu0 0
  %1986 = vmatpush1.bf16.msra.mxu0 0
  %1987 = vmatprep.subr.bf16.mxu0 0
  %1988 = vmatpush1.bf16.msra.mxu0 0
  %1989 = vmatprep.subr.bf16.mxu0 0
  %1990 = vmatpush1.bf16.msra.mxu0 0
  %1991 = vmatprep.subr.bf16.mxu0 0
  %1992 = vmatpush1.bf16.msra.mxu0 0
  %1993 = vmatprep.subr.bf16.mxu0 0
  %1994 = vmatpush1.bf16.msra.mxu0 0
  %1995 = vmatprep.subr.bf16.mxu0 0
  %1996 = vmatpush1.bf16.msra.mxu0 0
  %1997 = vmatprep.subr.bf16.mxu0 0
  %1998 = vmatpush1.bf16.msra.mxu0 0
  %1999 = vmatprep.subr.bf16.mxu0 0
  %2000 = vmatpush1.bf16.msra.mxu0 0
  %2001 = vmatprep.subr.bf16.mxu0 0
  %2002 = vmatpush1.bf16.msra.mxu0 0
  %2003 = vmatprep.subr.bf16.mxu0 0
  %2004 = vmatpush1.bf16.msra.mxu0 0
  %2005 = vmatprep.subr.bf16.mxu0 0
  %2006 = vmatpush1.bf16.msra.mxu0 0
  %2007 = vmatprep.subr.bf16.mxu0 0
  %2008 = vmatpush1.bf16.msra.mxu0 0
  %2009 = vmatprep.subr.bf16.mxu0 0
  %2010 = vmatpush1.bf16.msra.mxu0 0
  %2011 = vmatprep.mubr.bf16.mxu0 0
  %2012 = vmatmul.mubr.bf16.gmra.mrb[0].mxu0 %v1977
  %v2013 = vpop.f32.mrb[0].mxu0
  %v2014 = vadd.f32 %v1519, %v2013
  %v2015 = vpop.f32.mrb[0].mxu0
  %v2016 = vpop.f32.mrb[0].mxu0
  %v2017 = vpop.f32.mrb[0].mxu0
  %2018 = vdwg.mxu0
  %v2019 = vpack.c.bf16 %v1861, %v1861
  %v2021 = vsel %vm168, %v2019, 0
  %2023 = vmatprep.subr.bf16.mxu0 0
  %2024 = vmatpush1.bf16.msra.mxu0 %v1575
  %2025 = vmatprep.subr.bf16.mxu0 0
  %2026 = vmatpush1.bf16.msra.mxu0 %v1576
  %2027 = vmatprep.subr.bf16.mxu0 0
  %2028 = vmatpush1.bf16.msra.mxu0 0
  %2029 = vmatprep.subr.bf16.mxu0 0
  %2030 = vmatpush1.bf16.msra.mxu0 0
  %2031 = vmatprep.subr.bf16.mxu0 0
  %2032 = vmatpush1.bf16.msra.mxu0 0
  %2033 = vmatprep.subr.bf16.mxu0 0
  %2034 = vmatpush1.bf16.msra.mxu0 0
  %2035 = vmatprep.subr.bf16.mxu0 0
  %2036 = vmatpush1.bf16.msra.mxu0 0
  %2037 = vmatprep.subr.bf16.mxu0 0
  %2038 = vmatpush1.bf16.msra.mxu0 0
  %2039 = vmatprep.subr.bf16.mxu0 0
  %2040 = vmatpush1.bf16.msra.mxu0 0
  %2041 = vmatprep.subr.bf16.mxu0 0
  %2042 = vmatpush1.bf16.msra.mxu0 0
  %2043 = vmatprep.subr.bf16.mxu0 0
  %2044 = vmatpush1.bf16.msra.mxu0 0
  %2045 = vmatprep.subr.bf16.mxu0 0
  %2046 = vmatpush1.bf16.msra.mxu0 0
  %2047 = vmatprep.subr.bf16.mxu0 0
  %2048 = vmatpush1.bf16.msra.mxu0 0
  %2049 = vmatprep.subr.bf16.mxu0 0
  %2050 = vmatpush1.bf16.msra.mxu0 0
  %2051 = vmatprep.subr.bf16.mxu0 0
  %2052 = vmatpush1.bf16.msra.mxu0 0
  %2053 = vmatprep.subr.bf16.mxu0 0
  %2054 = vmatpush1.bf16.msra.mxu0 0
  %2055 = vmatprep.mubr.bf16.mxu0 0
  %2056 = vmatmul.mubr.bf16.gmra.mrb[0].mxu0 %v2021
  %v2057 = vpop.f32.mrb[0].mxu0
  %v2058 = vadd.f32 0.0, %v2057
  %v2059 = vpop.f32.mrb[0].mxu0
  %v2060 = vpop.f32.mrb[0].mxu0
  %v2061 = vpop.f32.mrb[0].mxu0
  %2062 = vdwg.mxu0
  %v2063 = vadd.f32 %v2014, %v2058
  %v2064 = vadd.f32 %v2063, %v1627
  %v2065 = vtanh.pop %v2064
  %2067 = vrot.lane.b32.xlu0 %v2065, 32
  %v2068 = vpop.permute.xlu0 %2067
  %2070 = vrot.lane.b32.xlu0 %v2065, 64
  %v2071 = vpop.permute.xlu0 %2070
  %2073 = vrot.lane.b32.xlu0 %v2065, 96
  %v2074 = vpop.permute.xlu0 %2073
  %v2076 = vsel %vm168, %v2065, %v2068
  %v2077 = vsel %vm1438, %v2076, %v2071
  %v2078 = vsel %vm1643, %v2077, %v2074
  %v2079 = vmul.f32 %v1482, %v2078
  %v2080 = vpack.c.bf16 %v2079, %v2079
  %2081 = vmatprep.subr.bf16.mxu0 0
  %2082 = vmatpush1.bf16.msra.mxu0 %v1679
  %2083 = vmatprep.subr.bf16.mxu0 0
  %2084 = vmatpush1.bf16.msra.mxu0 %v1680
  %2085 = vmatprep.subr.bf16.mxu0 0
  %2086 = vmatpush1.bf16.msra.mxu0 %v1681
  %2087 = vmatprep.subr.bf16.mxu0 0
  %2088 = vmatpush1.bf16.msra.mxu0 %v1682
  %2089 = vmatprep.subr.bf16.mxu0 0
  %2090 = vmatpush1.bf16.msra.mxu0 %v1683
  %2091 = vmatprep.subr.bf16.mxu0 0
  %2092 = vmatpush1.bf16.msra.mxu0 %v1684
  %2093 = vmatprep.subr.bf16.mxu0 0
  %2094 = vmatpush1.bf16.msra.mxu0 %v1685
  %2095 = vmatprep.subr.bf16.mxu0 0
  %2096 = vmatpush1.bf16.msra.mxu0 %v1686
  %2097 = vmatprep.subr.bf16.mxu0 0
  %2098 = vmatpush1.bf16.msra.mxu0 0
  %2099 = vmatprep.subr.bf16.mxu0 0
  %2100 = vmatpush1.bf16.msra.mxu0 0
  %2101 = vmatprep.subr.bf16.mxu0 0
  %2102 = vmatpush1.bf16.msra.mxu0 0
  %2103 = vmatprep.subr.bf16.mxu0 0
  %2104 = vmatpush1.bf16.msra.mxu0 0
  %2105 = vmatprep.subr.bf16.mxu0 0
  %2106 = vmatpush1.bf16.msra.mxu0 0
  %2107 = vmatprep.subr.bf16.mxu0 0
  %2108 = vmatpush1.bf16.msra.mxu0 0
  %2109 = vmatprep.subr.bf16.mxu0 0
  %2110 = vmatpush1.bf16.msra.mxu0 0
  %2111 = vmatprep.subr.bf16.mxu0 0
  %2112 = vmatpush1.bf16.msra.mxu0 0
  %2113 = vmatprep.mubr.bf16.mxu0 0
  %2114 = vmatmul.mubr.bf16.gmra.mrb[0].mxu0 %v2080
  %v2115 = vpop.f32.mrb[0].mxu0
  %v2116 = vadd.f32 0.0, %v2115
  %v2117 = vpop.f32.mrb[0].mxu0
  %v2118 = vpop.f32.mrb[0].mxu0
  %v2119 = vpop.f32.mrb[0].mxu0
  %2120 = vdwg.mxu0
  %v2121 = vsel %vm1735, %v2116, -inf
  %2122 = vmax.xlane.f32.xlu0 %v2121
  %v2123 = vpop.xlane.xlu0 %2122
  %v2124 = vsub.f32 %v2116, %v2123
  %v2125 = vmul.f32 %v2124, 1.442695
  %v2126 = vpow.pop %v2125
  %v2127 = vsel %vm1735, %v2126, 0.0
  %2128 = vadd.xlane.f32.xlu0 %v2127
  %v2129 = vpop.xlane.xlu0 %2128
  %v2130 = vlog2.pop %v2129
  %v2131 = vmul.f32 %v2130, 0.6931472
  %v2132 = vsub.f32 %v2124, %v2131
  %2134 = vrot.lane.b32.xlu0 %v2132, 8
  %v2135 = vpop.permute.xlu0 %2134
  %vm2137 = vcmask 97344
  %2138 = vst.msk [vmem:[%s23] sm:$0xff] %vm2137, %v2135
  %v2139 = vmul.f32 %v2132, %v1396
  %v2140 = vsel %vm1735, %v2139, 0.0
  %2141 = vadd.xlane.f32.xlu0 %v2140
  %v2142 = vpop.xlane.xlu0 %2141
  %v2143 = vsel %vm1735, %v2132, -inf
  %2144 = vmax.xlane.f32.xlu0 %v2143
  %v2145 = vpop.xlane.xlu0 %2144
  %v2146 = vsub.f32 0.0, %v2142
  %vm2147 = vcmp.ge.f32.partialorder %v2142, %v2145
  %v2148 = vsel %vm2147, 1, 0
  %v2149 = vcvt.s32.f32 %v2148
  %v2150 = vmul.f32 %v2149, 100.0
  %2152 = vrot.lane.b32.xlu0 %v1970, 16
  %v2153 = vpop.permute.xlu0 %2152
  %v2155 = vmul.f32 %v1971, %v2153
  %v2156 = vadd.f32 %v2146, 0.02
  %v2157 = vmul.f32 %v2156, %v2155
  %2159 = vrot.lane.b32.xlu0 %v2157, 112
  %v2160 = vpop.permute.xlu0 %2159
  %v2162 = vadd.f32 %v1958, %v2160
  %v2163 = vmul.f32 %v2150, %v2155
  %2165 = vrot.lane.b32.xlu0 %v2163, 112
  %v2166 = vpop.permute.xlu0 %2165
  %v2168 = vadd.f32 %v1964, %v2166
  %v2169 = vsub.f32 1.0, %v1971
  %2171 = vrot.lane.b32.xlu0 %v2169, 112
  %v2172 = vpop.permute.xlu0 %2171
  %v2174 = vmul.f32 %v1970, %v2172
  %v2175 = vld [vmem:[%s21] sm:$0xff]
  %v2176 = vpack.c.bf16 %v2175, %v2175
  %2178 = vrot.lane.b32.xlu0 %v2176, 104
  %v2179 = vpop.permute.xlu0 %2178
  %v2181 = vsel %vm302, %v2179, 0
  %2183 = vmatprep.subr.bf16.mxu0 0
  %2184 = vmatpush1.bf16.msra.mxu0 %v1525
  %2185 = vmatprep.subr.bf16.mxu0 0
  %2186 = vmatpush1.bf16.msra.mxu0 0
  %2187 = vmatprep.subr.bf16.mxu0 0
  %2188 = vmatpush1.bf16.msra.mxu0 0
  %2189 = vmatprep.subr.bf16.mxu0 0
  %2190 = vmatpush1.bf16.msra.mxu0 0
  %2191 = vmatprep.subr.bf16.mxu0 0
  %2192 = vmatpush1.bf16.msra.mxu0 0
  %2193 = vmatprep.subr.bf16.mxu0 0
  %2194 = vmatpush1.bf16.msra.mxu0 0
  %2195 = vmatprep.subr.bf16.mxu0 0
  %2196 = vmatpush1.bf16.msra.mxu0 0
  %2197 = vmatprep.subr.bf16.mxu0 0
  %2198 = vmatpush1.bf16.msra.mxu0 0
  %2199 = vmatprep.subr.bf16.mxu0 0
  %2200 = vmatpush1.bf16.msra.mxu0 0
  %2201 = vmatprep.subr.bf16.mxu0 0
  %2202 = vmatpush1.bf16.msra.mxu0 0
  %2203 = vmatprep.subr.bf16.mxu0 0
  %2204 = vmatpush1.bf16.msra.mxu0 0
  %2205 = vmatprep.subr.bf16.mxu0 0
  %2206 = vmatpush1.bf16.msra.mxu0 0
  %2207 = vmatprep.subr.bf16.mxu0 0
  %2208 = vmatpush1.bf16.msra.mxu0 0
  %2209 = vmatprep.subr.bf16.mxu0 0
  %2210 = vmatpush1.bf16.msra.mxu0 0
  %2211 = vmatprep.subr.bf16.mxu0 0
  %2212 = vmatpush1.bf16.msra.mxu0 0
  %2213 = vmatprep.subr.bf16.mxu0 0
  %2214 = vmatpush1.bf16.msra.mxu0 0
  %2215 = vmatprep.mubr.bf16.mxu0 0
  %2216 = vmatmul.mubr.bf16.gmra.mrb[0].mxu0 %v2181
  %v2217 = vpop.f32.mrb[0].mxu0
  %v2218 = vadd.f32 %v1519, %v2217
  %v2219 = vpop.f32.mrb[0].mxu0
  %v2220 = vpop.f32.mrb[0].mxu0
  %v2221 = vpop.f32.mrb[0].mxu0
  %2222 = vdwg.mxu0
  %v2223 = vpack.c.bf16 %v2065, %v2065
  %v2225 = vsel %vm168, %v2223, 0
  %2227 = vmatprep.subr.bf16.mxu0 0
  %2228 = vmatpush1.bf16.msra.mxu0 %v1575
  %2229 = vmatprep.subr.bf16.mxu0 0
  %2230 = vmatpush1.bf16.msra.mxu0 %v1576
  %2231 = vmatprep.subr.bf16.mxu0 0
  %2232 = vmatpush1.bf16.msra.mxu0 0
  %2233 = vmatprep.subr.bf16.mxu0 0
  %2234 = vmatpush1.bf16.msra.mxu0 0
  %2235 = vmatprep.subr.bf16.mxu0 0
  %2236 = vmatpush1.bf16.msra.mxu0 0
  %2237 = vmatprep.subr.bf16.mxu0 0
  %2238 = vmatpush1.bf16.msra.mxu0 0
  %2239 = vmatprep.subr.bf16.mxu0 0
  %2240 = vmatpush1.bf16.msra.mxu0 0
  %2241 = vmatprep.subr.bf16.mxu0 0
  %2242 = vmatpush1.bf16.msra.mxu0 0
  %2243 = vmatprep.subr.bf16.mxu0 0
  %2244 = vmatpush1.bf16.msra.mxu0 0
  %2245 = vmatprep.subr.bf16.mxu0 0
  %2246 = vmatpush1.bf16.msra.mxu0 0
  %2247 = vmatprep.subr.bf16.mxu0 0
  %2248 = vmatpush1.bf16.msra.mxu0 0
  %2249 = vmatprep.subr.bf16.mxu0 0
  %2250 = vmatpush1.bf16.msra.mxu0 0
  %2251 = vmatprep.subr.bf16.mxu0 0
  %2252 = vmatpush1.bf16.msra.mxu0 0
  %2253 = vmatprep.subr.bf16.mxu0 0
  %2254 = vmatpush1.bf16.msra.mxu0 0
  %2255 = vmatprep.subr.bf16.mxu0 0
  %2256 = vmatpush1.bf16.msra.mxu0 0
  %2257 = vmatprep.subr.bf16.mxu0 0
  %2258 = vmatpush1.bf16.msra.mxu0 0
  %2259 = vmatprep.mubr.bf16.mxu0 0
  %2260 = vmatmul.mubr.bf16.gmra.mrb[0].mxu0 %v2225
  %v2261 = vpop.f32.mrb[0].mxu0
  %v2262 = vadd.f32 0.0, %v2261
  %v2263 = vpop.f32.mrb[0].mxu0
  %v2264 = vpop.f32.mrb[0].mxu0
  %v2265 = vpop.f32.mrb[0].mxu0
  %2266 = vdwg.mxu0
  %v2267 = vadd.f32 %v2218, %v2262
  %v2268 = vadd.f32 %v2267, %v1627
  %v2269 = vtanh.pop %v2268
  %2271 = vrot.lane.b32.xlu0 %v2269, 32
  %v2272 = vpop.permute.xlu0 %2271
  %2274 = vrot.lane.b32.xlu0 %v2269, 64
  %v2275 = vpop.permute.xlu0 %2274
  %2277 = vrot.lane.b32.xlu0 %v2269, 96
  %v2278 = vpop.permute.xlu0 %2277
  %v2280 = vsel %vm168, %v2269, %v2272
  %v2281 = vsel %vm1438, %v2280, %v2275
  %v2282 = vsel %vm1643, %v2281, %v2278
  %v2283 = vmul.f32 %v1482, %v2282
  %v2284 = vpack.c.bf16 %v2283, %v2283
  %2285 = vmatprep.subr.bf16.mxu0 0
  %2286 = vmatpush1.bf16.msra.mxu0 %v1679
  %2287 = vmatprep.subr.bf16.mxu0 0
  %2288 = vmatpush1.bf16.msra.mxu0 %v1680
  %2289 = vmatprep.subr.bf16.mxu0 0
  %2290 = vmatpush1.bf16.msra.mxu0 %v1681
  %2291 = vmatprep.subr.bf16.mxu0 0
  %2292 = vmatpush1.bf16.msra.mxu0 %v1682
  %2293 = vmatprep.subr.bf16.mxu0 0
  %2294 = vmatpush1.bf16.msra.mxu0 %v1683
  %2295 = vmatprep.subr.bf16.mxu0 0
  %2296 = vmatpush1.bf16.msra.mxu0 %v1684
  %2297 = vmatprep.subr.bf16.mxu0 0
  %2298 = vmatpush1.bf16.msra.mxu0 %v1685
  %2299 = vmatprep.subr.bf16.mxu0 0
  %2300 = vmatpush1.bf16.msra.mxu0 %v1686
  %2301 = vmatprep.subr.bf16.mxu0 0
  %2302 = vmatpush1.bf16.msra.mxu0 0
  %2303 = vmatprep.subr.bf16.mxu0 0
  %2304 = vmatpush1.bf16.msra.mxu0 0
  %2305 = vmatprep.subr.bf16.mxu0 0
  %2306 = vmatpush1.bf16.msra.mxu0 0
  %2307 = vmatprep.subr.bf16.mxu0 0
  %2308 = vmatpush1.bf16.msra.mxu0 0
  %2309 = vmatprep.subr.bf16.mxu0 0
  %2310 = vmatpush1.bf16.msra.mxu0 0
  %2311 = vmatprep.subr.bf16.mxu0 0
  %2312 = vmatpush1.bf16.msra.mxu0 0
  %2313 = vmatprep.subr.bf16.mxu0 0
  %2314 = vmatpush1.bf16.msra.mxu0 0
  %2315 = vmatprep.subr.bf16.mxu0 0
  %2316 = vmatpush1.bf16.msra.mxu0 0
  %2317 = vmatprep.mubr.bf16.mxu0 0
  %2318 = vmatmul.mubr.bf16.gmra.mrb[0].mxu0 %v2284
  %v2319 = vpop.f32.mrb[0].mxu0
  %v2320 = vadd.f32 0.0, %v2319
  %v2321 = vpop.f32.mrb[0].mxu0
  %v2322 = vpop.f32.mrb[0].mxu0
  %v2323 = vpop.f32.mrb[0].mxu0
  %2324 = vdwg.mxu0
  %v2325 = vsel %vm1735, %v2320, -inf
  %2326 = vmax.xlane.f32.xlu0 %v2325
  %v2327 = vpop.xlane.xlu0 %2326
  %v2328 = vsub.f32 %v2320, %v2327
  %v2329 = vmul.f32 %v2328, 1.442695
  %v2330 = vpow.pop %v2329
  %v2331 = vsel %vm1735, %v2330, 0.0
  %2332 = vadd.xlane.f32.xlu0 %v2331
  %v2333 = vpop.xlane.xlu0 %2332
  %v2334 = vlog2.pop %v2333
  %v2335 = vmul.f32 %v2334, 0.6931472
  %v2336 = vsub.f32 %v2328, %v2335
  %2338 = vrot.lane.b32.xlu0 %v2336, 12
  %v2339 = vpop.permute.xlu0 %2338
  %vm2341 = vcmask 130144
  %2342 = vst.msk [vmem:[%s23] sm:$0xff] %vm2341, %v2339
  %v2343 = vmul.f32 %v2336, %v1396
  %v2344 = vsel %vm1735, %v2343, 0.0
  %2345 = vadd.xlane.f32.xlu0 %v2344
  %v2346 = vpop.xlane.xlu0 %2345
  %v2347 = vsel %vm1735, %v2336, -inf
  %2348 = vmax.xlane.f32.xlu0 %v2347
  %v2349 = vpop.xlane.xlu0 %2348
  %v2350 = vsub.f32 0.0, %v2346
  %vm2351 = vcmp.ge.f32.partialorder %v2346, %v2349
  %v2352 = vsel %vm2351, 1, 0
  %v2353 = vcvt.s32.f32 %v2352
  %v2354 = vmul.f32 %v2353, 100.0
  %2356 = vrot.lane.b32.xlu0 %v2174, 24
  %v2357 = vpop.permute.xlu0 %2356
  %v2359 = vmul.f32 %v2175, %v2357
  %v2360 = vadd.f32 %v2350, 0.03
  %v2361 = vmul.f32 %v2360, %v2359
  %2363 = vrot.lane.b32.xlu0 %v2361, 104
  %v2364 = vpop.permute.xlu0 %2363
  %v2366 = vadd.f32 %v2162, %v2364
  %v2367 = vmul.f32 %v2354, %v2359
  %2369 = vrot.lane.b32.xlu0 %v2367, 104
  %v2370 = vpop.permute.xlu0 %2369
  %v2372 = vadd.f32 %v2168, %v2370
  %v2373 = vsub.f32 1.0, %v2175
  %2375 = vrot.lane.b32.xlu0 %v2373, 104
  %v2376 = vpop.permute.xlu0 %2375
  %v2378 = vmul.f32 %v2174, %v2376
  %v2379 = vld [vmem:[%s21] sm:$0xff]
  %v2380 = vpack.c.bf16 %v2379, %v2379
  %2382 = vrot.lane.b32.xlu0 %v2380, 96
  %v2383 = vpop.permute.xlu0 %2382
  %v2385 = vsel %vm302, %v2383, 0
  %2387 = vmatprep.subr.bf16.mxu0 0
  %2388 = vmatpush1.bf16.msra.mxu0 %v1525
  %2389 = vmatprep.subr.bf16.mxu0 0
  %2390 = vmatpush1.bf16.msra.mxu0 0
  %2391 = vmatprep.subr.bf16.mxu0 0
  %2392 = vmatpush1.bf16.msra.mxu0 0
  %2393 = vmatprep.subr.bf16.mxu0 0
  %2394 = vmatpush1.bf16.msra.mxu0 0
  %2395 = vmatprep.subr.bf16.mxu0 0
  %2396 = vmatpush1.bf16.msra.mxu0 0
  %2397 = vmatprep.subr.bf16.mxu0 0
  %2398 = vmatpush1.bf16.msra.mxu0 0
  %2399 = vmatprep.subr.bf16.mxu0 0
  %2400 = vmatpush1.bf16.msra.mxu0 0
  %2401 = vmatprep.subr.bf16.mxu0 0
  %2402 = vmatpush1.bf16.msra.mxu0 0
  %2403 = vmatprep.subr.bf16.mxu0 0
  %2404 = vmatpush1.bf16.msra.mxu0 0
  %2405 = vmatprep.subr.bf16.mxu0 0
  %2406 = vmatpush1.bf16.msra.mxu0 0
  %2407 = vmatprep.subr.bf16.mxu0 0
  %2408 = vmatpush1.bf16.msra.mxu0 0
  %2409 = vmatprep.subr.bf16.mxu0 0
  %2410 = vmatpush1.bf16.msra.mxu0 0
  %2411 = vmatprep.subr.bf16.mxu0 0
  %2412 = vmatpush1.bf16.msra.mxu0 0
  %2413 = vmatprep.subr.bf16.mxu0 0
  %2414 = vmatpush1.bf16.msra.mxu0 0
  %2415 = vmatprep.subr.bf16.mxu0 0
  %2416 = vmatpush1.bf16.msra.mxu0 0
  %2417 = vmatprep.subr.bf16.mxu0 0
  %2418 = vmatpush1.bf16.msra.mxu0 0
  %2419 = vmatprep.mubr.bf16.mxu0 0
  %2420 = vmatmul.mubr.bf16.gmra.mrb[0].mxu0 %v2385
  %v2421 = vpop.f32.mrb[0].mxu0
  %v2422 = vadd.f32 %v1519, %v2421
  %v2423 = vpop.f32.mrb[0].mxu0
  %v2424 = vpop.f32.mrb[0].mxu0
  %v2425 = vpop.f32.mrb[0].mxu0
  %2426 = vdwg.mxu0
  %v2427 = vpack.c.bf16 %v2269, %v2269
  %v2429 = vsel %vm168, %v2427, 0
  %2431 = vmatprep.subr.bf16.mxu0 0
  %2432 = vmatpush1.bf16.msra.mxu0 %v1575
  %2433 = vmatprep.subr.bf16.mxu0 0
  %2434 = vmatpush1.bf16.msra.mxu0 %v1576
  %2435 = vmatprep.subr.bf16.mxu0 0
  %2436 = vmatpush1.bf16.msra.mxu0 0
  %2437 = vmatprep.subr.bf16.mxu0 0
  %2438 = vmatpush1.bf16.msra.mxu0 0
  %2439 = vmatprep.subr.bf16.mxu0 0
  %2440 = vmatpush1.bf16.msra.mxu0 0
  %2441 = vmatprep.subr.bf16.mxu0 0
  %2442 = vmatpush1.bf16.msra.mxu0 0
  %2443 = vmatprep.subr.bf16.mxu0 0
  %2444 = vmatpush1.bf16.msra.mxu0 0
  %2445 = vmatprep.subr.bf16.mxu0 0
  %2446 = vmatpush1.bf16.msra.mxu0 0
  %2447 = vmatprep.subr.bf16.mxu0 0
  %2448 = vmatpush1.bf16.msra.mxu0 0
  %2449 = vmatprep.subr.bf16.mxu0 0
  %2450 = vmatpush1.bf16.msra.mxu0 0
  %2451 = vmatprep.subr.bf16.mxu0 0
  %2452 = vmatpush1.bf16.msra.mxu0 0
  %2453 = vmatprep.subr.bf16.mxu0 0
  %2454 = vmatpush1.bf16.msra.mxu0 0
  %2455 = vmatprep.subr.bf16.mxu0 0
  %2456 = vmatpush1.bf16.msra.mxu0 0
  %2457 = vmatprep.subr.bf16.mxu0 0
  %2458 = vmatpush1.bf16.msra.mxu0 0
  %2459 = vmatprep.subr.bf16.mxu0 0
  %2460 = vmatpush1.bf16.msra.mxu0 0
  %2461 = vmatprep.subr.bf16.mxu0 0
  %2462 = vmatpush1.bf16.msra.mxu0 0
  %2463 = vmatprep.mubr.bf16.mxu0 0
  %2464 = vmatmul.mubr.bf16.gmra.mrb[0].mxu0 %v2429
  %v2465 = vpop.f32.mrb[0].mxu0
  %v2466 = vadd.f32 0.0, %v2465
  %v2467 = vpop.f32.mrb[0].mxu0
  %v2468 = vpop.f32.mrb[0].mxu0
  %v2469 = vpop.f32.mrb[0].mxu0
  %2470 = vdwg.mxu0
  %v2471 = vadd.f32 %v2422, %v2466
  %v2472 = vadd.f32 %v2471, %v1627
  %v2473 = vtanh.pop %v2472
  %2475 = vrot.lane.b32.xlu0 %v2473, 32
  %v2476 = vpop.permute.xlu0 %2475
  %2478 = vrot.lane.b32.xlu0 %v2473, 64
  %v2479 = vpop.permute.xlu0 %2478
  %2481 = vrot.lane.b32.xlu0 %v2473, 96
  %v2482 = vpop.permute.xlu0 %2481
  %v2484 = vsel %vm168, %v2473, %v2476
  %v2485 = vsel %vm1438, %v2484, %v2479
  %v2486 = vsel %vm1643, %v2485, %v2482
  %v2487 = vmul.f32 %v1482, %v2486
  %v2488 = vpack.c.bf16 %v2487, %v2487
  %2489 = vmatprep.subr.bf16.mxu0 0
  %2490 = vmatpush1.bf16.msra.mxu0 %v1679
  %2491 = vmatprep.subr.bf16.mxu0 0
  %2492 = vmatpush1.bf16.msra.mxu0 %v1680
  %2493 = vmatprep.subr.bf16.mxu0 0
  %2494 = vmatpush1.bf16.msra.mxu0 %v1681
  %2495 = vmatprep.subr.bf16.mxu0 0
  %2496 = vmatpush1.bf16.msra.mxu0 %v1682
  %2497 = vmatprep.subr.bf16.mxu0 0
  %2498 = vmatpush1.bf16.msra.mxu0 %v1683
  %2499 = vmatprep.subr.bf16.mxu0 0
  %2500 = vmatpush1.bf16.msra.mxu0 %v1684
  %2501 = vmatprep.subr.bf16.mxu0 0
  %2502 = vmatpush1.bf16.msra.mxu0 %v1685
  %2503 = vmatprep.subr.bf16.mxu0 0
  %2504 = vmatpush1.bf16.msra.mxu0 %v1686
  %2505 = vmatprep.subr.bf16.mxu0 0
  %2506 = vmatpush1.bf16.msra.mxu0 0
  %2507 = vmatprep.subr.bf16.mxu0 0
  %2508 = vmatpush1.bf16.msra.mxu0 0
  %2509 = vmatprep.subr.bf16.mxu0 0
  %2510 = vmatpush1.bf16.msra.mxu0 0
  %2511 = vmatprep.subr.bf16.mxu0 0
  %2512 = vmatpush1.bf16.msra.mxu0 0
  %2513 = vmatprep.subr.bf16.mxu0 0
  %2514 = vmatpush1.bf16.msra.mxu0 0
  %2515 = vmatprep.subr.bf16.mxu0 0
  %2516 = vmatpush1.bf16.msra.mxu0 0
  %2517 = vmatprep.subr.bf16.mxu0 0
  %2518 = vmatpush1.bf16.msra.mxu0 0
  %2519 = vmatprep.subr.bf16.mxu0 0
  %2520 = vmatpush1.bf16.msra.mxu0 0
  %2521 = vmatprep.mubr.bf16.mxu0 0
  %2522 = vmatmul.mubr.bf16.gmra.mrb[0].mxu0 %v2488
  %v2523 = vpop.f32.mrb[0].mxu0
  %v2524 = vadd.f32 0.0, %v2523
  %v2525 = vpop.f32.mrb[0].mxu0
  %v2526 = vpop.f32.mrb[0].mxu0
  %v2527 = vpop.f32.mrb[0].mxu0
  %2528 = vdwg.mxu0
  %v2529 = vsel %vm1735, %v2524, -inf
  %2530 = vmax.xlane.f32.xlu0 %v2529
  %v2531 = vpop.xlane.xlu0 %2530
  %v2532 = vsub.f32 %v2524, %v2531
  %v2533 = vmul.f32 %v2532, 1.442695
  %v2534 = vpow.pop %v2533
  %v2535 = vsel %vm1735, %v2534, 0.0
  %2536 = vadd.xlane.f32.xlu0 %v2535
  %v2537 = vpop.xlane.xlu0 %2536
  %v2538 = vlog2.pop %v2537
  %v2539 = vmul.f32 %v2538, 0.6931472
  %v2540 = vsub.f32 %v2532, %v2539
  %2542 = vrot.lane.b32.xlu0 %v2540, 16
  %v2543 = vpop.permute.xlu0 %2542
  %vm2545 = vcmask 162944
  %2546 = vst.msk [vmem:[%s23] sm:$0xff] %vm2545, %v2543
  %v2547 = vmul.f32 %v2540, %v1396
  %v2548 = vsel %vm1735, %v2547, 0.0
  %2549 = vadd.xlane.f32.xlu0 %v2548
  %v2550 = vpop.xlane.xlu0 %2549
  %v2551 = vsel %vm1735, %v2540, -inf
  %2552 = vmax.xlane.f32.xlu0 %v2551
  %v2553 = vpop.xlane.xlu0 %2552
  %v2554 = vsub.f32 0.0, %v2550
  %vm2555 = vcmp.ge.f32.partialorder %v2550, %v2553
  %v2556 = vsel %vm2555, 1, 0
  %v2557 = vcvt.s32.f32 %v2556
  %v2558 = vmul.f32 %v2557, 100.0
  %2560 = vrot.lane.b32.xlu0 %v2378, 32
  %v2561 = vpop.permute.xlu0 %2560
  %v2563 = vmul.f32 %v2379, %v2561
  %v2564 = vadd.f32 %v2554, 0.04
  %v2565 = vmul.f32 %v2564, %v2563
  %2567 = vrot.lane.b32.xlu0 %v2565, 96
  %v2568 = vpop.permute.xlu0 %2567
  %v2570 = vadd.f32 %v2366, %v2568
  %v2571 = vmul.f32 %v2558, %v2563
  %2573 = vrot.lane.b32.xlu0 %v2571, 96
  %v2574 = vpop.permute.xlu0 %2573
  %v2576 = vadd.f32 %v2372, %v2574
  %v2577 = vsub.f32 1.0, %v2379
  %2579 = vrot.lane.b32.xlu0 %v2577, 96
  %v2580 = vpop.permute.xlu0 %2579
  %v2582 = vmul.f32 %v2378, %v2580
  %v2583 = vld [vmem:[%s21] sm:$0xff]
  %v2584 = vpack.c.bf16 %v2583, %v2583
  %2586 = vrot.lane.b32.xlu0 %v2584, 88
  %v2587 = vpop.permute.xlu0 %2586
  %v2589 = vsel %vm302, %v2587, 0
  %2591 = vmatprep.subr.bf16.mxu0 0
  %2592 = vmatpush1.bf16.msra.mxu0 %v1525
  %2593 = vmatprep.subr.bf16.mxu0 0
  %2594 = vmatpush1.bf16.msra.mxu0 0
  %2595 = vmatprep.subr.bf16.mxu0 0
  %2596 = vmatpush1.bf16.msra.mxu0 0
  %2597 = vmatprep.subr.bf16.mxu0 0
  %2598 = vmatpush1.bf16.msra.mxu0 0
  %2599 = vmatprep.subr.bf16.mxu0 0
  %2600 = vmatpush1.bf16.msra.mxu0 0
  %2601 = vmatprep.subr.bf16.mxu0 0
  %2602 = vmatpush1.bf16.msra.mxu0 0
  %2603 = vmatprep.subr.bf16.mxu0 0
  %2604 = vmatpush1.bf16.msra.mxu0 0
  %2605 = vmatprep.subr.bf16.mxu0 0
  %2606 = vmatpush1.bf16.msra.mxu0 0
  %2607 = vmatprep.subr.bf16.mxu0 0
  %2608 = vmatpush1.bf16.msra.mxu0 0
  %2609 = vmatprep.subr.bf16.mxu0 0
  %2610 = vmatpush1.bf16.msra.mxu0 0
  %2611 = vmatprep.subr.bf16.mxu0 0
  %2612 = vmatpush1.bf16.msra.mxu0 0
  %2613 = vmatprep.subr.bf16.mxu0 0
  %2614 = vmatpush1.bf16.msra.mxu0 0
  %2615 = vmatprep.subr.bf16.mxu0 0
  %2616 = vmatpush1.bf16.msra.mxu0 0
  %2617 = vmatprep.subr.bf16.mxu0 0
  %2618 = vmatpush1.bf16.msra.mxu0 0
  %2619 = vmatprep.subr.bf16.mxu0 0
  %2620 = vmatpush1.bf16.msra.mxu0 0
  %2621 = vmatprep.subr.bf16.mxu0 0
  %2622 = vmatpush1.bf16.msra.mxu0 0
  %2623 = vmatprep.mubr.bf16.mxu0 0
  %2624 = vmatmul.mubr.bf16.gmra.mrb[0].mxu0 %v2589
  %v2625 = vpop.f32.mrb[0].mxu0
  %v2626 = vadd.f32 %v1519, %v2625
  %v2627 = vpop.f32.mrb[0].mxu0
  %v2628 = vpop.f32.mrb[0].mxu0
  %v2629 = vpop.f32.mrb[0].mxu0
  %2630 = vdwg.mxu0
  %v2631 = vpack.c.bf16 %v2473, %v2473
  %v2633 = vsel %vm168, %v2631, 0
  %2635 = vmatprep.subr.bf16.mxu0 0
  %2636 = vmatpush1.bf16.msra.mxu0 %v1575
  %2637 = vmatprep.subr.bf16.mxu0 0
  %2638 = vmatpush1.bf16.msra.mxu0 %v1576
  %2639 = vmatprep.subr.bf16.mxu0 0
  %2640 = vmatpush1.bf16.msra.mxu0 0
  %2641 = vmatprep.subr.bf16.mxu0 0
  %2642 = vmatpush1.bf16.msra.mxu0 0
  %2643 = vmatprep.subr.bf16.mxu0 0
  %2644 = vmatpush1.bf16.msra.mxu0 0
  %2645 = vmatprep.subr.bf16.mxu0 0
  %2646 = vmatpush1.bf16.msra.mxu0 0
  %2647 = vmatprep.subr.bf16.mxu0 0
  %2648 = vmatpush1.bf16.msra.mxu0 0
  %2649 = vmatprep.subr.bf16.mxu0 0
  %2650 = vmatpush1.bf16.msra.mxu0 0
  %2651 = vmatprep.subr.bf16.mxu0 0
  %2652 = vmatpush1.bf16.msra.mxu0 0
  %2653 = vmatprep.subr.bf16.mxu0 0
  %2654 = vmatpush1.bf16.msra.mxu0 0
  %2655 = vmatprep.subr.bf16.mxu0 0
  %2656 = vmatpush1.bf16.msra.mxu0 0
  %2657 = vmatprep.subr.bf16.mxu0 0
  %2658 = vmatpush1.bf16.msra.mxu0 0
  %2659 = vmatprep.subr.bf16.mxu0 0
  %2660 = vmatpush1.bf16.msra.mxu0 0
  %2661 = vmatprep.subr.bf16.mxu0 0
  %2662 = vmatpush1.bf16.msra.mxu0 0
  %2663 = vmatprep.subr.bf16.mxu0 0
  %2664 = vmatpush1.bf16.msra.mxu0 0
  %2665 = vmatprep.subr.bf16.mxu0 0
  %2666 = vmatpush1.bf16.msra.mxu0 0
  %2667 = vmatprep.mubr.bf16.mxu0 0
  %2668 = vmatmul.mubr.bf16.gmra.mrb[0].mxu0 %v2633
  %v2669 = vpop.f32.mrb[0].mxu0
  %v2670 = vadd.f32 0.0, %v2669
  %v2671 = vpop.f32.mrb[0].mxu0
  %v2672 = vpop.f32.mrb[0].mxu0
  %v2673 = vpop.f32.mrb[0].mxu0
  %2674 = vdwg.mxu0
  %v2675 = vadd.f32 %v2626, %v2670
  %v2676 = vadd.f32 %v2675, %v1627
  %v2677 = vtanh.pop %v2676
  %2679 = vrot.lane.b32.xlu0 %v2677, 32
  %v2680 = vpop.permute.xlu0 %2679
  %2682 = vrot.lane.b32.xlu0 %v2677, 64
  %v2683 = vpop.permute.xlu0 %2682
  %2685 = vrot.lane.b32.xlu0 %v2677, 96
  %v2686 = vpop.permute.xlu0 %2685
  %v2688 = vsel %vm168, %v2677, %v2680
  %v2689 = vsel %vm1438, %v2688, %v2683
  %v2690 = vsel %vm1643, %v2689, %v2686
  %v2691 = vmul.f32 %v1482, %v2690
  %v2692 = vpack.c.bf16 %v2691, %v2691
  %2693 = vmatprep.subr.bf16.mxu0 0
  %2694 = vmatpush1.bf16.msra.mxu0 %v1679
  %2695 = vmatprep.subr.bf16.mxu0 0
  %2696 = vmatpush1.bf16.msra.mxu0 %v1680
  %2697 = vmatprep.subr.bf16.mxu0 0
  %2698 = vmatpush1.bf16.msra.mxu0 %v1681
  %2699 = vmatprep.subr.bf16.mxu0 0
  %2700 = vmatpush1.bf16.msra.mxu0 %v1682
  %2701 = vmatprep.subr.bf16.mxu0 0
  %2702 = vmatpush1.bf16.msra.mxu0 %v1683
  %2703 = vmatprep.subr.bf16.mxu0 0
  %2704 = vmatpush1.bf16.msra.mxu0 %v1684
  %2705 = vmatprep.subr.bf16.mxu0 0
  %2706 = vmatpush1.bf16.msra.mxu0 %v1685
  %2707 = vmatprep.subr.bf16.mxu0 0
  %2708 = vmatpush1.bf16.msra.mxu0 %v1686
  %2709 = vmatprep.subr.bf16.mxu0 0
  %2710 = vmatpush1.bf16.msra.mxu0 0
  %2711 = vmatprep.subr.bf16.mxu0 0
  %2712 = vmatpush1.bf16.msra.mxu0 0
  %2713 = vmatprep.subr.bf16.mxu0 0
  %2714 = vmatpush1.bf16.msra.mxu0 0
  %2715 = vmatprep.subr.bf16.mxu0 0
  %2716 = vmatpush1.bf16.msra.mxu0 0
  %2717 = vmatprep.subr.bf16.mxu0 0
  %2718 = vmatpush1.bf16.msra.mxu0 0
  %2719 = vmatprep.subr.bf16.mxu0 0
  %2720 = vmatpush1.bf16.msra.mxu0 0
  %2721 = vmatprep.subr.bf16.mxu0 0
  %2722 = vmatpush1.bf16.msra.mxu0 0
  %2723 = vmatprep.subr.bf16.mxu0 0
  %2724 = vmatpush1.bf16.msra.mxu0 0
  %2725 = vmatprep.mubr.bf16.mxu0 0
  %2726 = vmatmul.mubr.bf16.gmra.mrb[0].mxu0 %v2692
  %v2727 = vpop.f32.mrb[0].mxu0
  %v2728 = vadd.f32 0.0, %v2727
  %v2729 = vpop.f32.mrb[0].mxu0
  %v2730 = vpop.f32.mrb[0].mxu0
  %v2731 = vpop.f32.mrb[0].mxu0
  %2732 = vdwg.mxu0
  %v2733 = vsel %vm1735, %v2728, -inf
  %2734 = vmax.xlane.f32.xlu0 %v2733
  %v2735 = vpop.xlane.xlu0 %2734
  %v2736 = vsub.f32 %v2728, %v2735
  %v2737 = vmul.f32 %v2736, 1.442695
  %v2738 = vpow.pop %v2737
  %v2739 = vsel %vm1735, %v2738, 0.0
  %2740 = vadd.xlane.f32.xlu0 %v2739
  %v2741 = vpop.xlane.xlu0 %2740
  %v2742 = vlog2.pop %v2741
  %v2743 = vmul.f32 %v2742, 0.6931472
  %v2744 = vsub.f32 %v2736, %v2743
  %2746 = vrot.lane.b32.xlu0 %v2744, 20
  %v2747 = vpop.permute.xlu0 %2746
  %vm2749 = vcmask 195744
  %2750 = vst.msk [vmem:[%s23] sm:$0xff] %vm2749, %v2747
  %v2751 = vmul.f32 %v2744, %v1396
  %v2752 = vsel %vm1735, %v2751, 0.0
  %2753 = vadd.xlane.f32.xlu0 %v2752
  %v2754 = vpop.xlane.xlu0 %2753
  %v2755 = vsel %vm1735, %v2744, -inf
  %2756 = vmax.xlane.f32.xlu0 %v2755
  %v2757 = vpop.xlane.xlu0 %2756
  %v2758 = vsub.f32 0.0, %v2754
  %vm2759 = vcmp.ge.f32.partialorder %v2754, %v2757
  %v2760 = vsel %vm2759, 1, 0
  %v2761 = vcvt.s32.f32 %v2760
  %v2762 = vmul.f32 %v2761, 100.0
  %2764 = vrot.lane.b32.xlu0 %v2582, 40
  %v2765 = vpop.permute.xlu0 %2764
  %v2767 = vmul.f32 %v2583, %v2765
  %v2768 = vadd.f32 %v2758, 0.05
  %v2769 = vmul.f32 %v2768, %v2767
  %2771 = vrot.lane.b32.xlu0 %v2769, 88
  %v2772 = vpop.permute.xlu0 %2771
  %v2774 = vadd.f32 %v2570, %v2772
  %v2775 = vmul.f32 %v2762, %v2767
  %2777 = vrot.lane.b32.xlu0 %v2775, 88
  %v2778 = vpop.permute.xlu0 %2777
  %v2780 = vadd.f32 %v2576, %v2778
  %v2781 = vsub.f32 1.0, %v2583
  %2783 = vrot.lane.b32.xlu0 %v2781, 88
  %v2784 = vpop.permute.xlu0 %2783
  %v2786 = vmul.f32 %v2582, %v2784
  %v2787 = vpack.c.bf16 %v2677, %v2677
  %v2789 = vsel %vm168, %v2787, 0
  %2791 = vmatprep.subr.bf16.mxu0 0
  %2792 = vmatpush1.bf16.msra.mxu0 %v1575
  %2793 = vmatprep.subr.bf16.mxu0 0
  %2794 = vmatpush1.bf16.msra.mxu0 %v1576
  %2795 = vmatprep.subr.bf16.mxu0 0
  %2796 = vmatpush1.bf16.msra.mxu0 0
  %2797 = vmatprep.subr.bf16.mxu0 0
  %2798 = vmatpush1.bf16.msra.mxu0 0
  %2799 = vmatprep.subr.bf16.mxu0 0
  %2800 = vmatpush1.bf16.msra.mxu0 0
  %2801 = vmatprep.subr.bf16.mxu0 0
  %2802 = vmatpush1.bf16.msra.mxu0 0
  %2803 = vmatprep.subr.bf16.mxu0 0
  %2804 = vmatpush1.bf16.msra.mxu0 0
  %2805 = vmatprep.subr.bf16.mxu0 0
  %2806 = vmatpush1.bf16.msra.mxu0 0
  %2807 = vmatprep.subr.bf16.mxu0 0
  %2808 = vmatpush1.bf16.msra.mxu0 0
  %2809 = vmatprep.subr.bf16.mxu0 0
  %2810 = vmatpush1.bf16.msra.mxu0 0
  %2811 = vmatprep.subr.bf16.mxu0 0
  %2812 = vmatpush1.bf16.msra.mxu0 0
  %2813 = vmatprep.subr.bf16.mxu0 0
  %2814 = vmatpush1.bf16.msra.mxu0 0
  %2815 = vmatprep.subr.bf16.mxu0 0
  %2816 = vmatpush1.bf16.msra.mxu0 0
  %2817 = vmatprep.subr.bf16.mxu0 0
  %2818 = vmatpush1.bf16.msra.mxu0 0
  %2819 = vmatprep.subr.bf16.mxu0 0
  %2820 = vmatpush1.bf16.msra.mxu0 0
  %2821 = vmatprep.subr.bf16.mxu0 0
  %2822 = vmatpush1.bf16.msra.mxu0 0
  %2823 = vmatprep.mubr.bf16.mxu0 0
  %2824 = vmatmul.mubr.bf16.gmra.mrb[0].mxu0 %v2789
  %v2825 = vpop.f32.mrb[0].mxu0
  %v2826 = vadd.f32 0.0, %v2825
  %v2827 = vpop.f32.mrb[0].mxu0
  %v2828 = vpop.f32.mrb[0].mxu0
  %v2829 = vpop.f32.mrb[0].mxu0
  %2830 = vdwg.mxu0
  %v2831 = vadd.f32 %v1495, %v2826
  %v2832 = vadd.f32 %v2831, %v1627
  %v2833 = vtanh.pop %v2832
  %2835 = vrot.lane.b32.xlu0 %v2833, 32
  %v2836 = vpop.permute.xlu0 %2835
  %2838 = vrot.lane.b32.xlu0 %v2833, 64
  %v2839 = vpop.permute.xlu0 %2838
  %2841 = vrot.lane.b32.xlu0 %v2833, 96
  %v2842 = vpop.permute.xlu0 %2841
  %v2844 = vsel %vm168, %v2833, %v2836
  %v2845 = vsel %vm1438, %v2844, %v2839
  %v2846 = vsel %vm1643, %v2845, %v2842
  %v2847 = vmul.f32 %v1482, %v2846
  %v2848 = vpack.c.bf16 %v2847, %v2847
  %2849 = vmatprep.subr.bf16.mxu0 0
  %2850 = vmatpush1.bf16.msra.mxu0 %v1679
  %2851 = vmatprep.subr.bf16.mxu0 0
  %2852 = vmatpush1.bf16.msra.mxu0 %v1680
  %2853 = vmatprep.subr.bf16.mxu0 0
  %2854 = vmatpush1.bf16.msra.mxu0 %v1681
  %2855 = vmatprep.subr.bf16.mxu0 0
  %2856 = vmatpush1.bf16.msra.mxu0 %v1682
  %2857 = vmatprep.subr.bf16.mxu0 0
  %2858 = vmatpush1.bf16.msra.mxu0 %v1683
  %2859 = vmatprep.subr.bf16.mxu0 0
  %2860 = vmatpush1.bf16.msra.mxu0 %v1684
  %2861 = vmatprep.subr.bf16.mxu0 0
  %2862 = vmatpush1.bf16.msra.mxu0 %v1685
  %2863 = vmatprep.subr.bf16.mxu0 0
  %2864 = vmatpush1.bf16.msra.mxu0 %v1686
  %2865 = vmatprep.subr.bf16.mxu0 0
  %2866 = vmatpush1.bf16.msra.mxu0 0
  %2867 = vmatprep.subr.bf16.mxu0 0
  %2868 = vmatpush1.bf16.msra.mxu0 0
  %2869 = vmatprep.subr.bf16.mxu0 0
  %2870 = vmatpush1.bf16.msra.mxu0 0
  %2871 = vmatprep.subr.bf16.mxu0 0
  %2872 = vmatpush1.bf16.msra.mxu0 0
  %2873 = vmatprep.subr.bf16.mxu0 0
  %2874 = vmatpush1.bf16.msra.mxu0 0
  %2875 = vmatprep.subr.bf16.mxu0 0
  %2876 = vmatpush1.bf16.msra.mxu0 0
  %2877 = vmatprep.subr.bf16.mxu0 0
  %2878 = vmatpush1.bf16.msra.mxu0 0
  %2879 = vmatprep.subr.bf16.mxu0 0
  %2880 = vmatpush1.bf16.msra.mxu0 0
  %2881 = vmatprep.mubr.bf16.mxu0 0
  %2882 = vmatmul.mubr.bf16.gmra.mrb[0].mxu0 %v2848
  %v2883 = vpop.f32.mrb[0].mxu0
  %v2884 = vadd.f32 0.0, %v2883
  %v2885 = vpop.f32.mrb[0].mxu0
  %v2886 = vpop.f32.mrb[0].mxu0
  %v2887 = vpop.f32.mrb[0].mxu0
  %2888 = vdwg.mxu0
  %v2889 = vsel %vm1735, %v2884, -inf
  %2890 = vmax.xlane.f32.xlu0 %v2889
  %v2891 = vpop.xlane.xlu0 %2890
  %v2892 = vsub.f32 %v2884, %v2891
  %v2893 = vmul.f32 %v2892, 1.442695
  %v2894 = vpow.pop %v2893
  %v2895 = vsel %vm1735, %v2894, 0.0
  %2896 = vadd.xlane.f32.xlu0 %v2895
  %v2897 = vpop.xlane.xlu0 %2896
  %v2898 = vlog2.pop %v2897
  %v2899 = vmul.f32 %v2898, 0.6931472
  %v2900 = vsub.f32 %v2892, %v2899
  %2902 = vrot.lane.b32.xlu0 %v2900, 24
  %v2903 = vpop.permute.xlu0 %2902
  %vm2905 = vcmask 228544
  %2906 = vst.msk [vmem:[%s23] sm:$0xff] %vm2905, %v2903
  %v2907 = vmul.f32 %v2900, %v1396
  %v2908 = vsel %vm1735, %v2907, 0.0
  %2909 = vadd.xlane.f32.xlu0 %v2908
  %v2910 = vpop.xlane.xlu0 %2909
  %v2911 = vsel %vm1735, %v2900, -inf
  %2912 = vmax.xlane.f32.xlu0 %v2911
  %v2913 = vpop.xlane.xlu0 %2912
  %v2914 = vsub.f32 0.0, %v2910
  %vm2915 = vcmp.ge.f32.partialorder %v2910, %v2913
  %v2916 = vsel %vm2915, 1, 0
  %v2917 = vcvt.s32.f32 %v2916
  %v2918 = vmul.f32 %v2917, 100.0
  %v2919 = vadd.f32 %v2914, 0.06
  %v2920 = vmul.f32 %v2919, %v2786
  %v2921 = vadd.f32 %v2774, %v2920
  %v2922 = vmul.f32 %v2918, %v2786
  %v2923 = vadd.f32 %v2780, %v2922
  %v2924 = vmul.f32 %v2786, 0.0
  %v2925 = vmul.f32 %v2919, %v2924
  %v2926 = vadd.f32 %v2921, %v2925
  %v2927 = vmul.f32 %v2918, %v2924
  %v2928 = vadd.f32 %v2923, %v2927
  %2930 = vrot.lane.b32.xlu0 %v1381, 1
  %v2931 = vpop.permute.xlu0 %2930
  %2934 = vrot.lane.b32.xlu0 %v1383, 2
  %v2935 = vpop.permute.xlu0 %2934
  %2937 = vrot.lane.b32.xlu0 %v1383, 3
  %v2938 = vpop.permute.xlu0 %2937
  %2941 = vrot.lane.b32.xlu0 %v2928, 4
  %v2942 = vpop.permute.xlu0 %2941
  %2945 = vrot.lane.b32.xlu0 %v2923, 5
  %v2946 = vpop.permute.xlu0 %2945
  %2949 = vrot.lane.b32.xlu0 %v1389, 126
  %v2950 = vpop.permute.xlu0 %2949
  %vm2952 = vcmask 7168
  %v2953 = vsel %vm2952, %v2926, %v2931
  %vm2954 = vcmask 15360
  %v2955 = vsel %vm2954, %v2953, %v2935
  %vm2956 = vcmask 23552
  %v2957 = vsel %vm2956, %v2955, %v2938
  %v2958 = vsel %vm1735, %v2957, %v2942
  %vm2959 = vcmask 39936
  %v2960 = vsel %vm2959, %v2958, %v2946
  %vm2961 = vcmask 48128
  %v2962 = vsel %vm2961, %v2960, %v2950
  %vm2963 = vcmask 56320
  %v2964 = vsel %vm2963, %v2962, 0.0
  %2965 = vst.msk [vmem:[%s24] sm:$0xff] %vm302, %v2964
  // Predicated region
  $region86: #{sender_receiver_rnn_gs_forward.1} parent=0 // pred_check
    _
  $region87: #{sender_receiver_rnn_gs_forward.1} parent=0 // pred_check_branch
    %2967 = sbr.rel (0) target = $region89
  $region88: #{sender_receiver_rnn_gs_forward.1} parent=0 // pred_region
    _
  $region89: #{sender_receiver_rnn_gs_forward.1} parent=0 // pred_fallthru
    _
  // Predicated region
  $region90: #{sender_receiver_rnn_gs_forward.1} parent=0 // pred_check
    _
  $region91: #{sender_receiver_rnn_gs_forward.1} parent=0 // pred_check_branch
    %2969 = sbr.rel (0) target = $region93
  $region92: #{sender_receiver_rnn_gs_forward.1} parent=0 // pred_region
    _
  $region93: #{sender_receiver_rnn_gs_forward.1} parent=0 // pred_fallthru
    _
  // Predicated region
  $region94: #{sender_receiver_rnn_gs_forward.1} parent=0 // pred_check
    _
  $region95: #{sender_receiver_rnn_gs_forward.1} parent=0 // pred_check_branch
    %2971 = sbr.rel (0) target = $region97
  $region96: #{sender_receiver_rnn_gs_forward.1} parent=0 // pred_region
    _
  $region97: #{sender_receiver_rnn_gs_forward.1} parent=0 // pred_fallthru
    _
  // Predicated region
  $region98: #{sender_receiver_rnn_gs_forward.1} parent=0 // pred_check
    _
  $region99: #{sender_receiver_rnn_gs_forward.1} parent=0 // pred_check_branch
    %2973 = sbr.rel (0) target = $region101
  $region100: #{sender_receiver_rnn_gs_forward.1} parent=0 // pred_region
    _
  $region101: #{sender_receiver_rnn_gs_forward.1} parent=0 // pred_fallthru
    _
  // Predicated region
  $region102: #{sender_receiver_rnn_gs_forward.1} parent=0 // pred_check
    _
  $region103: #{sender_receiver_rnn_gs_forward.1} parent=0 // pred_check_branch
    %2975 = sbr.rel (0) target = $region105
  $region104: #{sender_receiver_rnn_gs_forward.1} parent=0 // pred_region
    _
  $region105: #{sender_receiver_rnn_gs_forward.1} parent=0 // pred_fallthru
    _
  // Predicated region
  $region106: #{sender_receiver_rnn_gs_forward.1} parent=0 // pred_check
    _
  $region107: #{sender_receiver_rnn_gs_forward.1} parent=0 // pred_check_branch
    %2977 = sbr.rel (0) target = $region109
  $region108: #{sender_receiver_rnn_gs_forward.1} parent=0 // pred_region
    _
  $region109: #{sender_receiver_rnn_gs_forward.1} parent=0 // pred_fallthru
    _
  // Predicated region
  $region110: #{sender_receiver_rnn_gs_forward.1} parent=0 // pred_check
    _
  $region111: #{sender_receiver_rnn_gs_forward.1} parent=0 // pred_check_branch
    %2979 = sbr.rel (0) target = $region113
  $region112: #{sender_receiver_rnn_gs_forward.1} parent=0 // pred_region
    _
  $region113: #{sender_receiver_rnn_gs_forward.1} parent=0 // pred_fallthru
    _
  // Predicated region
  $region114: #{sender_receiver_rnn_gs_forward.1} parent=0 // pred_check
    _
  $region115: #{sender_receiver_rnn_gs_forward.1} parent=0 // pred_check_branch
    %2981 = sbr.rel (0) target = $region117
  $region116: #{sender_receiver_rnn_gs_forward.1} parent=0 // pred_region
    _
  $region117: #{sender_receiver_rnn_gs_forward.1} parent=0 // pred_fallthru
    _

</llo_original>
